<compile_context>
chip_gen: v7x
topology: tpu7x:2x2x1
jax: 0.10.0
libtpu: 0.0.40
codegen_flags: <defaults>
</compile_context>

<pallas_src>
import numpy as np
import jax
import jax.numpy as jnp
from jax import lax
from jax.experimental import pallas as pl
from jax.experimental.pallas import tpu as pltpu

# ----------------------------- constants ------------------------------------
EPS = 1e-7            # scglue/sckade EPS
TOTAL_COUNT = 1e4     # Encoder.TOTAL_COUNT
BN_EPS = 1e-5         # torch.nn.BatchNorm1d default eps
LANE = 128            # TPU lane width

GRID_SIZE = 5         # KANLinear defaults (efficient-kan)
SPLINE_ORDER = 3
GRID_RANGE = (-1.0, 1.0)
NUM_BASES = GRID_SIZE + SPLINE_ORDER                 # 8 cubic bases
NUM_FEATS = 1 + NUM_BASES                            # [SiLU | B_0 .. B_7]
NUM_CELLS = GRID_SIZE + 2 * SPLINE_ORDER             # 11 knot intervals
_H = (GRID_RANGE[1] - GRID_RANGE[0]) / GRID_SIZE     # 0.4
KNOT0 = GRID_RANGE[0] - SPLINE_ORDER * _H            # -2.2 (leftmost knot)

# K-tile for the layer-1 in_features reduction.  512 fits every generation at
# the default scoped-VMEM limit; for big gene panels raise it (~1024 on v7x
# with its 64 MiB physical VMEM, 2048-4096 on v5e/v6e) together with
# pltpu.CompilerParams(vmem_limit_bytes=...) and consider
# pipeline_mode=pl.Buffered(3) on the layer-1 weight BlockSpec.
MAX_TK = 512


def _k_tiling(fin):
    """(fin_padded, TK, KT) for the layer-1 feature-dim reduction."""
    if fin <= MAX_TK:
        fin_pad = LANE * int(np.ceil(max(fin, 1) / LANE))
        return fin_pad, fin_pad, 1
    fin_pad = MAX_TK * int(np.ceil(fin / MAX_TK))
    return fin_pad, MAX_TK, fin_pad // MAX_TK


# ----------------------------- in-kernel math --------------------------------
def _bspline_features(x):
    """[SiLU(x), B_0(x), ..., B_7(x)] via the uniform-knot cardinal cubic
    B-spline closed form: only 4 segments are nonzero per point; they are
    placed into the 8 basis slots with bucket one-hots (no Cox-de Boor ladder).
    Out-of-range x (|x| beyond the extended grid) yields all-zero bases,
    matching efficient-kan."""
    u = (x - KNOT0) * (1.0 / _H)          # knot spacing normalized to 1
    bucket = jnp.floor(u)
    t = u - bucket                        # local parameter in [0, 1)
    t2 = t * t
    t3 = t2 * t
    omt = 1.0 - t
    sixth = 1.0 / 6.0
    p0 = t3 * sixth                                            # segment m
    p1 = (-3.0 * t3 + 3.0 * t2 + 3.0 * t + 1.0) * sixth        # segment m-1
    p2 = (3.0 * t3 - 6.0 * t2 + 4.0) * sixth                   # segment m-2
    p3 = omt * omt * omt * sixth                               # segment m-3
    onehot = [(bucket == m).astype(x.dtype) for m in range(NUM_CELLS)]
    bases = [p0 * onehot[j] + p1 * onehot[j + 1]
             + p2 * onehot[j + 2] + p3 * onehot[j + 3]
             for j in range(NUM_BASES)]
    sig = 1.0 / (1.0 + jnp.exp(-x))        # exact sigmoid (no approx recip)
    return [x * sig] + bases               # len == NUM_FEATS


def _batchnorm(x, gamma, beta):
    """BatchNorm1d, training mode: batch statistics, biased variance, affine."""
    mean = jnp.mean(x, axis=0, keepdims=True)
    var = jnp.mean((x - mean) ** 2, axis=0, keepdims=True)
    return (x - mean) * lax.rsqrt(var + BN_EPS) * gamma + beta


def _make_encoder_kernel(h_depth, do_normalize, pf, h_dim):
    """Fused forward: [l / normalize] -> K-tiled KAN_1 -> BN -> (KAN+BN)* ->
    fused loc/std heads.  Grid = (n_phase, KT)."""
    H = h_dim
    last_phase = 1 if do_normalize else 0

    def _kan_matmul(feats, w_ref):
        """sum_i feats[i] @ w[:, i*H:(i+1)*H] -- 9 accumulated MXU dots against
        lane-aligned column blocks (no lane concat, no 9x activation temp)."""
        out = None
        for i in range(NUM_FEATS):
            d = jnp.dot(feats[i].astype(jnp.bfloat16),
                        w_ref[:, i * H:(i + 1) * H],
                        preferred_element_type=jnp.float32)
            out = d if out is None else out + d
        return out

    def kernel(*refs):
        x_ref = refs[0]
        lyr = refs[1:1 + 3 * h_depth]          # per layer: w, gamma, beta
        wh_ref = refs[1 + 3 * h_depth]
        bh_ref = refs[2 + 3 * h_depth]
        out_ref = refs[3 + 3 * h_depth]
        l_ref = refs[4 + 3 * h_depth] if do_normalize else None
        acc_ref = refs[-1]                     # (N, H) f32 scratch

        p = pl.program_id(0)
        k = pl.program_id(1)
        nk = pl.num_programs(1)

        if do_normalize:
            # ---- phase 0: accumulate l = x.sum(dim=1) (lane-dense) ----------
            @pl.when((p == 0) & (k == 0))
            def _init_l():
                l_ref[...] = jnp.zeros_like(l_ref)

            @pl.when(p == 0)
            def _accum_l():
                part = jnp.sum(x_ref[...], axis=1, keepdims=True)
                l_ref[...] += jnp.broadcast_to(part, l_ref.shape)

        # ---- layer 1: K-tiled reduction into the f32 VMEM accumulator ------
        @pl.when(p == last_phase)
        def _layer1():
            @pl.when(k == 0)
            def _init_acc():
                acc_ref[...] = jnp.zeros_like(acc_ref)

            x = x_ref[...]
            if do_normalize:
                l = l_ref[...]
                x = jnp.log1p(x * (TOTAL_COUNT / l[:, :1]))
            acc_ref[...] += _kan_matmul(_bspline_features(x), lyr[0])

        # ---- epilogue: BN_1 -> remaining (KAN+BN) layers -> fused heads ----
        @pl.when((p == last_phase) & (k == nk - 1))
        def _epilogue():
            h = _batchnorm(acc_ref[...], lyr[1][...], lyr[2][...])
            for d in range(1, h_depth):
                out = _kan_matmul(_bspline_features(h), lyr[3 * d])
                h = _batchnorm(out, lyr[3 * d + 1][...], lyr[3 * d + 2][...])
            pre = jnp.dot(h.astype(jnp.bfloat16), wh_ref[...],
                          preferred_element_type=jnp.float32) + bh_ref[...]
            out_ref[:, :pf] = pre[:, :pf]                       # loc half
            s = pre[:, pf:]                                     # std_lin half
            # numerically-stable softplus + EPS, only on the std half
            out_ref[:, pf:] = (jnp.maximum(s, 0.0)
                               + jnp.log1p(jnp.exp(-jnp.abs(s))) + EPS)

    return kernel


# ----------------------------- wrappers --------------------------------------
def encoder_pallas(inp, params, do_normalize):
    """Single fused pallas_call.  Returns (heads_slab (N, 2*pf), l or None)."""
    n = inp.shape[0]
    layers = params["layers"]
    h_depth = len(layers)
    h_dim = params["h_dim"]
    pf = params["pf"]

    fin_pad = layers[0]["w"].shape[0]
    _, tk, kt = _k_tiling(fin_pad)
    assert inp.shape[1] <= fin_pad
    if inp.shape[1] != fin_pad:                # zero-pad: weight rows past the
        inp = jnp.pad(inp, ((0, 0), (0, fin_pad - inp.shape[1])))  # real fan-in are 0
    n_phase = 2 if do_normalize else 1

    w1_cols = layers[0]["w"].shape[1]
    if do_normalize:
        w1_idx = lambda p, k: (p * k, 0)       # phase 0 pins block 0 (no re-DMA)
    else:
        w1_idx = lambda p, k: (k, 0)

    args = [inp]
    in_specs = [pl.BlockSpec((n, tk), lambda p, k: (0, k))]
    for d, layer in enumerate(layers):
        args += [layer["w"], layer["gamma"], layer["beta"]]
        if d == 0:
            in_specs.append(pl.BlockSpec((tk, w1_cols), w1_idx))
        else:
            in_specs.append(pl.BlockSpec(layer["w"].shape, lambda p, k: (0, 0)))
        in_specs.append(pl.BlockSpec(layer["gamma"].shape, lambda p, k: (0, 0)))
        in_specs.append(pl.BlockSpec(layer["beta"].shape, lambda p, k: (0, 0)))
    args += [params["wh"], params["bh"]]
    in_specs.append(pl.BlockSpec(params["wh"].shape, lambda p, k: (0, 0)))
    in_specs.append(pl.BlockSpec(params["bh"].shape, lambda p, k: (0, 0)))

    out_shapes = [jax.ShapeDtypeStruct((n, 2 * pf), jnp.float32)]
    out_specs = [pl.BlockSpec((n, 2 * pf), lambda p, k: (0, 0))]
    if do_normalize:
        out_shapes.append(jax.ShapeDtypeStruct((n, LANE), jnp.float32))
        out_specs.append(pl.BlockSpec((n, LANE), lambda p, k: (0, 0)))

    grid_spec = pltpu.PrefetchScalarGridSpec(
        num_scalar_prefetch=0,
        grid=(n_phase, kt),
        in_specs=in_specs,
        out_specs=out_specs if len(out_specs) > 1 else out_specs[0],
        scratch_shapes=[pltpu.VMEM((n, h_dim), jnp.float32)],
    )

    res = pl.pallas_call(
        _make_encoder_kernel(h_depth, do_normalize, pf, h_dim),
        grid_spec=grid_spec,
        out_shape=tuple(out_shapes) if len(out_shapes) > 1 else out_shapes[0],
        compiler_params=pltpu.CompilerParams(
            dimension_semantics=("arbitrary", "arbitrary")),
    )(*args)

    if do_normalize:
        heads, l_full = res
        return heads, l_full[:, :1]
    heads = res[0] if isinstance(res, (tuple, list)) else res
    return heads, None


def encoder_forward(x, xrep, params, lazy_normalizer=True):
    """Returns (loc, std, l) -- D.Normal(loc, std) is represented by its arrays."""
    out_f = params["out_features"]
    pf = params["pf"]
    if xrep.size:
        l = None if lazy_normalizer else jnp.sum(x, axis=1, keepdims=True)
        heads, _ = encoder_pallas(xrep, params, do_normalize=False)
    else:
        heads, l = encoder_pallas(x, params, do_normalize=True)
    loc = heads[:, :out_f]
    std = heads[:, pf:pf + out_f]
    return loc, std, l


# ----------------------------- params ----------------------------------------
def init_params(key, in_features, out_features, h_depth=2, h_dim=128):
    """Deterministic in-script init.  Pre-fused, TPU-friendly layouts:
      layer 'w' : (fan_in_padded, 9*h_dim) bf16, column blocks [SiLU|B_0..B_7],
                  rows past the real fan-in are zero (feature padding is a no-op)
      'wh'/'bh' : (h_dim, 2*pf) bf16 / (1, 2*pf) f32, cols [0:out)=loc,
                  [pf:pf+out)=std, with pf a multiple of 128 lanes."""
    assert h_dim % LANE == 0, "h_dim must be a multiple of 128 lanes"
    pf = LANE * int(np.ceil(out_features / LANE))
    params = {"layers": [], "out_features": out_features, "pf": pf, "h_dim": h_dim}
    fan_in = in_features
    for d in range(h_depth):
        key, k1, k2, k3, k4, k5 = jax.random.split(key, 6)
        fan_pad = _k_tiling(fan_in)[0] if d == 0 else h_dim
        base_w = jax.random.normal(k1, (h_dim, fan_in), jnp.float32) / np.sqrt(fan_in)
        spline_w = 0.1 * jax.random.normal(k2, (h_dim, fan_in, NUM_BASES), jnp.float32)
        spline_scaler = 1.0 + 0.1 * jax.random.normal(k3, (h_dim, fan_in), jnp.float32)
        scaled = spline_w * spline_scaler[..., None]            # (out, in, K)
        w = np.zeros((fan_pad, NUM_FEATS * h_dim), np.float32)
        w[:fan_in, :h_dim] = np.asarray(base_w).T
        for j in range(NUM_BASES):
            w[:fan_in, (1 + j) * h_dim:(2 + j) * h_dim] = np.asarray(scaled[:, :, j]).T
        params["layers"].append({
            "w": jnp.asarray(w, jnp.bfloat16),                  # bf16 at rest
            "gamma": 1.0 + 0.1 * jax.random.normal(k4, (1, h_dim), jnp.float32),
            "beta": 0.05 * jax.random.normal(k5, (1, h_dim), jnp.float32),
        })
        fan_in = h_dim
    key, k1, k2, k3, k4 = jax.random.split(key, 5)
    wloc = jax.random.normal(k1, (h_dim, out_features), jnp.float32) / np.sqrt(h_dim)
    bloc = 0.01 * jax.random.normal(k2, (1, out_features), jnp.float32)
    wstd = jax.random.normal(k3, (h_dim, out_features), jnp.float32) / np.sqrt(h_dim)
    bstd = 0.01 * jax.random.normal(k4, (1, out_features), jnp.float32)
    wh = np.zeros((h_dim, 2 * pf), np.float32)
    wh[:, :out_features] = np.asarray(wloc)
    wh[:, pf:pf + out_features] = np.asarray(wstd)
    bh = np.zeros((1, 2 * pf), np.float32)
    bh[:, :out_features] = np.asarray(bloc)
    bh[:, pf:pf + out_features] = np.asarray(bstd)
    params["wh"] = jnp.asarray(wh, jnp.bfloat16)
    params["bh"] = jnp.asarray(bh, jnp.float32)
    return params


# ----------------------------- pure-JAX reference -----------------------------
def _ref_bases(x):
    """efficient-kan b_splines: pairwise indicators + Cox-de Boor ladder."""
    knots = [KNOT0 + _H * j for j in range(NUM_CELLS + 1)]
    b = [((x >= knots[j]) & (x < knots[j + 1])).astype(x.dtype)
         for j in range(NUM_CELLS)]
    for k in range(1, SPLINE_ORDER + 1):
        b = [(x - knots[j]) / (knots[j + k] - knots[j]) * b[j]
             + (knots[j + k + 1] - x) / (knots[j + k + 1] - knots[j + 1]) * b[j + 1]
             for j in range(len(b) - 1)]
    return b


def reference_forward(x, params):
    """f32 reference for the normalize path (same weights, no bf16)."""
    out_f, pf, h_dim = params["out_features"], params["pf"], params["h_dim"]
    l = jnp.sum(x, axis=1, keepdims=True)
    ptr = jnp.log1p(x * (TOTAL_COUNT / l))
    for layer in params["layers"]:
        w = layer["w"].astype(jnp.float32)
        ptr = jnp.pad(ptr, ((0, 0), (0, w.shape[0] - ptr.shape[1])))
        sig = 1.0 / (1.0 + jnp.exp(-ptr))
        feats = [ptr * sig] + _ref_bases(ptr)
        out = sum(feats[i] @ w[:, i * h_dim:(i + 1) * h_dim]
                  for i in range(NUM_FEATS))
        mean = out.mean(axis=0, keepdims=True)
        var = ((out - mean) ** 2).mean(axis=0, keepdims=True)
        ptr = (out - mean) * lax.rsqrt(var + BN_EPS) * layer["gamma"] + layer["beta"]
    pre = ptr @ params["wh"].astype(jnp.float32) + params["bh"]
    loc = pre[:, :out_f]
    std = jax.nn.softplus(pre[:, pf:pf + out_f]) + EPS
    return loc, std, l


# ----------------------------- main -------------------------------------------
if __name__ == "__main__":
    N, IN_F, OUT_F, H_DIM, H_DEPTH = 16, 32, 8, 128, 2
    key = jax.random.PRNGKey(0)
    kx, kr, kp = jax.random.split(key, 3)

    # Count-like non-negative data -> exercises the fused (l, normalize) path.
    x = jax.random.uniform(kx, (N, IN_F), minval=0.0, maxval=5.0, dtype=jnp.float32)
    xrep_empty = jnp.zeros((N, 0), dtype=jnp.float32)

    params = init_params(kp, IN_F, OUT_F, h_depth=H_DEPTH, h_dim=H_DIM)

    loc, std, l = encoder_forward(x, xrep_empty, params)
    jax.block_until_ready((loc, std, l))

    assert loc.shape == (N, OUT_F) and std.shape == (N, OUT_F) and l.shape == (N, 1)
    assert bool(jnp.all(jnp.isfinite(loc))) and bool(jnp.all(std > 0))

    # Cross-check vs the f32 reference (kernel matmuls are bf16 -> loose tol).
    loc_r, std_r, l_r = reference_forward(x, params)
    err_l = float(jnp.max(jnp.abs(l - l_r)))
    err_loc = float(jnp.max(jnp.abs(loc - loc_r)))
    err_std = float(jnp.max(jnp.abs(std - std_r)))
    assert err_l < 1e-2 and err_loc < 0.2 and err_std < 0.2, (err_l, err_loc, err_std)

    # xrep path: normalize skipped inside the kernel, lazy l -> None.
    xrep = jax.random.normal(kr, (N, IN_F), dtype=jnp.float32)
    loc2, std2, l2 = encoder_forward(x, xrep, params)
    jax.block_until_ready((loc2, std2))
    assert loc2.shape == (N, OUT_F) and l2 is None and bool(jnp.all(std2 > 0))

    # TODO(synk): torch.distributions.Normal has no Pallas equivalent; the
    # distribution is returned as its (loc, std) parameter arrays.
    print("KERNEL_OK")
</pallas_src>

<mosaic_0001>
module attributes {stable_mosaic.version = 11 : i64} {
  func.func @kernel(%arg0: i32, %arg1: i32, %arg2: memref<16x128xf32, #tpu.memory_space<vmem>>, %arg3: memref<128x1152xbf16, #tpu.memory_space<vmem>>, %arg4: memref<1x128xf32, #tpu.memory_space<vmem>>, %arg5: memref<1x128xf32, #tpu.memory_space<vmem>>, %arg6: memref<128x1152xbf16, #tpu.memory_space<vmem>>, %arg7: memref<1x128xf32, #tpu.memory_space<vmem>>, %arg8: memref<1x128xf32, #tpu.memory_space<vmem>>, %arg9: memref<128x256xbf16, #tpu.memory_space<vmem>>, %arg10: memref<1x256xf32, #tpu.memory_space<vmem>>, %arg11: memref<16x256xf32, #tpu.memory_space<vmem>>, %arg12: memref<16x128xf32, #tpu.memory_space<vmem>>, %arg13: memref<16x128xf32, #tpu.memory_space<vmem>>) attributes {dimension_semantics = [#tpu.dimension_semantics<arbitrary>, #tpu.dimension_semantics<arbitrary>], iteration_bounds = array<i64: 2, 1>, scalar_prefetch = 0 : i64, scratch_operands = 1 : i64, tpu.core_type = #tpu.core_type<tc>, window_params = [{transform_indices = @transform_0, window_bounds = array<i64: 16, 128>}, {transform_indices = @transform_1, window_bounds = array<i64: 128, 1152>}, {pipeline_mode = #tpu.pipeline_mode<synchronous>, transform_indices = @transform_2, window_bounds = array<i64: 1, 128>}, {pipeline_mode = #tpu.pipeline_mode<synchronous>, transform_indices = @transform_3, window_bounds = array<i64: 1, 128>}, {pipeline_mode = #tpu.pipeline_mode<synchronous>, transform_indices = @transform_4, window_bounds = array<i64: 128, 1152>}, {pipeline_mode = #tpu.pipeline_mode<synchronous>, transform_indices = @transform_5, window_bounds = array<i64: 1, 128>}, {pipeline_mode = #tpu.pipeline_mode<synchronous>, transform_indices = @transform_6, window_bounds = array<i64: 1, 128>}, {pipeline_mode = #tpu.pipeline_mode<synchronous>, transform_indices = @transform_7, window_bounds = array<i64: 128, 256>}, {pipeline_mode = #tpu.pipeline_mode<synchronous>, transform_indices = @transform_8, window_bounds = array<i64: 1, 256>}, {pipeline_mode = #tpu.pipeline_mode<synchronous>, transform_indices = @transform_9, window_bounds = array<i64: 16, 256>}, {pipeline_mode = #tpu.pipeline_mode<synchronous>, transform_indices = @transform_10, window_bounds = array<i64: 16, 128>}]} {
    %c0_i32 = arith.constant 0 : i32
    %0 = arith.cmpi eq, %arg0, %c0_i32 : i32
    %c0_i32_0 = arith.constant 0 : i32
    %1 = arith.cmpi eq, %arg1, %c0_i32_0 : i32
    %2 = arith.andi %0, %1 : i1
    %3 = arith.extui %2 : i1 to i32
    %c0_i32_1 = arith.constant 0 : i32
    %4 = arith.cmpi ne, %3, %c0_i32_1 : i32
    scf.if %4 {
      %cst = arith.constant 0.000000e+00 : f32
      %16 = vector.broadcast %cst : f32 to vector<16x128xf32>
      %c0 = arith.constant 0 : index
      %c0_8 = arith.constant 0 : index
      %17 = vector.load %arg12[%c0, %c0_8] : memref<16x128xf32, #tpu.memory_space<vmem>>, vector<16x128xf32>
      tpu.vector_store %arg12[%c0, %c0_8], %16 {strides = array<i32>} : memref<16x128xf32, #tpu.memory_space<vmem>>, vector<16x128xf32>,
    } else {
    }
    %c0_i32_2 = arith.constant 0 : i32
    %5 = arith.cmpi eq, %arg0, %c0_i32_2 : i32
    %6 = arith.extui %5 : i1 to i32
    %c0_i32_3 = arith.constant 0 : i32
    %7 = arith.cmpi ne, %6, %c0_i32_3 : i32
    scf.if %7 {
      %c0 = arith.constant 0 : index
      %c0_8 = arith.constant 0 : index
      %16 = vector.load %arg2[%c0, %c0_8] : memref<16x128xf32, #tpu.memory_space<vmem>>, vector<16x128xf32>
      %cst = arith.constant dense<0.000000e+00> : vector<16xf32>
      %17 = vector.multi_reduction <add>, %16, %cst [1] : vector<16x128xf32> to vector<16xf32>
      %18 = vector.shape_cast %17 : vector<16xf32> to vector<16x1xf32>
      %c0_9 = arith.constant 0 : index
      %c0_10 = arith.constant 0 : index
      %19 = vector.load %arg12[%c0_9, %c0_10] : memref<16x128xf32, #tpu.memory_space<vmem>>, vector<16x128xf32>
      %20 = vector.shape_cast %18 : vector<16x1xf32> to vector<16x1xf32>
      %21 = vector.broadcast %20 : vector<16x1xf32> to vector<16x128xf32>
      %22 = arith.addf %19, %21 : vector<16x128xf32>
      %c0_11 = arith.constant 0 : index
      %c0_12 = arith.constant 0 : index
      %23 = vector.load %arg12[%c0_11, %c0_12] : memref<16x128xf32, #tpu.memory_space<vmem>>, vector<16x128xf32>
      tpu.vector_store %arg12[%c0_11, %c0_12], %22 {strides = array<i32>} : memref<16x128xf32, #tpu.memory_space<vmem>>, vector<16x128xf32>,
    } else {
    }
    %c1_i32 = arith.constant 1 : i32
    %8 = arith.cmpi eq, %arg0, %c1_i32 : i32
    %9 = arith.extui %8 : i1 to i32
    %c0_i32_4 = arith.constant 0 : i32
    %10 = arith.cmpi ne, %9, %c0_i32_4 : i32
    scf.if %10 {
      %c0_i32_8 = arith.constant 0 : i32
      %16 = arith.cmpi eq, %arg1, %c0_i32_8 : i32
      %17 = arith.extui %16 : i1 to i32
      %c0_i32_9 = arith.constant 0 : i32
      %18 = arith.cmpi ne, %17, %c0_i32_9 : i32
      scf.if %18 {
        %cst_64 = arith.constant 0.000000e+00 : f32
        %210 = vector.broadcast %cst_64 : f32 to vector<16x128xf32>
        %c0_65 = arith.constant 0 : index
        %c0_66 = arith.constant 0 : index
        %211 = vector.load %arg13[%c0_65, %c0_66] : memref<16x128xf32, #tpu.memory_space<vmem>>, vector<16x128xf32>
        tpu.vector_store %arg13[%c0_65, %c0_66], %210 {strides = array<i32>} : memref<16x128xf32, #tpu.memory_space<vmem>>, vector<16x128xf32>,
      } else {
      }
      %c0 = arith.constant 0 : index
      %c0_10 = arith.constant 0 : index
      %19 = vector.load %arg2[%c0, %c0_10] : memref<16x128xf32, #tpu.memory_space<vmem>>, vector<16x128xf32>
      %c0_11 = arith.constant 0 : index
      %c0_12 = arith.constant 0 : index
      %20 = vector.load %arg12[%c0_11, %c0_12] : memref<16x128xf32, #tpu.memory_space<vmem>>, vector<16x128xf32>
      %21 = vector.extract_strided_slice %20 {offsets = [0, 0], sizes = [16, 1], strides = [1, 1]} : vector<16x128xf32> to vector<16x1xf32>
      %cst = arith.constant 1.000000e+04 : f32
      %22 = vector.broadcast %cst : f32 to vector<16x1xf32>
      %23 = arith.divf %22, %21 : vector<16x1xf32>
      %24 = vector.broadcast %23 : vector<16x1xf32> to vector<16x128xf32>
      %25 = arith.mulf %19, %24 : vector<16x128xf32>
      %26 = math.log1p %25 : vector<16x128xf32>
      %c0_13 = arith.constant 0 : index
      %c0_14 = arith.constant 0 : index
      %27 = vector.load %arg13[%c0_13, %c0_14] : memref<16x128xf32, #tpu.memory_space<vmem>>, vector<16x128xf32>
      %cst_15 = arith.constant -2.200000e+00 : f32
      %28 = vector.broadcast %cst_15 : f32 to vector<16x128xf32>
      %29 = arith.subf %26, %28 : vector<16x128xf32>
      %cst_16 = arith.constant 2.500000e+00 : f32
      %30 = vector.broadcast %cst_16 : f32 to vector<16x128xf32>
      %31 = arith.mulf %29, %30 : vector<16x128xf32>
      %32 = math.floor %31 : vector<16x128xf32>
      %33 = arith.subf %31, %32 : vector<16x128xf32>
      %34 = arith.mulf %33, %33 : vector<16x128xf32>
      %35 = arith.mulf %34, %33 : vector<16x128xf32>
      %cst_17 = arith.constant 1.000000e+00 : f32
      %36 = vector.broadcast %cst_17 : f32 to vector<16x128xf32>
      %37 = arith.subf %36, %33 : vector<16x128xf32>
      %cst_18 = arith.constant 0.166666672 : f32
      %38 = vector.broadcast %cst_18 : f32 to vector<16x128xf32>
      %39 = arith.mulf %35, %38 : vector<16x128xf32>
      %cst_19 = arith.constant -3.000000e+00 : f32
      %40 = vector.broadcast %cst_19 : f32 to vector<16x128xf32>
      %41 = arith.mulf %40, %35 : vector<16x128xf32>
      %cst_20 = arith.constant 3.000000e+00 : f32
      %42 = vector.broadcast %cst_20 : f32 to vector<16x128xf32>
      %43 = arith.mulf %42, %34 : vector<16x128xf32>
      %44 = arith.addf %41, %43 : vector<16x128xf32>
      %cst_21 = arith.constant 3.000000e+00 : f32
      %45 = vector.broadcast %cst_21 : f32 to vector<16x128xf32>
      %46 = arith.mulf %45, %33 : vector<16x128xf32>
      %47 = arith.addf %44, %46 : vector<16x128xf32>
      %cst_22 = arith.constant 1.000000e+00 : f32
      %48 = vector.broadcast %cst_22 : f32 to vector<16x128xf32>
      %49 = arith.addf %47, %48 : vector<16x128xf32>
      %cst_23 = arith.constant 0.166666672 : f32
      %50 = vector.broadcast %cst_23 : f32 to vector<16x128xf32>
      %51 = arith.mulf %49, %50 : vector<16x128xf32>
      %cst_24 = arith.constant 3.000000e+00 : f32
      %52 = vector.broadcast %cst_24 : f32 to vector<16x128xf32>
      %53 = arith.mulf %52, %35 : vector<16x128xf32>
      %cst_25 = arith.constant 6.000000e+00 : f32
      %54 = vector.broadcast %cst_25 : f32 to vector<16x128xf32>
      %55 = arith.mulf %54, %34 : vector<16x128xf32>
      %56 = arith.subf %53, %55 : vector<16x128xf32>
      %cst_26 = arith.constant 4.000000e+00 : f32
      %57 = vector.broadcast %cst_26 : f32 to vector<16x128xf32>
      %58 = arith.addf %56, %57 : vector<16x128xf32>
      %cst_27 = arith.constant 0.166666672 : f32
      %59 = vector.broadcast %cst_27 : f32 to vector<16x128xf32>
      %60 = arith.mulf %58, %59 : vector<16x128xf32>
      %61 = arith.mulf %37, %37 : vector<16x128xf32>
      %62 = arith.mulf %61, %37 : vector<16x128xf32>
      %cst_28 = arith.constant 0.166666672 : f32
      %63 = vector.broadcast %cst_28 : f32 to vector<16x128xf32>
      %64 = arith.mulf %62, %63 : vector<16x128xf32>
      %cst_29 = arith.constant 0.000000e+00 : f32
      %65 = vector.broadcast %cst_29 : f32 to vector<16x128xf32>
      %66 = arith.cmpf oeq, %32, %65 : vector<16x128xf32>
      %67 = arith.extui %66 : vector<16x128xi1> to vector<16x128xi32>
      %68 = arith.sitofp %67 : vector<16x128xi32> to vector<16x128xf32>
      %cst_30 = arith.constant 1.000000e+00 : f32
      %69 = vector.broadcast %cst_30 : f32 to vector<16x128xf32>
      %70 = arith.cmpf oeq, %32, %69 : vector<16x128xf32>
      %71 = arith.extui %70 : vector<16x128xi1> to vector<16x128xi32>
      %72 = arith.sitofp %71 : vector<16x128xi32> to vector<16x128xf32>
      %cst_31 = arith.constant 2.000000e+00 : f32
      %73 = vector.broadcast %cst_31 : f32 to vector<16x128xf32>
      %74 = arith.cmpf oeq, %32, %73 : vector<16x128xf32>
      %75 = arith.extui %74 : vector<16x128xi1> to vector<16x128xi32>
      %76 = arith.sitofp %75 : vector<16x128xi32> to vector<16x128xf32>
      %cst_32 = arith.constant 3.000000e+00 : f32
      %77 = vector.broadcast %cst_32 : f32 to vector<16x128xf32>
      %78 = arith.cmpf oeq, %32, %77 : vector<16x128xf32>
      %79 = arith.extui %78 : vector<16x128xi1> to vector<16x128xi32>
      %80 = arith.sitofp %79 : vector<16x128xi32> to vector<16x128xf32>
      %cst_33 = arith.constant 4.000000e+00 : f32
      %81 = vector.broadcast %cst_33 : f32 to vector<16x128xf32>
      %82 = arith.cmpf oeq, %32, %81 : vector<16x128xf32>
      %83 = arith.extui %82 : vector<16x128xi1> to vector<16x128xi32>
      %84 = arith.sitofp %83 : vector<16x128xi32> to vector<16x128xf32>
      %cst_34 = arith.constant 5.000000e+00 : f32
      %85 = vector.broadcast %cst_34 : f32 to vector<16x128xf32>
      %86 = arith.cmpf oeq, %32, %85 : vector<16x128xf32>
      %87 = arith.extui %86 : vector<16x128xi1> to vector<16x128xi32>
      %88 = arith.sitofp %87 : vector<16x128xi32> to vector<16x128xf32>
      %cst_35 = arith.constant 6.000000e+00 : f32
      %89 = vector.broadcast %cst_35 : f32 to vector<16x128xf32>
      %90 = arith.cmpf oeq, %32, %89 : vector<16x128xf32>
      %91 = arith.extui %90 : vector<16x128xi1> to vector<16x128xi32>
      %92 = arith.sitofp %91 : vector<16x128xi32> to vector<16x128xf32>
      %cst_36 = arith.constant 7.000000e+00 : f32
      %93 = vector.broadcast %cst_36 : f32 to vector<16x128xf32>
      %94 = arith.cmpf oeq, %32, %93 : vector<16x128xf32>
      %95 = arith.extui %94 : vector<16x128xi1> to vector<16x128xi32>
      %96 = arith.sitofp %95 : vector<16x128xi32> to vector<16x128xf32>
      %cst_37 = arith.constant 8.000000e+00 : f32
      %97 = vector.broadcast %cst_37 : f32 to vector<16x128xf32>
      %98 = arith.cmpf oeq, %32, %97 : vector<16x128xf32>
      %99 = arith.extui %98 : vector<16x128xi1> to vector<16x128xi32>
      %100 = arith.sitofp %99 : vector<16x128xi32> to vector<16x128xf32>
      %cst_38 = arith.constant 9.000000e+00 : f32
      %101 = vector.broadcast %cst_38 : f32 to vector<16x128xf32>
      %102 = arith.cmpf oeq, %32, %101 : vector<16x128xf32>
      %103 = arith.extui %102 : vector<16x128xi1> to vector<16x128xi32>
      %104 = arith.sitofp %103 : vector<16x128xi32> to vector<16x128xf32>
      %cst_39 = arith.constant 1.000000e+01 : f32
      %105 = vector.broadcast %cst_39 : f32 to vector<16x128xf32>
      %106 = arith.cmpf oeq, %32, %105 : vector<16x128xf32>
      %107 = arith.extui %106 : vector<16x128xi1> to vector<16x128xi32>
      %108 = arith.sitofp %107 : vector<16x128xi32> to vector<16x128xf32>
      %109 = arith.mulf %39, %68 : vector<16x128xf32>
      %110 = arith.mulf %51, %72 : vector<16x128xf32>
      %111 = arith.addf %109, %110 : vector<16x128xf32>
      %112 = arith.mulf %60, %76 : vector<16x128xf32>
      %113 = arith.addf %111, %112 : vector<16x128xf32>
      %114 = arith.mulf %64, %80 : vector<16x128xf32>
      %115 = arith.addf %113, %114 : vector<16x128xf32>
      %116 = arith.mulf %39, %72 : vector<16x128xf32>
      %117 = arith.mulf %51, %76 : vector<16x128xf32>
      %118 = arith.addf %116, %117 : vector<16x128xf32>
      %119 = arith.mulf %60, %80 : vector<16x128xf32>
      %120 = arith.addf %118, %119 : vector<16x128xf32>
      %121 = arith.mulf %64, %84 : vector<16x128xf32>
      %122 = arith.addf %120, %121 : vector<16x128xf32>
      %123 = arith.mulf %39, %76 : vector<16x128xf32>
      %124 = arith.mulf %51, %80 : vector<16x128xf32>
      %125 = arith.addf %123, %124 : vector<16x128xf32>
      %126 = arith.mulf %60, %84 : vector<16x128xf32>
      %127 = arith.addf %125, %126 : vector<16x128xf32>
      %128 = arith.mulf %64, %88 : vector<16x128xf32>
      %129 = arith.addf %127, %128 : vector<16x128xf32>
      %130 = arith.mulf %39, %80 : vector<16x128xf32>
      %131 = arith.mulf %51, %84 : vector<16x128xf32>
      %132 = arith.addf %130, %131 : vector<16x128xf32>
      %133 = arith.mulf %60, %88 : vector<16x128xf32>
      %134 = arith.addf %132, %133 : vector<16x128xf32>
      %135 = arith.mulf %64, %92 : vector<16x128xf32>
      %136 = arith.addf %134, %135 : vector<16x128xf32>
      %137 = arith.mulf %39, %84 : vector<16x128xf32>
      %138 = arith.mulf %51, %88 : vector<16x128xf32>
      %139 = arith.addf %137, %138 : vector<16x128xf32>
      %140 = arith.mulf %60, %92 : vector<16x128xf32>
      %141 = arith.addf %139, %140 : vector<16x128xf32>
      %142 = arith.mulf %64, %96 : vector<16x128xf32>
      %143 = arith.addf %141, %142 : vector<16x128xf32>
      %144 = arith.mulf %39, %88 : vector<16x128xf32>
      %145 = arith.mulf %51, %92 : vector<16x128xf32>
      %146 = arith.addf %144, %145 : vector<16x128xf32>
      %147 = arith.mulf %60, %96 : vector<16x128xf32>
      %148 = arith.addf %146, %147 : vector<16x128xf32>
      %149 = arith.mulf %64, %100 : vector<16x128xf32>
      %150 = arith.addf %148, %149 : vector<16x128xf32>
      %151 = arith.mulf %39, %92 : vector<16x128xf32>
      %152 = arith.mulf %51, %96 : vector<16x128xf32>
      %153 = arith.addf %151, %152 : vector<16x128xf32>
      %154 = arith.mulf %60, %100 : vector<16x128xf32>
      %155 = arith.addf %153, %154 : vector<16x128xf32>
      %156 = arith.mulf %64, %104 : vector<16x128xf32>
      %157 = arith.addf %155, %156 : vector<16x128xf32>
      %158 = arith.mulf %39, %96 : vector<16x128xf32>
      %159 = arith.mulf %51, %100 : vector<16x128xf32>
      %160 = arith.addf %158, %159 : vector<16x128xf32>
      %161 = arith.mulf %60, %104 : vector<16x128xf32>
      %162 = arith.addf %160, %161 : vector<16x128xf32>
      %163 = arith.mulf %64, %108 : vector<16x128xf32>
      %164 = arith.addf %162, %163 : vector<16x128xf32>
      %cst_40 = arith.constant 0.000000e+00 : f32
      %165 = vector.broadcast %cst_40 : f32 to vector<16x128xf32>
      %166 = arith.subf %165, %26 : vector<16x128xf32>
      %167 = math.exp %166 : vector<16x128xf32>
      %cst_41 = arith.constant 1.000000e+00 : f32
      %168 = vector.broadcast %cst_41 : f32 to vector<16x128xf32>
      %169 = arith.addf %168, %167 : vector<16x128xf32>
      %cst_42 = arith.constant 1.000000e+00 : f32
      %170 = vector.broadcast %cst_42 : f32 to vector<16x128xf32>
      %171 = arith.divf %170, %169 : vector<16x128xf32>
      %172 = arith.mulf %26, %171 : vector<16x128xf32>
      %173 = arith.truncf %172 : vector<16x128xf32> to vector<16x128xbf16>
      %c0_43 = arith.constant 0 : index
      %c0_44 = arith.constant 0 : index
      %174 = vector.load %arg3[%c0_43, %c0_44] : memref<128x1152xbf16, #tpu.memory_space<vmem>>, vector<128x128xbf16>
      %cst_45 = arith.constant dense<0.000000e+00> : vector<16x128xf32>
      %175 = tpu.matmul %173, %174, %cst_45 {dimension_numbers = #tpu.dot_dimension_numbers<[1], [0], [0], [1], [0, 0, 1, 1], [], []>} : vector<16x128xbf16>, vector<128x128xbf16>, vector<16x128xf32> -> vector<16x128xf32>
      %176 = arith.truncf %115 : vector<16x128xf32> to vector<16x128xbf16>
      %c0_46 = arith.constant 0 : index
      %c128 = arith.constant 128 : index
      %177 = vector.load %arg3[%c0_46, %c128] : memref<128x1152xbf16, #tpu.memory_space<vmem>>, vector<128x128xbf16>
      %cst_47 = arith.constant dense<0.000000e+00> : vector<16x128xf32>
      %178 = tpu.matmul %176, %177, %cst_47 {dimension_numbers = #tpu.dot_dimension_numbers<[1], [0], [0], [1], [0, 0, 1, 1], [], []>} : vector<16x128xbf16>, vector<128x128xbf16>, vector<16x128xf32> -> vector<16x128xf32>
      %179 = arith.addf %175, %178 : vector<16x128xf32>
      %180 = arith.truncf %122 : vector<16x128xf32> to vector<16x128xbf16>
      %c0_48 = arith.constant 0 : index
      %c256 = arith.constant 256 : index
      %181 = vector.load %arg3[%c0_48, %c256] : memref<128x1152xbf16, #tpu.memory_space<vmem>>, vector<128x128xbf16>
      %cst_49 = arith.constant dense<0.000000e+00> : vector<16x128xf32>
      %182 = tpu.matmul %180, %181, %cst_49 {dimension_numbers = #tpu.dot_dimension_numbers<[1], [0], [0], [1], [0, 0, 1, 1], [], []>} : vector<16x128xbf16>, vector<128x128xbf16>, vector<16x128xf32> -> vector<16x128xf32>
      %183 = arith.addf %179, %182 : vector<16x128xf32>
      %184 = arith.truncf %129 : vector<16x128xf32> to vector<16x128xbf16>
      %c0_50 = arith.constant 0 : index
      %c384 = arith.constant 384 : index
      %185 = vector.load %arg3[%c0_50, %c384] : memref<128x1152xbf16, #tpu.memory_space<vmem>>, vector<128x128xbf16>
      %cst_51 = arith.constant dense<0.000000e+00> : vector<16x128xf32>
      %186 = tpu.matmul %184, %185, %cst_51 {dimension_numbers = #tpu.dot_dimension_numbers<[1], [0], [0], [1], [0, 0, 1, 1], [], []>} : vector<16x128xbf16>, vector<128x128xbf16>, vector<16x128xf32> -> vector<16x128xf32>
      %187 = arith.addf %183, %186 : vector<16x128xf32>
      %188 = arith.truncf %136 : vector<16x128xf32> to vector<16x128xbf16>
      %c0_52 = arith.constant 0 : index
      %c512 = arith.constant 512 : index
      %189 = vector.load %arg3[%c0_52, %c512] : memref<128x1152xbf16, #tpu.memory_space<vmem>>, vector<128x128xbf16>
      %cst_53 = arith.constant dense<0.000000e+00> : vector<16x128xf32>
      %190 = tpu.matmul %188, %189, %cst_53 {dimension_numbers = #tpu.dot_dimension_numbers<[1], [0], [0], [1], [0, 0, 1, 1], [], []>} : vector<16x128xbf16>, vector<128x128xbf16>, vector<16x128xf32> -> vector<16x128xf32>
      %191 = arith.addf %187, %190 : vector<16x128xf32>
      %192 = arith.truncf %143 : vector<16x128xf32> to vector<16x128xbf16>
      %c0_54 = arith.constant 0 : index
      %c640 = arith.constant 640 : index
      %193 = vector.load %arg3[%c0_54, %c640] : memref<128x1152xbf16, #tpu.memory_space<vmem>>, vector<128x128xbf16>
      %cst_55 = arith.constant dense<0.000000e+00> : vector<16x128xf32>
      %194 = tpu.matmul %192, %193, %cst_55 {dimension_numbers = #tpu.dot_dimension_numbers<[1], [0], [0], [1], [0, 0, 1, 1], [], []>} : vector<16x128xbf16>, vector<128x128xbf16>, vector<16x128xf32> -> vector<16x128xf32>
      %195 = arith.addf %191, %194 : vector<16x128xf32>
      %196 = arith.truncf %150 : vector<16x128xf32> to vector<16x128xbf16>
      %c0_56 = arith.constant 0 : index
      %c768 = arith.constant 768 : index
      %197 = vector.load %arg3[%c0_56, %c768] : memref<128x1152xbf16, #tpu.memory_space<vmem>>, vector<128x128xbf16>
      %cst_57 = arith.constant dense<0.000000e+00> : vector<16x128xf32>
      %198 = tpu.matmul %196, %197, %cst_57 {dimension_numbers = #tpu.dot_dimension_numbers<[1], [0], [0], [1], [0, 0, 1, 1], [], []>} : vector<16x128xbf16>, vector<128x128xbf16>, vector<16x128xf32> -> vector<16x128xf32>
      %199 = arith.addf %195, %198 : vector<16x128xf32>
      %200 = arith.truncf %157 : vector<16x128xf32> to vector<16x128xbf16>
      %c0_58 = arith.constant 0 : index
      %c896 = arith.constant 896 : index
      %201 = vector.load %arg3[%c0_58, %c896] : memref<128x1152xbf16, #tpu.memory_space<vmem>>, vector<128x128xbf16>
      %cst_59 = arith.constant dense<0.000000e+00> : vector<16x128xf32>
      %202 = tpu.matmul %200, %201, %cst_59 {dimension_numbers = #tpu.dot_dimension_numbers<[1], [0], [0], [1], [0, 0, 1, 1], [], []>} : vector<16x128xbf16>, vector<128x128xbf16>, vector<16x128xf32> -> vector<16x128xf32>
      %203 = arith.addf %199, %202 : vector<16x128xf32>
      %204 = arith.truncf %164 : vector<16x128xf32> to vector<16x128xbf16>
      %c0_60 = arith.constant 0 : index
      %c1024 = arith.constant 1024 : index
      %205 = vector.load %arg3[%c0_60, %c1024] : memref<128x1152xbf16, #tpu.memory_space<vmem>>, vector<128x128xbf16>
      %cst_61 = arith.constant dense<0.000000e+00> : vector<16x128xf32>
      %206 = tpu.matmul %204, %205, %cst_61 {dimension_numbers = #tpu.dot_dimension_numbers<[1], [0], [0], [1], [0, 0, 1, 1], [], []>} : vector<16x128xbf16>, vector<128x128xbf16>, vector<16x128xf32> -> vector<16x128xf32>
      %207 = arith.addf %203, %206 : vector<16x128xf32>
      %208 = arith.addf %27, %207 : vector<16x128xf32>
      %c0_62 = arith.constant 0 : index
      %c0_63 = arith.constant 0 : index
      %209 = vector.load %arg13[%c0_62, %c0_63] : memref<16x128xf32, #tpu.memory_space<vmem>>, vector<16x128xf32>
      tpu.vector_store %arg13[%c0_62, %c0_63], %208 {strides = array<i32>} : memref<16x128xf32, #tpu.memory_space<vmem>>, vector<16x128xf32>,
    } else {
    }
    %c1_i32_5 = arith.constant 1 : i32
    %11 = arith.cmpi eq, %arg0, %c1_i32_5 : i32
    %c0_i32_6 = arith.constant 0 : i32
    %12 = arith.cmpi eq, %arg1, %c0_i32_6 : i32
    %13 = arith.andi %11, %12 : i1
    %14 = arith.extui %13 : i1 to i32
    %c0_i32_7 = arith.constant 0 : i32
    %15 = arith.cmpi ne, %14, %c0_i32_7 : i32
    scf.if %15 {
      %c0 = arith.constant 0 : index
      %c0_8 = arith.constant 0 : index
      %16 = vector.load %arg13[%c0, %c0_8] : memref<16x128xf32, #tpu.memory_space<vmem>>, vector<16x128xf32>
      %c0_9 = arith.constant 0 : index
      %c0_10 = arith.constant 0 : index
      %17 = vector.load %arg4[%c0_9, %c0_10] : memref<1x128xf32, #tpu.memory_space<vmem>>, vector<1x128xf32>
      %c0_11 = arith.constant 0 : index
      %c0_12 = arith.constant 0 : index
      %18 = vector.load %arg5[%c0_11, %c0_12] : memref<1x128xf32, #tpu.memory_space<vmem>>, vector<1x128xf32>
      %cst = arith.constant dense<0.000000e+00> : vector<128xf32>
      %19 = vector.multi_reduction <add>, %16, %cst [0] : vector<16x128xf32> to vector<128xf32>
      %20 = vector.shape_cast %19 : vector<128xf32> to vector<1x128xf32>
      %cst_13 = arith.constant 1.600000e+01 : f32
      %21 = vector.broadcast %cst_13 : f32 to vector<1x128xf32>
      %22 = arith.divf %20, %21 : vector<1x128xf32>
      %23 = vector.broadcast %22 : vector<1x128xf32> to vector<16x128xf32>
      %24 = arith.subf %16, %23 : vector<16x128xf32>
      %25 = arith.mulf %24, %24 : vector<16x128xf32>
      %cst_14 = arith.constant dense<0.000000e+00> : vector<128xf32>
      %26 = vector.multi_reduction <add>, %25, %cst_14 [0] : vector<16x128xf32> to vector<128xf32>
      %27 = vector.shape_cast %26 : vector<128xf32> to vector<1x128xf32>
      %cst_15 = arith.constant 1.600000e+01 : f32
      %28 = vector.broadcast %cst_15 : f32 to vector<1x128xf32>
      %29 = arith.divf %27, %28 : vector<1x128xf32>
      %30 = vector.broadcast %22 : vector<1x128xf32> to vector<16x128xf32>
      %31 = arith.subf %16, %30 : vector<16x128xf32>
      %cst_16 = arith.constant 9.99999974E-6 : f32
      %32 = vector.broadcast %cst_16 : f32 to vector<1x128xf32>
      %33 = arith.addf %29, %32 : vector<1x128xf32>
      %34 = math.rsqrt %33 : vector<1x128xf32>
      %35 = vector.broadcast %34 : vector<1x128xf32> to vector<16x128xf32>
      %36 = arith.mulf %31, %35 : vector<16x128xf32>
      %37 = vector.broadcast %17 : vector<1x128xf32> to vector<16x128xf32>
      %38 = arith.mulf %36, %37 : vector<16x128xf32>
      %39 = vector.broadcast %18 : vector<1x128xf32> to vector<16x128xf32>
      %40 = arith.addf %38, %39 : vector<16x128xf32>
      %cst_17 = arith.constant -2.200000e+00 : f32
      %41 = vector.broadcast %cst_17 : f32 to vector<16x128xf32>
      %42 = arith.subf %40, %41 : vector<16x128xf32>
      %cst_18 = arith.constant 2.500000e+00 : f32
      %43 = vector.broadcast %cst_18 : f32 to vector<16x128xf32>
      %44 = arith.mulf %42, %43 : vector<16x128xf32>
      %45 = math.floor %44 : vector<16x128xf32>
      %46 = arith.subf %44, %45 : vector<16x128xf32>
      %47 = arith.mulf %46, %46 : vector<16x128xf32>
      %48 = arith.mulf %47, %46 : vector<16x128xf32>
      %cst_19 = arith.constant 1.000000e+00 : f32
      %49 = vector.broadcast %cst_19 : f32 to vector<16x128xf32>
      %50 = arith.subf %49, %46 : vector<16x128xf32>
      %cst_20 = arith.constant 0.166666672 : f32
      %51 = vector.broadcast %cst_20 : f32 to vector<16x128xf32>
      %52 = arith.mulf %48, %51 : vector<16x128xf32>
      %cst_21 = arith.constant -3.000000e+00 : f32
      %53 = vector.broadcast %cst_21 : f32 to vector<16x128xf32>
      %54 = arith.mulf %53, %48 : vector<16x128xf32>
      %cst_22 = arith.constant 3.000000e+00 : f32
      %55 = vector.broadcast %cst_22 : f32 to vector<16x128xf32>
      %56 = arith.mulf %55, %47 : vector<16x128xf32>
      %57 = arith.addf %54, %56 : vector<16x128xf32>
      %cst_23 = arith.constant 3.000000e+00 : f32
      %58 = vector.broadcast %cst_23 : f32 to vector<16x128xf32>
      %59 = arith.mulf %58, %46 : vector<16x128xf32>
      %60 = arith.addf %57, %59 : vector<16x128xf32>
      %cst_24 = arith.constant 1.000000e+00 : f32
      %61 = vector.broadcast %cst_24 : f32 to vector<16x128xf32>
      %62 = arith.addf %60, %61 : vector<16x128xf32>
      %cst_25 = arith.constant 0.166666672 : f32
      %63 = vector.broadcast %cst_25 : f32 to vector<16x128xf32>
      %64 = arith.mulf %62, %63 : vector<16x128xf32>
      %cst_26 = arith.constant 3.000000e+00 : f32
      %65 = vector.broadcast %cst_26 : f32 to vector<16x128xf32>
      %66 = arith.mulf %65, %48 : vector<16x128xf32>
      %cst_27 = arith.constant 6.000000e+00 : f32
      %67 = vector.broadcast %cst_27 : f32 to vector<16x128xf32>
      %68 = arith.mulf %67, %47 : vector<16x128xf32>
      %69 = arith.subf %66, %68 : vector<16x128xf32>
      %cst_28 = arith.constant 4.000000e+00 : f32
      %70 = vector.broadcast %cst_28 : f32 to vector<16x128xf32>
      %71 = arith.addf %69, %70 : vector<16x128xf32>
      %cst_29 = arith.constant 0.166666672 : f32
      %72 = vector.broadcast %cst_29 : f32 to vector<16x128xf32>
      %73 = arith.mulf %71, %72 : vector<16x128xf32>
      %74 = arith.mulf %50, %50 : vector<16x128xf32>
      %75 = arith.mulf %74, %50 : vector<16x128xf32>
      %cst_30 = arith.constant 0.166666672 : f32
      %76 = vector.broadcast %cst_30 : f32 to vector<16x128xf32>
      %77 = arith.mulf %75, %76 : vector<16x128xf32>
      %cst_31 = arith.constant 0.000000e+00 : f32
      %78 = vector.broadcast %cst_31 : f32 to vector<16x128xf32>
      %79 = arith.cmpf oeq, %45, %78 : vector<16x128xf32>
      %80 = arith.extui %79 : vector<16x128xi1> to vector<16x128xi32>
      %81 = arith.sitofp %80 : vector<16x128xi32> to vector<16x128xf32>
      %cst_32 = arith.constant 1.000000e+00 : f32
      %82 = vector.broadcast %cst_32 : f32 to vector<16x128xf32>
      %83 = arith.cmpf oeq, %45, %82 : vector<16x128xf32>
      %84 = arith.extui %83 : vector<16x128xi1> to vector<16x128xi32>
      %85 = arith.sitofp %84 : vector<16x128xi32> to vector<16x128xf32>
      %cst_33 = arith.constant 2.000000e+00 : f32
      %86 = vector.broadcast %cst_33 : f32 to vector<16x128xf32>
      %87 = arith.cmpf oeq, %45, %86 : vector<16x128xf32>
      %88 = arith.extui %87 : vector<16x128xi1> to vector<16x128xi32>
      %89 = arith.sitofp %88 : vector<16x128xi32> to vector<16x128xf32>
      %cst_34 = arith.constant 3.000000e+00 : f32
      %90 = vector.broadcast %cst_34 : f32 to vector<16x128xf32>
      %91 = arith.cmpf oeq, %45, %90 : vector<16x128xf32>
      %92 = arith.extui %91 : vector<16x128xi1> to vector<16x128xi32>
      %93 = arith.sitofp %92 : vector<16x128xi32> to vector<16x128xf32>
      %cst_35 = arith.constant 4.000000e+00 : f32
      %94 = vector.broadcast %cst_35 : f32 to vector<16x128xf32>
      %95 = arith.cmpf oeq, %45, %94 : vector<16x128xf32>
      %96 = arith.extui %95 : vector<16x128xi1> to vector<16x128xi32>
      %97 = arith.sitofp %96 : vector<16x128xi32> to vector<16x128xf32>
      %cst_36 = arith.constant 5.000000e+00 : f32
      %98 = vector.broadcast %cst_36 : f32 to vector<16x128xf32>
      %99 = arith.cmpf oeq, %45, %98 : vector<16x128xf32>
      %100 = arith.extui %99 : vector<16x128xi1> to vector<16x128xi32>
      %101 = arith.sitofp %100 : vector<16x128xi32> to vector<16x128xf32>
      %cst_37 = arith.constant 6.000000e+00 : f32
      %102 = vector.broadcast %cst_37 : f32 to vector<16x128xf32>
      %103 = arith.cmpf oeq, %45, %102 : vector<16x128xf32>
      %104 = arith.extui %103 : vector<16x128xi1> to vector<16x128xi32>
      %105 = arith.sitofp %104 : vector<16x128xi32> to vector<16x128xf32>
      %cst_38 = arith.constant 7.000000e+00 : f32
      %106 = vector.broadcast %cst_38 : f32 to vector<16x128xf32>
      %107 = arith.cmpf oeq, %45, %106 : vector<16x128xf32>
      %108 = arith.extui %107 : vector<16x128xi1> to vector<16x128xi32>
      %109 = arith.sitofp %108 : vector<16x128xi32> to vector<16x128xf32>
      %cst_39 = arith.constant 8.000000e+00 : f32
      %110 = vector.broadcast %cst_39 : f32 to vector<16x128xf32>
      %111 = arith.cmpf oeq, %45, %110 : vector<16x128xf32>
      %112 = arith.extui %111 : vector<16x128xi1> to vector<16x128xi32>
      %113 = arith.sitofp %112 : vector<16x128xi32> to vector<16x128xf32>
      %cst_40 = arith.constant 9.000000e+00 : f32
      %114 = vector.broadcast %cst_40 : f32 to vector<16x128xf32>
      %115 = arith.cmpf oeq, %45, %114 : vector<16x128xf32>
      %116 = arith.extui %115 : vector<16x128xi1> to vector<16x128xi32>
      %117 = arith.sitofp %116 : vector<16x128xi32> to vector<16x128xf32>
      %cst_41 = arith.constant 1.000000e+01 : f32
      %118 = vector.broadcast %cst_41 : f32 to vector<16x128xf32>
      %119 = arith.cmpf oeq, %45, %118 : vector<16x128xf32>
      %120 = arith.extui %119 : vector<16x128xi1> to vector<16x128xi32>
      %121 = arith.sitofp %120 : vector<16x128xi32> to vector<16x128xf32>
      %122 = arith.mulf %52, %81 : vector<16x128xf32>
      %123 = arith.mulf %64, %85 : vector<16x128xf32>
      %124 = arith.addf %122, %123 : vector<16x128xf32>
      %125 = arith.mulf %73, %89 : vector<16x128xf32>
      %126 = arith.addf %124, %125 : vector<16x128xf32>
      %127 = arith.mulf %77, %93 : vector<16x128xf32>
      %128 = arith.addf %126, %127 : vector<16x128xf32>
      %129 = arith.mulf %52, %85 : vector<16x128xf32>
      %130 = arith.mulf %64, %89 : vector<16x128xf32>
      %131 = arith.addf %129, %130 : vector<16x128xf32>
      %132 = arith.mulf %73, %93 : vector<16x128xf32>
      %133 = arith.addf %131, %132 : vector<16x128xf32>
      %134 = arith.mulf %77, %97 : vector<16x128xf32>
      %135 = arith.addf %133, %134 : vector<16x128xf32>
      %136 = arith.mulf %52, %89 : vector<16x128xf32>
      %137 = arith.mulf %64, %93 : vector<16x128xf32>
      %138 = arith.addf %136, %137 : vector<16x128xf32>
      %139 = arith.mulf %73, %97 : vector<16x128xf32>
      %140 = arith.addf %138, %139 : vector<16x128xf32>
      %141 = arith.mulf %77, %101 : vector<16x128xf32>
      %142 = arith.addf %140, %141 : vector<16x128xf32>
      %143 = arith.mulf %52, %93 : vector<16x128xf32>
      %144 = arith.mulf %64, %97 : vector<16x128xf32>
      %145 = arith.addf %143, %144 : vector<16x128xf32>
      %146 = arith.mulf %73, %101 : vector<16x128xf32>
      %147 = arith.addf %145, %146 : vector<16x128xf32>
      %148 = arith.mulf %77, %105 : vector<16x128xf32>
      %149 = arith.addf %147, %148 : vector<16x128xf32>
      %150 = arith.mulf %52, %97 : vector<16x128xf32>
      %151 = arith.mulf %64, %101 : vector<16x128xf32>
      %152 = arith.addf %150, %151 : vector<16x128xf32>
      %153 = arith.mulf %73, %105 : vector<16x128xf32>
      %154 = arith.addf %152, %153 : vector<16x128xf32>
      %155 = arith.mulf %77, %109 : vector<16x128xf32>
      %156 = arith.addf %154, %155 : vector<16x128xf32>
      %157 = arith.mulf %52, %101 : vector<16x128xf32>
      %158 = arith.mulf %64, %105 : vector<16x128xf32>
      %159 = arith.addf %157, %158 : vector<16x128xf32>
      %160 = arith.mulf %73, %109 : vector<16x128xf32>
      %161 = arith.addf %159, %160 : vector<16x128xf32>
      %162 = arith.mulf %77, %113 : vector<16x128xf32>
      %163 = arith.addf %161, %162 : vector<16x128xf32>
      %164 = arith.mulf %52, %105 : vector<16x128xf32>
      %165 = arith.mulf %64, %109 : vector<16x128xf32>
      %166 = arith.addf %164, %165 : vector<16x128xf32>
      %167 = arith.mulf %73, %113 : vector<16x128xf32>
      %168 = arith.addf %166, %167 : vector<16x128xf32>
      %169 = arith.mulf %77, %117 : vector<16x128xf32>
      %170 = arith.addf %168, %169 : vector<16x128xf32>
      %171 = arith.mulf %52, %109 : vector<16x128xf32>
      %172 = arith.mulf %64, %113 : vector<16x128xf32>
      %173 = arith.addf %171, %172 : vector<16x128xf32>
      %174 = arith.mulf %73, %117 : vector<16x128xf32>
      %175 = arith.addf %173, %174 : vector<16x128xf32>
      %176 = arith.mulf %77, %121 : vector<16x128xf32>
      %177 = arith.addf %175, %176 : vector<16x128xf32>
      %cst_42 = arith.constant 0.000000e+00 : f32
      %178 = vector.broadcast %cst_42 : f32 to vector<16x128xf32>
      %179 = arith.subf %178, %40 : vector<16x128xf32>
      %180 = math.exp %179 : vector<16x128xf32>
      %cst_43 = arith.constant 1.000000e+00 : f32
      %181 = vector.broadcast %cst_43 : f32 to vector<16x128xf32>
      %182 = arith.addf %181, %180 : vector<16x128xf32>
      %cst_44 = arith.constant 1.000000e+00 : f32
      %183 = vector.broadcast %cst_44 : f32 to vector<16x128xf32>
      %184 = arith.divf %183, %182 : vector<16x128xf32>
      %185 = arith.mulf %40, %184 : vector<16x128xf32>
      %186 = arith.truncf %185 : vector<16x128xf32> to vector<16x128xbf16>
      %c0_45 = arith.constant 0 : index
      %c0_46 = arith.constant 0 : index
      %187 = vector.load %arg6[%c0_45, %c0_46] : memref<128x1152xbf16, #tpu.memory_space<vmem>>, vector<128x128xbf16>
      %cst_47 = arith.constant dense<0.000000e+00> : vector<16x128xf32>
      %188 = tpu.matmul %186, %187, %cst_47 {dimension_numbers = #tpu.dot_dimension_numbers<[1], [0], [0], [1], [0, 0, 1, 1], [], []>} : vector<16x128xbf16>, vector<128x128xbf16>, vector<16x128xf32> -> vector<16x128xf32>
      %189 = arith.truncf %128 : vector<16x128xf32> to vector<16x128xbf16>
      %c0_48 = arith.constant 0 : index
      %c128 = arith.constant 128 : index
      %190 = vector.load %arg6[%c0_48, %c128] : memref<128x1152xbf16, #tpu.memory_space<vmem>>, vector<128x128xbf16>
      %cst_49 = arith.constant dense<0.000000e+00> : vector<16x128xf32>
      %191 = tpu.matmul %189, %190, %cst_49 {dimension_numbers = #tpu.dot_dimension_numbers<[1], [0], [0], [1], [0, 0, 1, 1], [], []>} : vector<16x128xbf16>, vector<128x128xbf16>, vector<16x128xf32> -> vector<16x128xf32>
      %192 = arith.addf %188, %191 : vector<16x128xf32>
      %193 = arith.truncf %135 : vector<16x128xf32> to vector<16x128xbf16>
      %c0_50 = arith.constant 0 : index
      %c256 = arith.constant 256 : index
      %194 = vector.load %arg6[%c0_50, %c256] : memref<128x1152xbf16, #tpu.memory_space<vmem>>, vector<128x128xbf16>
      %cst_51 = arith.constant dense<0.000000e+00> : vector<16x128xf32>
      %195 = tpu.matmul %193, %194, %cst_51 {dimension_numbers = #tpu.dot_dimension_numbers<[1], [0], [0], [1], [0, 0, 1, 1], [], []>} : vector<16x128xbf16>, vector<128x128xbf16>, vector<16x128xf32> -> vector<16x128xf32>
      %196 = arith.addf %192, %195 : vector<16x128xf32>
      %197 = arith.truncf %142 : vector<16x128xf32> to vector<16x128xbf16>
      %c0_52 = arith.constant 0 : index
      %c384 = arith.constant 384 : index
      %198 = vector.load %arg6[%c0_52, %c384] : memref<128x1152xbf16, #tpu.memory_space<vmem>>, vector<128x128xbf16>
      %cst_53 = arith.constant dense<0.000000e+00> : vector<16x128xf32>
      %199 = tpu.matmul %197, %198, %cst_53 {dimension_numbers = #tpu.dot_dimension_numbers<[1], [0], [0], [1], [0, 0, 1, 1], [], []>} : vector<16x128xbf16>, vector<128x128xbf16>, vector<16x128xf32> -> vector<16x128xf32>
      %200 = arith.addf %196, %199 : vector<16x128xf32>
      %201 = arith.truncf %149 : vector<16x128xf32> to vector<16x128xbf16>
      %c0_54 = arith.constant 0 : index
      %c512 = arith.constant 512 : index
      %202 = vector.load %arg6[%c0_54, %c512] : memref<128x1152xbf16, #tpu.memory_space<vmem>>, vector<128x128xbf16>
      %cst_55 = arith.constant dense<0.000000e+00> : vector<16x128xf32>
      %203 = tpu.matmul %201, %202, %cst_55 {dimension_numbers = #tpu.dot_dimension_numbers<[1], [0], [0], [1], [0, 0, 1, 1], [], []>} : vector<16x128xbf16>, vector<128x128xbf16>, vector<16x128xf32> -> vector<16x128xf32>
      %204 = arith.addf %200, %203 : vector<16x128xf32>
      %205 = arith.truncf %156 : vector<16x128xf32> to vector<16x128xbf16>
      %c0_56 = arith.constant 0 : index
      %c640 = arith.constant 640 : index
      %206 = vector.load %arg6[%c0_56, %c640] : memref<128x1152xbf16, #tpu.memory_space<vmem>>, vector<128x128xbf16>
      %cst_57 = arith.constant dense<0.000000e+00> : vector<16x128xf32>
      %207 = tpu.matmul %205, %206, %cst_57 {dimension_numbers = #tpu.dot_dimension_numbers<[1], [0], [0], [1], [0, 0, 1, 1], [], []>} : vector<16x128xbf16>, vector<128x128xbf16>, vector<16x128xf32> -> vector<16x128xf32>
      %208 = arith.addf %204, %207 : vector<16x128xf32>
      %209 = arith.truncf %163 : vector<16x128xf32> to vector<16x128xbf16>
      %c0_58 = arith.constant 0 : index
      %c768 = arith.constant 768 : index
      %210 = vector.load %arg6[%c0_58, %c768] : memref<128x1152xbf16, #tpu.memory_space<vmem>>, vector<128x128xbf16>
      %cst_59 = arith.constant dense<0.000000e+00> : vector<16x128xf32>
      %211 = tpu.matmul %209, %210, %cst_59 {dimension_numbers = #tpu.dot_dimension_numbers<[1], [0], [0], [1], [0, 0, 1, 1], [], []>} : vector<16x128xbf16>, vector<128x128xbf16>, vector<16x128xf32> -> vector<16x128xf32>
      %212 = arith.addf %208, %211 : vector<16x128xf32>
      %213 = arith.truncf %170 : vector<16x128xf32> to vector<16x128xbf16>
      %c0_60 = arith.constant 0 : index
      %c896 = arith.constant 896 : index
      %214 = vector.load %arg6[%c0_60, %c896] : memref<128x1152xbf16, #tpu.memory_space<vmem>>, vector<128x128xbf16>
      %cst_61 = arith.constant dense<0.000000e+00> : vector<16x128xf32>
      %215 = tpu.matmul %213, %214, %cst_61 {dimension_numbers = #tpu.dot_dimension_numbers<[1], [0], [0], [1], [0, 0, 1, 1], [], []>} : vector<16x128xbf16>, vector<128x128xbf16>, vector<16x128xf32> -> vector<16x128xf32>
      %216 = arith.addf %212, %215 : vector<16x128xf32>
      %217 = arith.truncf %177 : vector<16x128xf32> to vector<16x128xbf16>
      %c0_62 = arith.constant 0 : index
      %c1024 = arith.constant 1024 : index
      %218 = vector.load %arg6[%c0_62, %c1024] : memref<128x1152xbf16, #tpu.memory_space<vmem>>, vector<128x128xbf16>
      %cst_63 = arith.constant dense<0.000000e+00> : vector<16x128xf32>
      %219 = tpu.matmul %217, %218, %cst_63 {dimension_numbers = #tpu.dot_dimension_numbers<[1], [0], [0], [1], [0, 0, 1, 1], [], []>} : vector<16x128xbf16>, vector<128x128xbf16>, vector<16x128xf32> -> vector<16x128xf32>
      %220 = arith.addf %216, %219 : vector<16x128xf32>
      %c0_64 = arith.constant 0 : index
      %c0_65 = arith.constant 0 : index
      %221 = vector.load %arg7[%c0_64, %c0_65] : memref<1x128xf32, #tpu.memory_space<vmem>>, vector<1x128xf32>
      %c0_66 = arith.constant 0 : index
      %c0_67 = arith.constant 0 : index
      %222 = vector.load %arg8[%c0_66, %c0_67] : memref<1x128xf32, #tpu.memory_space<vmem>>, vector<1x128xf32>
      %cst_68 = arith.constant dense<0.000000e+00> : vector<128xf32>
      %223 = vector.multi_reduction <add>, %220, %cst_68 [0] : vector<16x128xf32> to vector<128xf32>
      %224 = vector.shape_cast %223 : vector<128xf32> to vector<1x128xf32>
      %cst_69 = arith.constant 1.600000e+01 : f32
      %225 = vector.broadcast %cst_69 : f32 to vector<1x128xf32>
      %226 = arith.divf %224, %225 : vector<1x128xf32>
      %227 = vector.broadcast %226 : vector<1x128xf32> to vector<16x128xf32>
      %228 = arith.subf %220, %227 : vector<16x128xf32>
      %229 = arith.mulf %228, %228 : vector<16x128xf32>
      %cst_70 = arith.constant dense<0.000000e+00> : vector<128xf32>
      %230 = vector.multi_reduction <add>, %229, %cst_70 [0] : vector<16x128xf32> to vector<128xf32>
      %231 = vector.shape_cast %230 : vector<128xf32> to vector<1x128xf32>
      %cst_71 = arith.constant 1.600000e+01 : f32
      %232 = vector.broadcast %cst_71 : f32 to vector<1x128xf32>
      %233 = arith.divf %231, %232 : vector<1x128xf32>
      %234 = vector.broadcast %226 : vector<1x128xf32> to vector<16x128xf32>
      %235 = arith.subf %220, %234 : vector<16x128xf32>
      %cst_72 = arith.constant 9.99999974E-6 : f32
      %236 = vector.broadcast %cst_72 : f32 to vector<1x128xf32>
      %237 = arith.addf %233, %236 : vector<1x128xf32>
      %238 = math.rsqrt %237 : vector<1x128xf32>
      %239 = vector.broadcast %238 : vector<1x128xf32> to vector<16x128xf32>
      %240 = arith.mulf %235, %239 : vector<16x128xf32>
      %241 = vector.broadcast %221 : vector<1x128xf32> to vector<16x128xf32>
      %242 = arith.mulf %240, %241 : vector<16x128xf32>
      %243 = vector.broadcast %222 : vector<1x128xf32> to vector<16x128xf32>
      %244 = arith.addf %242, %243 : vector<16x128xf32>
      %245 = arith.truncf %244 : vector<16x128xf32> to vector<16x128xbf16>
      %c0_73 = arith.constant 0 : index
      %c0_74 = arith.constant 0 : index
      %246 = vector.load %arg9[%c0_73, %c0_74] : memref<128x256xbf16, #tpu.memory_space<vmem>>, vector<128x256xbf16>
      %cst_75 = arith.constant dense<0.000000e+00> : vector<16x256xf32>
      %247 = tpu.matmul %245, %246, %cst_75 {dimension_numbers = #tpu.dot_dimension_numbers<[1], [0], [0], [1], [0, 0, 1, 1], [], []>} : vector<16x128xbf16>, vector<128x256xbf16>, vector<16x256xf32> -> vector<16x256xf32>
      %c0_76 = arith.constant 0 : index
      %c0_77 = arith.constant 0 : index
      %248 = vector.load %arg10[%c0_76, %c0_77] : memref<1x256xf32, #tpu.memory_space<vmem>>, vector<1x256xf32>
      %249 = vector.broadcast %248 : vector<1x256xf32> to vector<16x256xf32>
      %250 = arith.addf %247, %249 : vector<16x256xf32>
      %251 = vector.extract_strided_slice %250 {offsets = [0, 0], sizes = [16, 128], strides = [1, 1]} : vector<16x256xf32> to vector<16x128xf32>
      %c0_78 = arith.constant 0 : index
      %c0_79 = arith.constant 0 : index
      %252 = vector.load %arg11[%c0_78, %c0_79] : memref<16x256xf32, #tpu.memory_space<vmem>>, vector<16x128xf32>
      tpu.vector_store %arg11[%c0_78, %c0_79], %251 {strides = array<i32>} : memref<16x256xf32, #tpu.memory_space<vmem>>, vector<16x128xf32>,
      %253 = vector.extract_strided_slice %250 {offsets = [0, 128], sizes = [16, 128], strides = [1, 1]} : vector<16x256xf32> to vector<16x128xf32>
      %cst_80 = arith.constant 0.000000e+00 : f32
      %254 = vector.broadcast %cst_80 : f32 to vector<16x128xf32>
      %255 = arith.maximumf %253, %254 : vector<16x128xf32>
      %256 = math.absf %253 : vector<16x128xf32>
      %cst_81 = arith.constant 0.000000e+00 : f32
      %257 = vector.broadcast %cst_81 : f32 to vector<16x128xf32>
      %258 = arith.subf %257, %256 : vector<16x128xf32>
      %259 = math.exp %258 : vector<16x128xf32>
      %260 = math.log1p %259 : vector<16x128xf32>
      %261 = arith.addf %255, %260 : vector<16x128xf32>
      %cst_82 = arith.constant 1.000000e-07 : f32
      %262 = vector.broadcast %cst_82 : f32 to vector<16x128xf32>
      %263 = arith.addf %261, %262 : vector<16x128xf32>
      %c0_83 = arith.constant 0 : index
      %c128_84 = arith.constant 128 : index
      %264 = vector.load %arg11[%c0_83, %c128_84] : memref<16x256xf32, #tpu.memory_space<vmem>>, vector<16x128xf32>
      tpu.vector_store %arg11[%c0_83, %c128_84], %263 {strides = array<i32>} : memref<16x256xf32, #tpu.memory_space<vmem>>, vector<16x128xf32>,
    } else {
    }
    return
  }
  func.func @transform_0(%arg0: i32, %arg1: i32) -> (i32, i32) {
    %c0_i32 = arith.constant 0 : i32
    %c0_i32_0 = arith.constant 0 : i32
    return %c0_i32, %arg1 : i32, i32
  }
  func.func @transform_1(%arg0: i32, %arg1: i32) -> (i32, i32) {
    %0 = arith.muli %arg0, %arg1 : i32
    %c0_i32 = arith.constant 0 : i32
    %c0_i32_0 = arith.constant 0 : i32
    return %0, %c0_i32 : i32, i32
  }
  func.func @transform_2(%arg0: i32, %arg1: i32) -> (i32, i32) {
    %c0_i32 = arith.constant 0 : i32
    %c0_i32_0 = arith.constant 0 : i32
    %c0_i32_1 = arith.constant 0 : i32
    return %c0_i32, %c0_i32_0 : i32, i32
  }
  func.func @transform_3(%arg0: i32, %arg1: i32) -> (i32, i32) {
    %c0_i32 = arith.constant 0 : i32
    %c0_i32_0 = arith.constant 0 : i32
    %c0_i32_1 = arith.constant 0 : i32
    return %c0_i32, %c0_i32_0 : i32, i32
  }
  func.func @transform_4(%arg0: i32, %arg1: i32) -> (i32, i32) {
    %c0_i32 = arith.constant 0 : i32
    %c0_i32_0 = arith.constant 0 : i32
    %c0_i32_1 = arith.constant 0 : i32
    return %c0_i32, %c0_i32_0 : i32, i32
  }
  func.func @transform_5(%arg0: i32, %arg1: i32) -> (i32, i32) {
    %c0_i32 = arith.constant 0 : i32
    %c0_i32_0 = arith.constant 0 : i32
    %c0_i32_1 = arith.constant 0 : i32
    return %c0_i32, %c0_i32_0 : i32, i32
  }
  func.func @transform_6(%arg0: i32, %arg1: i32) -> (i32, i32) {
    %c0_i32 = arith.constant 0 : i32
    %c0_i32_0 = arith.constant 0 : i32
    %c0_i32_1 = arith.constant 0 : i32
    return %c0_i32, %c0_i32_0 : i32, i32
  }
  func.func @transform_7(%arg0: i32, %arg1: i32) -> (i32, i32) {
    %c0_i32 = arith.constant 0 : i32
    %c0_i32_0 = arith.constant 0 : i32
    %c0_i32_1 = arith.constant 0 : i32
    return %c0_i32, %c0_i32_0 : i32, i32
  }
  func.func @transform_8(%arg0: i32, %arg1: i32) -> (i32, i32) {
    %c0_i32 = arith.constant 0 : i32
    %c0_i32_0 = arith.constant 0 : i32
    %c0_i32_1 = arith.constant 0 : i32
    return %c0_i32, %c0_i32_0 : i32, i32
  }
  func.func @transform_9(%arg0: i32, %arg1: i32) -> (i32, i32) {
    %c0_i32 = arith.constant 0 : i32
    %c0_i32_0 = arith.constant 0 : i32
    %c0_i32_1 = arith.constant 0 : i32
    return %c0_i32, %c0_i32_0 : i32, i32
  }
  func.func @transform_10(%arg0: i32, %arg1: i32) -> (i32, i32) {
    %c0_i32 = arith.constant 0 : i32
    %c0_i32_0 = arith.constant 0 : i32
    %c0_i32_1 = arith.constant 0 : i32
    return %c0_i32, %c0_i32_0 : i32, i32
  }
}

</mosaic_0001>

<llo_original>
// kernel: tpu_custom_call.1
$region0: #{tpu_custom_call.1}
  #allocation0 [shape = 'u32[]', space=smem, size = 0x4, offset = 0x4, fixed_abs, tag = 'smem constant byte address 0x4 - core index']
  #allocation1 [shape = 'u32[144,128]{1,0:T(1,128)}', space=vmem, size = 0x12000, scoped, tag = 'internal scratch']
  #allocation2 [shape = 'f32[16,128]{1,0:T(8,128)}', space=vmem, size = 0x2000, scoped, tag = 'scratch operand']
  %s0 = inlined_call_operand.hbm [shape: f32[16,128], index: 0, kind: input, shape index: {}]
  %s1 = inlined_call_operand.hbm [shape: bf16[128,1152], index: 1, kind: input, shape index: {}]
  %s2 = inlined_call_operand.vmem [shape: f32[1,128], index: 2, kind: input, shape index: {}]
  %s3 = inlined_call_operand.vmem [shape: f32[1,128], index: 3, kind: input, shape index: {}]
  %s4 = inlined_call_operand.hbm [shape: bf16[128,1152], index: 4, kind: input, shape index: {}]
  %s5 = inlined_call_operand.vmem [shape: f32[1,128], index: 5, kind: input, shape index: {}]
  %s6 = inlined_call_operand.vmem [shape: f32[1,128], index: 6, kind: input, shape index: {}]
  %s7 = inlined_call_operand.hbm [shape: bf16[128,256], index: 7, kind: input, shape index: {}]
  %s8 = inlined_call_operand.vmem [shape: f32[1,256], index: 8, kind: input, shape index: {}]
  %s9 = inlined_call_operand.hbm [shape: f32[16,256], index: 9, kind: output, shape index: {0}]
  %s10 = inlined_call_operand.hbm [shape: f32[16,128], index: 10, kind: output, shape index: {1}]
  %11 = xla_tuple %s9, %s10
  %s12 = sld [smem:[#allocation0]]
  $region113: #{tpu_custom_call.1} parent=0
    _
  %s14 = ssub.s32 1, %s12
  %s15 = scalar_select 0, %s14, %s12
  $region1: #{tpu_custom_call.1} parent=0
    #allocation3 [shape = 'u8[8192]{0}', space=vmem, size = 0x2000, scoped, tag = 'input window, operand 0, single buffered']
    #allocation4 [shape = 's32[2]{0}', space=sflag, size = 0x8, scoped, tag = 'scoped memory for tpu_custom_call.1']
    #allocation5 [shape = 's32[2]{0}', space=sflag, size = 0x8, scoped, tag = 'scoped memory for tpu_custom_call.1']
    #allocation6 [shape = 'u8[589824]{0}', space=vmem, size = 0x90000, scoped, tag = 'input window, operand 1']
    #allocation7 [shape = 's32[2]{0}', space=sflag, size = 0x8, scoped, tag = 'scoped memory for tpu_custom_call.1']
    #allocation8 [shape = 'u8[294912]{0}', space=vmem, size = 0x48000, scoped, tag = 'input window, operand 4, single buffered']
    #allocation9 [shape = 'u8[65536]{0}', space=vmem, size = 0x10000, scoped, tag = 'input window, operand 7, single buffered']
    #allocation10 [shape = 's32[1]{0}', space=sflag, size = 0x4, scoped, tag = 'scoped memory for tpu_custom_call.1']
    #allocation11 [shape = 'u8[16384]{0}', space=vmem, size = 0x4000, scoped, tag = 'output window, operand 0, single buffered']
    #allocation12 [shape = 'u8[8192]{0}', space=vmem, size = 0x2000, scoped, tag = 'output window, operand 1, single buffered']
    #allocation13 [shape = 's32[1]{0}', space=sflag, size = 0x4, scoped, tag = 'scoped memory for tpu_custom_call.1']
    %16 = vsyncpa [#allocation4], 0
    %17 = vsyncpa [#allocation7], 0
    %s18 = scalar_lea.sflag [#allocation7], 1
    %19 = vsyncpa %s18, 0
    %20 = vsyncpa [#allocation10], 0
    %21 = vsyncpa [#allocation5], 0
    %22 = vsyncpa [#allocation13], 0
    loop: start=0, step=1, limit=4
    $region2: #{tpu_custom_call.1} parent=1 // loop_pre_header
      _
    $region3: #{tpu_custom_call.1} parent=1 // loop_header
      %s24 = sphi 0, %s28
      %p25 = scmp.ge.s32.totalorder %s24, 4
      %s31 = sphi 0, %s43
      %s32 = sphi 0, %s39
      %s33 = sphi 0, %s31
      %s34 = sphi 0, %s32
      %s35 = sphi 0, %s33
      %s36 = sphi 0, %s34
      %s46 = sphi 0, %s48
      %s49 = sphi 0, %s46
      %s50 = sphi 0, %s49
      %s66 = sphi 0, %s50
      %s74 = sphi 0, %s76
      %s77 = sphi 0, %s74
      %s78 = sphi 0, %s77
      %s94 = sphi 0, %s78
      %s98 = sphi 0, %s98
      %s100 = sphi 0, %s98
      %s101 = sphi 0, %s100
      %s115 = sphi 0, %s101
      %s119 = sphi 0, %s119
      %s121 = sphi 0, %s119
      %s122 = sphi 0, %s121
      %s136 = sphi 0, %s122
      %s140 = sphi 0, %s140
      %s142 = sphi 0, %s140
      %s143 = sphi 0, %s142
      %s157 = sphi 0, %s143
      %s161 = sphi 0, %s161
      %s163 = sphi 0, %s161
      %s164 = sphi 0, %s163
      %s178 = sphi 0, %s164
      %s182 = sphi 0, %s182
      %s184 = sphi 0, %s182
      %s185 = sphi 0, %s184
      %s199 = sphi 0, %s185
      %s203 = sphi 0, %s203
      %s205 = sphi 0, %s203
      %s206 = sphi 0, %s205
      %s220 = sphi 0, %s206
      %s224 = sphi 0, %s224
      %s226 = sphi 0, %s224
      %s227 = sphi 0, %s226
      %s241 = sphi 0, %s227
      %s245 = sphi 0, %s245
      %s247 = sphi 0, %s245
      %s248 = sphi 0, %s247
      %s262 = sphi 0, %s248
      %s266 = sphi 0, %s266
      %s268 = sphi 0, %s266
      %s269 = sphi 0, %s268
      %s283 = sphi 0, %s269
    $region4: #{tpu_custom_call.1} parent=1 // loop_header_branch
      %27 = sbr.rel (%p25) target = $region8
    $region5: #{tpu_custom_call.1} parent=1 // loop_body
      %s29 = ssub.s32 %s24, 1
      %s30 = ssub.s32 %s24, 2
      %s37 = sadd.s32 1, %s32
      %p38 = scmp.ge.s32.totalorder %s37, 1
      %s39 = scalar_select %p38, 0, %s37
      %s40 = sadd.s32 1, %s31
      %s41 = scalar_select %p38, %s40, %s31
      %p42 = scmp.ge.s32.totalorder %s41, 2
      %s43 = scalar_select %p42, 0, %s41
      %s44 = ssub.s32 %s32, %s39
      %p45 = scmp.eq.s32.totalorder %s44, 0
      %s47 = sadd.s32 %s46, 1
      %s48 = scalar_select %p45, %s46, %s47
      %p51 = pneg %p45
      %p52 = scmp.eq.s32.totalorder %s24, 1
      %p53 = por %p51, %p52
      %p54 = scmp.ne.s32.totalorder %s46, %s49
      %p55 = scmp.eq.s32.totalorder %s24, 0
      %p56 = por %p54, %p55
      %p57 = scmp.ne.s32.totalorder %s46, %s49
      %p58 = scmp.eq.s32.totalorder %s29, 1
      %p59 = por %p57, %p58
      %p60 = scmp.ne.s32.totalorder %s49, %s50
      %p61 = scmp.eq.s32.totalorder %s29, 0
      %p62 = por %p60, %p61
      %p63 = scmp.ne.s32.totalorder %s49, %s50
      %p64 = scmp.eq.s32.totalorder %s30, 1
      %p65 = por %p63, %p64
      %p67 = scmp.ne.s32.totalorder %s50, %s66
      %p68 = scmp.eq.s32.totalorder %s30, 0
      %p69 = por %p67, %p68
      %s70 = smul.u32 %s31, %s32
      %s71 = smul.u32 %s43, %s39
      %s72 = ssub.s32 %s70, %s71
      %p73 = scmp.eq.s32.totalorder %s72, 0
      %s75 = sadd.s32 %s74, 1
      %s76 = scalar_select %p73, %s74, %s75
      %p79 = pneg %p73
      %p80 = scmp.eq.s32.totalorder %s24, 1
      %p81 = por %p79, %p80
      %p82 = scmp.ne.s32.totalorder %s74, %s77
      %p83 = scmp.eq.s32.totalorder %s24, 0
      %p84 = por %p82, %p83
      %p85 = scmp.ne.s32.totalorder %s74, %s77
      %p86 = scmp.eq.s32.totalorder %s29, 1
      %p87 = por %p85, %p86
      %p88 = scmp.ne.s32.totalorder %s77, %s78
      %p89 = scmp.eq.s32.totalorder %s29, 0
      %p90 = por %p88, %p89
      %p91 = scmp.ne.s32.totalorder %s77, %s78
      %p92 = scmp.eq.s32.totalorder %s30, 1
      %p93 = por %p91, %p92
      %p95 = scmp.ne.s32.totalorder %s78, %s94
      %p96 = scmp.eq.s32.totalorder %s30, 0
      %p97 = por %p95, %p96
      %s99 = sadd.s32 %s98, 1
      %p102 = scmp.eq.s32.totalorder %s24, 1
      %p103 = scmp.ne.s32.totalorder %s98, %s100
      %p104 = scmp.eq.s32.totalorder %s24, 0
      %p105 = por %p103, %p104
      %p106 = scmp.ne.s32.totalorder %s98, %s100
      %p107 = scmp.eq.s32.totalorder %s29, 1
      %p108 = por %p106, %p107
      %p109 = scmp.ne.s32.totalorder %s100, %s101
      %p110 = scmp.eq.s32.totalorder %s29, 0
      %p111 = por %p109, %p110
      %p112 = scmp.ne.s32.totalorder %s100, %s101
      %p113 = scmp.eq.s32.totalorder %s30, 1
      %p114 = por %p112, %p113
      %p116 = scmp.ne.s32.totalorder %s101, %s115
      %p117 = scmp.eq.s32.totalorder %s30, 0
      %p118 = por %p116, %p117
      %s120 = sadd.s32 %s119, 1
      %p123 = scmp.eq.s32.totalorder %s24, 1
      %p124 = scmp.ne.s32.totalorder %s119, %s121
      %p125 = scmp.eq.s32.totalorder %s24, 0
      %p126 = por %p124, %p125
      %p127 = scmp.ne.s32.totalorder %s119, %s121
      %p128 = scmp.eq.s32.totalorder %s29, 1
      %p129 = por %p127, %p128
      %p130 = scmp.ne.s32.totalorder %s121, %s122
      %p131 = scmp.eq.s32.totalorder %s29, 0
      %p132 = por %p130, %p131
      %p133 = scmp.ne.s32.totalorder %s121, %s122
      %p134 = scmp.eq.s32.totalorder %s30, 1
      %p135 = por %p133, %p134
      %p137 = scmp.ne.s32.totalorder %s122, %s136
      %p138 = scmp.eq.s32.totalorder %s30, 0
      %p139 = por %p137, %p138
      %s141 = sadd.s32 %s140, 1
      %p144 = scmp.eq.s32.totalorder %s24, 1
      %p145 = scmp.ne.s32.totalorder %s140, %s142
      %p146 = scmp.eq.s32.totalorder %s24, 0
      %p147 = por %p145, %p146
      %p148 = scmp.ne.s32.totalorder %s140, %s142
      %p149 = scmp.eq.s32.totalorder %s29, 1
      %p150 = por %p148, %p149
      %p151 = scmp.ne.s32.totalorder %s142, %s143
      %p152 = scmp.eq.s32.totalorder %s29, 0
      %p153 = por %p151, %p152
      %p154 = scmp.ne.s32.totalorder %s142, %s143
      %p155 = scmp.eq.s32.totalorder %s30, 1
      %p156 = por %p154, %p155
      %p158 = scmp.ne.s32.totalorder %s143, %s157
      %p159 = scmp.eq.s32.totalorder %s30, 0
      %p160 = por %p158, %p159
      %s162 = sadd.s32 %s161, 1
      %p165 = scmp.eq.s32.totalorder %s24, 1
      %p166 = scmp.ne.s32.totalorder %s161, %s163
      %p167 = scmp.eq.s32.totalorder %s24, 0
      %p168 = por %p166, %p167
      %p169 = scmp.ne.s32.totalorder %s161, %s163
      %p170 = scmp.eq.s32.totalorder %s29, 1
      %p171 = por %p169, %p170
      %p172 = scmp.ne.s32.totalorder %s163, %s164
      %p173 = scmp.eq.s32.totalorder %s29, 0
      %p174 = por %p172, %p173
      %p175 = scmp.ne.s32.totalorder %s163, %s164
      %p176 = scmp.eq.s32.totalorder %s30, 1
      %p177 = por %p175, %p176
      %p179 = scmp.ne.s32.totalorder %s164, %s178
      %p180 = scmp.eq.s32.totalorder %s30, 0
      %p181 = por %p179, %p180
      %s183 = sadd.s32 %s182, 1
      %p186 = scmp.eq.s32.totalorder %s24, 1
      %p187 = scmp.ne.s32.totalorder %s182, %s184
      %p188 = scmp.eq.s32.totalorder %s24, 0
      %p189 = por %p187, %p188
      %p190 = scmp.ne.s32.totalorder %s182, %s184
      %p191 = scmp.eq.s32.totalorder %s29, 1
      %p192 = por %p190, %p191
      %p193 = scmp.ne.s32.totalorder %s184, %s185
      %p194 = scmp.eq.s32.totalorder %s29, 0
      %p195 = por %p193, %p194
      %p196 = scmp.ne.s32.totalorder %s184, %s185
      %p197 = scmp.eq.s32.totalorder %s30, 1
      %p198 = por %p196, %p197
      %p200 = scmp.ne.s32.totalorder %s185, %s199
      %p201 = scmp.eq.s32.totalorder %s30, 0
      %p202 = por %p200, %p201
      %s204 = sadd.s32 %s203, 1
      %p207 = scmp.eq.s32.totalorder %s24, 1
      %p208 = scmp.ne.s32.totalorder %s203, %s205
      %p209 = scmp.eq.s32.totalorder %s24, 0
      %p210 = por %p208, %p209
      %p211 = scmp.ne.s32.totalorder %s203, %s205
      %p212 = scmp.eq.s32.totalorder %s29, 1
      %p213 = por %p211, %p212
      %p214 = scmp.ne.s32.totalorder %s205, %s206
      %p215 = scmp.eq.s32.totalorder %s29, 0
      %p216 = por %p214, %p215
      %p217 = scmp.ne.s32.totalorder %s205, %s206
      %p218 = scmp.eq.s32.totalorder %s30, 1
      %p219 = por %p217, %p218
      %p221 = scmp.ne.s32.totalorder %s206, %s220
      %p222 = scmp.eq.s32.totalorder %s30, 0
      %p223 = por %p221, %p222
      %s225 = sadd.s32 %s224, 1
      %p228 = scmp.eq.s32.totalorder %s24, 1
      %p229 = scmp.ne.s32.totalorder %s224, %s226
      %p230 = scmp.eq.s32.totalorder %s24, 0
      %p231 = por %p229, %p230
      %p232 = scmp.ne.s32.totalorder %s224, %s226
      %p233 = scmp.eq.s32.totalorder %s29, 1
      %p234 = por %p232, %p233
      %p235 = scmp.ne.s32.totalorder %s226, %s227
      %p236 = scmp.eq.s32.totalorder %s29, 0
      %p237 = por %p235, %p236
      %p238 = scmp.ne.s32.totalorder %s226, %s227
      %p239 = scmp.eq.s32.totalorder %s30, 1
      %p240 = por %p238, %p239
      %p242 = scmp.ne.s32.totalorder %s227, %s241
      %p243 = scmp.eq.s32.totalorder %s30, 0
      %p244 = por %p242, %p243
      %s246 = sadd.s32 %s245, 1
      %p249 = scmp.eq.s32.totalorder %s24, 1
      %p250 = scmp.ne.s32.totalorder %s245, %s247
      %p251 = scmp.eq.s32.totalorder %s24, 0
      %p252 = por %p250, %p251
      %p253 = scmp.ne.s32.totalorder %s245, %s247
      %p254 = scmp.eq.s32.totalorder %s29, 1
      %p255 = por %p253, %p254
      %p256 = scmp.ne.s32.totalorder %s247, %s248
      %p257 = scmp.eq.s32.totalorder %s29, 0
      %p258 = por %p256, %p257
      %p259 = scmp.ne.s32.totalorder %s247, %s248
      %p260 = scmp.eq.s32.totalorder %s30, 1
      %p261 = por %p259, %p260
      %p263 = scmp.ne.s32.totalorder %s248, %s262
      %p264 = scmp.eq.s32.totalorder %s30, 0
      %p265 = por %p263, %p264
      %s267 = sadd.s32 %s266, 1
      %p270 = scmp.eq.s32.totalorder %s24, 1
      %p271 = scmp.ne.s32.totalorder %s266, %s268
      %p272 = scmp.eq.s32.totalorder %s24, 0
      %p273 = por %p271, %p272
      %p274 = scmp.ne.s32.totalorder %s266, %s268
      %p275 = scmp.eq.s32.totalorder %s29, 1
      %p276 = por %p274, %p275
      %p277 = scmp.ne.s32.totalorder %s268, %s269
      %p278 = scmp.eq.s32.totalorder %s29, 0
      %p279 = por %p277, %p278
      %p280 = scmp.ne.s32.totalorder %s268, %s269
      %p281 = scmp.eq.s32.totalorder %s30, 1
      %p282 = por %p280, %p281
      %p284 = scmp.ne.s32.totalorder %s269, %s283
      %p285 = scmp.eq.s32.totalorder %s30, 0
      %p286 = por %p284, %p285
      %p287 = scmp.le.s32.totalorder 1, %s24
      %p288 = scmp.lt.s32.totalorder %s24, 3
      %p289 = pnand %p287, %p288
      %p290 = pneg %p289
      // Predicated region
      $region9: #{tpu_custom_call.1} parent=5 // pred_check
        _
      $region10: #{tpu_custom_call.1} parent=5 // pred_check_branch
        %292 = sbr.rel (%p289) target = $region12
      $region11: #{tpu_custom_call.1} parent=5 // pred_region
        %s293 = ssub.s32 %s24, 1
        // Predicated region
        $region13: #{tpu_custom_call.1} parent=11 // pred_check
          %p294 = pneg %p62
        $region14: #{tpu_custom_call.1} parent=11 // pred_check_branch
          %296 = sbr.rel (%p294) target = $region16
        $region15: #{tpu_custom_call.1} parent=11 // pred_region
          %s298 = ssub.s32 256, 256
          %299 = vsyncadd [#allocation4], %s298
          %s300 = smul.addr %s34, 128
          %s301 = scalar_lea.hbm %s0, %s300
          %s302 = sshll.u32 [#allocation3], 4
          %s303 = int_to_ptr.vmem [resolvable:$true] %s302
          %308 = dma.hbm_to_vmem [thread:$0]  %s301, 256, %s303, [#allocation4], 128, 128, 8
        $region16: #{tpu_custom_call.1} parent=11 // pred_fallthru
          _
        // Predicated region
        $region17: #{tpu_custom_call.1} parent=11 // pred_check
          %p309 = pneg %p111
        $region18: #{tpu_custom_call.1} parent=11 // pred_check_branch
          %311 = sbr.rel (%p309) target = $region20
        $region19: #{tpu_custom_call.1} parent=11 // pred_region
          _
        $region20: #{tpu_custom_call.1} parent=11 // pred_fallthru
          _
        // Predicated region
        $region21: #{tpu_custom_call.1} parent=11 // pred_check
          %p312 = pneg %p132
        $region22: #{tpu_custom_call.1} parent=11 // pred_check_branch
          %314 = sbr.rel (%p312) target = $region24
        $region23: #{tpu_custom_call.1} parent=11 // pred_region
          _
        $region24: #{tpu_custom_call.1} parent=11 // pred_fallthru
          _
        // Predicated region
        $region25: #{tpu_custom_call.1} parent=11 // pred_check
          %p315 = pneg %p153
        $region26: #{tpu_custom_call.1} parent=11 // pred_check_branch
          %317 = sbr.rel (%p315) target = $region28
        $region27: #{tpu_custom_call.1} parent=11 // pred_region
          %s319 = ssub.s32 9216, 9216
          %320 = vsyncadd [#allocation7], %s319
          %s321 = sshll.u32 [#allocation8], 4
          %s322 = int_to_ptr.vmem [resolvable:$true] %s321
          %327 = dma.hbm_to_vmem [thread:$0]  %s4, 9216, %s322, [#allocation7], 576, 576, 36
        $region28: #{tpu_custom_call.1} parent=11 // pred_fallthru
          _
        // Predicated region
        $region29: #{tpu_custom_call.1} parent=11 // pred_check
          %p328 = pneg %p174
        $region30: #{tpu_custom_call.1} parent=11 // pred_check_branch
          %330 = sbr.rel (%p328) target = $region32
        $region31: #{tpu_custom_call.1} parent=11 // pred_region
          _
        $region32: #{tpu_custom_call.1} parent=11 // pred_fallthru
          _
        // Predicated region
        $region33: #{tpu_custom_call.1} parent=11 // pred_check
          %p331 = pneg %p195
        $region34: #{tpu_custom_call.1} parent=11 // pred_check_branch
          %333 = sbr.rel (%p331) target = $region36
        $region35: #{tpu_custom_call.1} parent=11 // pred_region
          _
        $region36: #{tpu_custom_call.1} parent=11 // pred_fallthru
          _
        // Predicated region
        $region37: #{tpu_custom_call.1} parent=11 // pred_check
          %p334 = pneg %p216
        $region38: #{tpu_custom_call.1} parent=11 // pred_check_branch
          %336 = sbr.rel (%p334) target = $region40
        $region39: #{tpu_custom_call.1} parent=11 // pred_region
          %s338 = ssub.s32 2048, 2048
          %339 = vsyncadd [#allocation10], %s338
          %s340 = sshll.u32 [#allocation9], 4
          %s341 = int_to_ptr.vmem [resolvable:$true] %s340
          %346 = dma.hbm_to_vmem [thread:$0]  %s7, 2048, %s341, [#allocation10], 128, 128, 8
        $region40: #{tpu_custom_call.1} parent=11 // pred_fallthru
          _
        // Predicated region
        $region41: #{tpu_custom_call.1} parent=11 // pred_check
          %p347 = pneg %p237
        $region42: #{tpu_custom_call.1} parent=11 // pred_check_branch
          %349 = sbr.rel (%p347) target = $region44
        $region43: #{tpu_custom_call.1} parent=11 // pred_region
          _
        $region44: #{tpu_custom_call.1} parent=11 // pred_fallthru
          _
      $region12: #{tpu_custom_call.1} parent=5 // pred_fallthru
        _
      %p350 = scmp.lt.s32.totalorder %s24, 2
      // Predicated region
      $region45: #{tpu_custom_call.1} parent=5 // pred_check
        %p351 = pneg %p350
      $region46: #{tpu_custom_call.1} parent=5 // pred_check_branch
        %353 = sbr.rel (%p351) target = $region48
      $region47: #{tpu_custom_call.1} parent=5 // pred_region
        // Predicated region
        $region49: #{tpu_custom_call.1} parent=47 // pred_check
          %p354 = pneg %p84
        $region50: #{tpu_custom_call.1} parent=47 // pred_check_branch
          %356 = sbr.rel (%p354) target = $region52
        $region51: #{tpu_custom_call.1} parent=47 // pred_region
          %s357 = sand.u32 %s24, 1
          %s358 = scalar_lea.sflag [#allocation7], %s357
          %s359 = sand.u32 %s74, 1
          %s360 = smul.addr %s359, 576
          %s361 = scalar_lea.vmem [#allocation6], %s360
          %s362 = smul.u32 %s31, %s32
          %s363 = smul.u32 16, %s362
          %s365 = ssub.s32 9216, 9216
          %366 = vsyncadd %s358, %s365
          %s367 = smul.addr %s363, 9
          %s368 = smul.addr %s367, 64
          %s369 = scalar_lea.hbm %s1, %s368
          %s370 = sshll.u32 %s361, 4
          %s371 = int_to_ptr.vmem [resolvable:$true] %s370
          %376 = dma.hbm_to_vmem [thread:$0]  %s369, 9216, %s371, %s358, 576, 576, 36
        $region52: #{tpu_custom_call.1} parent=47 // pred_fallthru
          _
      $region48: #{tpu_custom_call.1} parent=5 // pred_fallthru
        _
      %p377 = scmp.le.s32.totalorder 1, %s24
      %p378 = scmp.lt.s32.totalorder %s24, 3
      %p379 = pnand %p377, %p378
      %p380 = pneg %p379
      // Predicated region
      $region53: #{tpu_custom_call.1} parent=5 // pred_check
        _
      $region54: #{tpu_custom_call.1} parent=5 // pred_check_branch
        %382 = sbr.rel (%p379) target = $region56
      $region55: #{tpu_custom_call.1} parent=5 // pred_region
        %s383 = ssub.s32 %s24, 1
        // Predicated region
        $region57: #{tpu_custom_call.1} parent=55 // pred_check
          %p384 = pneg %p62
        $region58: #{tpu_custom_call.1} parent=55 // pred_check_branch
          %386 = sbr.rel (%p384) target = $region60
        $region59: #{tpu_custom_call.1} parent=55 // pred_region
          %387 = dma.done [#allocation4], 256
        $region60: #{tpu_custom_call.1} parent=55 // pred_fallthru
          _
        %s388 = sand.u32 %s29, 1
        %s389 = scalar_lea.sflag [#allocation7], %s388
        %s390 = sand.u32 %s77, 1
        %s391 = smul.addr %s390, 576
        %s392 = scalar_lea.vmem [#allocation6], %s391
        // Predicated region
        $region61: #{tpu_custom_call.1} parent=55 // pred_check
          %p393 = pneg %p90
        $region62: #{tpu_custom_call.1} parent=55 // pred_check_branch
          %395 = sbr.rel (%p393) target = $region64
        $region63: #{tpu_custom_call.1} parent=55 // pred_region
          %396 = dma.done %s389, 9216
        $region64: #{tpu_custom_call.1} parent=55 // pred_fallthru
          _
        // Predicated region
        $region65: #{tpu_custom_call.1} parent=55 // pred_check
          %p397 = pneg %p153
        $region66: #{tpu_custom_call.1} parent=55 // pred_check_branch
          %399 = sbr.rel (%p397) target = $region68
        $region67: #{tpu_custom_call.1} parent=55 // pred_region
          %400 = dma.done [#allocation7], 9216
        $region68: #{tpu_custom_call.1} parent=55 // pred_fallthru
          _
        // Predicated region
        $region69: #{tpu_custom_call.1} parent=55 // pred_check
          %p401 = pneg %p216
        $region70: #{tpu_custom_call.1} parent=55 // pred_check_branch
          %403 = sbr.rel (%p401) target = $region72
        $region71: #{tpu_custom_call.1} parent=55 // pred_region
          %404 = dma.done [#allocation10], 2048
        $region72: #{tpu_custom_call.1} parent=55 // pred_fallthru
          _
        %p405 = pneg %p62
        %p406 = pneg %p59
        %s407 = sand.u32 %s29, 1
        %s408 = scalar_lea.sflag [#allocation7], %s407
        %s409 = sand.u32 %s77, 1
        %s410 = smul.addr %s409, 576
        %s411 = scalar_lea.vmem [#allocation6], %s410
        %p412 = pneg %p90
        %p413 = pneg %p87
        %p414 = pneg %p111
        %p415 = pneg %p108
        %p416 = pneg %p132
        %p417 = pneg %p129
        %p418 = pneg %p153
        %p419 = pneg %p150
        %p420 = pneg %p174
        %p421 = pneg %p171
        %p422 = pneg %p195
        %p423 = pneg %p192
        %p424 = pneg %p216
        %p425 = pneg %p213
        %p426 = pneg %p237
        %p427 = pneg %p234
        %p428 = pneg %p258
        %p429 = pneg %p255
        %p430 = pneg %p279
        %p431 = pneg %p276
        %s432 = smul.u32 %s33, %s34
        %s433 = smul.u32 16, %s432
        %p435 = scmp.eq.s32.totalorder %s33, 0
        %p436 = scmp.eq.s32.totalorder %s34, 0
        %p437 = pnand %p435, %p436
        %p438 = pneg %p437
        // Predicated region
        $region73: #{tpu_custom_call.1} parent=55 // pred_check
          _
        $region74: #{tpu_custom_call.1} parent=55 // pred_check_branch
          %440 = sbr.rel (%p437) target = $region76
        $region75: #{tpu_custom_call.1} parent=55 // pred_region
          %441 = vst [vmem:[#allocation12] sm:$0xff] 0.0
          %442 = vst [vmem:[#allocation12 + $0x8] sm:$0xff] 0.0
        $region76: #{tpu_custom_call.1} parent=55 // pred_fallthru
          _
        // Predicated region
        $region77: #{tpu_custom_call.1} parent=55 // pred_check
          %p443 = pneg %p435
        $region78: #{tpu_custom_call.1} parent=55 // pred_check_branch
          %445 = sbr.rel (%p443) target = $region80
        $region79: #{tpu_custom_call.1} parent=55 // pred_region
          %v446 = vld [vmem:[#allocation3] sm:$0xff]
          %v447 = vld [vmem:[#allocation3 + $0x8] sm:$0xff]
          %448 = vadd.xlane.f32.xlu0 %v446
          %v449 = vpop.xlane.xlu0 %448
          %450 = vadd.xlane.f32.xlu0 %v447
          %v451 = vpop.xlane.xlu0 %450
          %v452 = vld [vmem:[#allocation12] sm:$0xff]
          %v453 = vld [vmem:[#allocation12 + $0x8] sm:$0xff]
          %v454 = vadd.f32 %v452, %v449
          %v455 = vadd.f32 %v453, %v451
          %456 = vst [vmem:[#allocation12] sm:$0xff] %v454
          %457 = vst [vmem:[#allocation12 + $0x8] sm:$0xff] %v455
        $region80: #{tpu_custom_call.1} parent=55 // pred_fallthru
          _
        %p458 = scmp.eq.s32.totalorder %s33, 1
        // Predicated region
        $region81: #{tpu_custom_call.1} parent=55 // pred_check
          %p459 = pneg %p458
        $region82: #{tpu_custom_call.1} parent=55 // pred_check_branch
          %461 = sbr.rel (%p459) target = $region84
        $region83: #{tpu_custom_call.1} parent=55 // pred_region
          // Predicated region
          $region85: #{tpu_custom_call.1} parent=83 // pred_check
            %p462 = pneg %p436
          $region86: #{tpu_custom_call.1} parent=83 // pred_check_branch
            %464 = sbr.rel (%p462) target = $region88
          $region87: #{tpu_custom_call.1} parent=83 // pred_region
            %465 = vst [vmem:[#allocation2] sm:$0xff] 0.0
            %466 = vst [vmem:[#allocation2 + $0x8] sm:$0xff] 0.0
          $region88: #{tpu_custom_call.1} parent=83 // pred_fallthru
            _
          %v467 = vld [vmem:[#allocation3] sm:$0xff]
          %v468 = vld [vmem:[#allocation3 + $0x8] sm:$0xff]
          %v469 = vld [vmem:[#allocation12] sm:$0xff]
          %v470 = vld [vmem:[#allocation12 + $0x8] sm:$0xff]
          %v471 = vrcp.pop %v469
          %v472 = vmul.f32 10000.0, %v471
          %v473 = vrcp.pop %v470
          %v474 = vmul.f32 10000.0, %v473
          %476 = vset.pattern.permute.xlu0 0
          %477 = vperm.xlu0 %476, %v472
          %v478 = vpop.permute.xlu0 %477
          %481 = vset.pattern.permute.xlu0 0
          %482 = vperm.xlu0 %481, %v474
          %v483 = vpop.permute.xlu0 %482
          %v485 = vmul.f32 %v467, %v478
          %v486 = vmul.f32 %v468, %v483
          %v487 = vadd.f32 %v485, 1.0
          %v488 = vlog2.pop %v487
          %v489 = vmul.f32 %v488, 0.6931472
          %v490 = vmul.f32 -0.5, %v485
          %v491 = vadd.f32 %v490, 1.0
          %v492 = vmul.f32 %v491, %v485
          %v493 = vand.u32 2147483647, %v485
          %vm494 = vcmp.lt.f32.partialorder %v493, 0.0004427343
          %v495 = vsel %vm494, %v492, %v489
          %v496 = vadd.f32 %v486, 1.0
          %v497 = vlog2.pop %v496
          %v498 = vmul.f32 %v497, 0.6931472
          %v499 = vmul.f32 -0.5, %v486
          %v500 = vadd.f32 %v499, 1.0
          %v501 = vmul.f32 %v500, %v486
          %v502 = vand.u32 2147483647, %v486
          %vm503 = vcmp.lt.f32.partialorder %v502, 0.0004427343
          %v504 = vsel %vm503, %v501, %v498
          %v505 = vld [vmem:[#allocation2] sm:$0xff]
          %v506 = vld [vmem:[#allocation2 + $0x8] sm:$0xff]
          %v507 = vsub.f32 %v495, -2.2
          %v508 = vsub.f32 %v504, -2.2
          %v509 = vmul.f32 %v507, 2.5
          %v510 = vmul.f32 %v508, 2.5
          %v511 = vfloor.f32 %v509
          %v512 = vfloor.f32 %v510
          %v513 = vsub.f32 %v509, %v511
          %v514 = vsub.f32 %v510, %v512
          %v515 = vmul.f32 %v513, %v513
          %v516 = vmul.f32 %v514, %v514
          %v517 = vmul.f32 %v515, %v513
          %v518 = vmul.f32 %v516, %v514
          %v519 = vsub.f32 1.0, %v513
          %v520 = vsub.f32 1.0, %v514
          %v521 = vmul.f32 %v517, 0.16666667
          %v522 = vmul.f32 %v518, 0.16666667
          %v523 = vmul.f32 %v517, -3.0
          %v524 = vmul.f32 %v518, -3.0
          %v525 = vmul.f32 %v515, 3.0
          %v526 = vmul.f32 %v516, 3.0
          %v527 = vadd.f32 %v523, %v525
          %v528 = vadd.f32 %v524, %v526
          %v529 = vmul.f32 %v513, 3.0
          %v530 = vmul.f32 %v514, 3.0
          %v531 = vadd.f32 %v527, %v529
          %v532 = vadd.f32 %v528, %v530
          %v533 = vadd.f32 %v531, 1.0
          %v534 = vadd.f32 %v532, 1.0
          %v535 = vmul.f32 %v533, 0.16666667
          %v536 = vmul.f32 %v534, 0.16666667
          %v537 = vmul.f32 %v517, 3.0
          %v538 = vmul.f32 %v518, 3.0
          %v539 = vmul.f32 %v515, 6.0
          %v540 = vmul.f32 %v516, 6.0
          %v541 = vsub.f32 %v537, %v539
          %v542 = vsub.f32 %v538, %v540
          %v543 = vadd.f32 %v541, 4.0
          %v544 = vadd.f32 %v542, 4.0
          %v545 = vmul.f32 %v543, 0.16666667
          %v546 = vmul.f32 %v544, 0.16666667
          %v547 = vmul.f32 %v519, %v519
          %v548 = vmul.f32 %v520, %v520
          %v549 = vmul.f32 %v547, %v519
          %v550 = vmul.f32 %v548, %v520
          %v551 = vmul.f32 %v549, 0.16666667
          %v552 = vmul.f32 %v550, 0.16666667
          %vm553 = vcmp.eq.f32.partialorder %v511, 0.0
          %vm554 = vcmp.eq.f32.partialorder %v512, 0.0
          %v555 = vsel %vm553, 1, 0
          %v556 = vsel %vm554, 1, 0
          %v557 = vcvt.s32.f32 %v555
          %v558 = vcvt.s32.f32 %v556
          %vm559 = vcmp.eq.f32.partialorder %v511, 1.0
          %vm560 = vcmp.eq.f32.partialorder %v512, 1.0
          %v561 = vsel %vm559, 1, 0
          %v562 = vsel %vm560, 1, 0
          %v563 = vcvt.s32.f32 %v561
          %v564 = vcvt.s32.f32 %v562
          %vm565 = vcmp.eq.f32.partialorder %v511, 2.0
          %vm566 = vcmp.eq.f32.partialorder %v512, 2.0
          %v567 = vsel %vm565, 1, 0
          %v568 = vsel %vm566, 1, 0
          %v569 = vcvt.s32.f32 %v567
          %v570 = vcvt.s32.f32 %v568
          %vm571 = vcmp.eq.f32.partialorder %v511, 3.0
          %vm572 = vcmp.eq.f32.partialorder %v512, 3.0
          %v573 = vsel %vm571, 1, 0
          %v574 = vsel %vm572, 1, 0
          %v575 = vcvt.s32.f32 %v573
          %v576 = vcvt.s32.f32 %v574
          %vm577 = vcmp.eq.f32.partialorder %v511, 4.0
          %vm578 = vcmp.eq.f32.partialorder %v512, 4.0
          %v579 = vsel %vm577, 1, 0
          %v580 = vsel %vm578, 1, 0
          %v581 = vcvt.s32.f32 %v579
          %v582 = vcvt.s32.f32 %v580
          %vm583 = vcmp.eq.f32.partialorder %v511, 5.0
          %vm584 = vcmp.eq.f32.partialorder %v512, 5.0
          %v585 = vsel %vm583, 1, 0
          %v586 = vsel %vm584, 1, 0
          %v587 = vcvt.s32.f32 %v585
          %v588 = vcvt.s32.f32 %v586
          %vm589 = vcmp.eq.f32.partialorder %v511, 6.0
          %vm590 = vcmp.eq.f32.partialorder %v512, 6.0
          %v591 = vsel %vm589, 1, 0
          %v592 = vsel %vm590, 1, 0
          %v593 = vcvt.s32.f32 %v591
          %v594 = vcvt.s32.f32 %v592
          %vm595 = vcmp.eq.f32.partialorder %v511, 7.0
          %vm596 = vcmp.eq.f32.partialorder %v512, 7.0
          %v597 = vsel %vm595, 1, 0
          %v598 = vsel %vm596, 1, 0
          %v599 = vcvt.s32.f32 %v597
          %v600 = vcvt.s32.f32 %v598
          %vm601 = vcmp.eq.f32.partialorder %v511, 8.0
          %vm602 = vcmp.eq.f32.partialorder %v512, 8.0
          %v603 = vsel %vm601, 1, 0
          %v604 = vsel %vm602, 1, 0
          %v605 = vcvt.s32.f32 %v603
          %v606 = vcvt.s32.f32 %v604
          %vm607 = vcmp.eq.f32.partialorder %v511, 9.0
          %vm608 = vcmp.eq.f32.partialorder %v512, 9.0
          %v609 = vsel %vm607, 1, 0
          %v610 = vsel %vm608, 1, 0
          %v611 = vcvt.s32.f32 %v609
          %v612 = vcvt.s32.f32 %v610
          %vm613 = vcmp.eq.f32.partialorder %v511, 10.0
          %vm614 = vcmp.eq.f32.partialorder %v512, 10.0
          %v615 = vsel %vm613, 1, 0
          %v616 = vsel %vm614, 1, 0
          %v617 = vcvt.s32.f32 %v615
          %v618 = vcvt.s32.f32 %v616
          %v619 = vmul.f32 %v521, %v557
          %v620 = vmul.f32 %v522, %v558
          %v621 = vmul.f32 %v535, %v563
          %v622 = vmul.f32 %v536, %v564
          %v623 = vadd.f32 %v619, %v621
          %v624 = vadd.f32 %v620, %v622
          %v625 = vmul.f32 %v545, %v569
          %v626 = vmul.f32 %v546, %v570
          %v627 = vadd.f32 %v623, %v625
          %v628 = vadd.f32 %v624, %v626
          %v629 = vmul.f32 %v551, %v575
          %v630 = vmul.f32 %v552, %v576
          %v631 = vadd.f32 %v627, %v629
          %v632 = vadd.f32 %v628, %v630
          %v633 = vmul.f32 %v521, %v563
          %v634 = vmul.f32 %v522, %v564
          %v635 = vmul.f32 %v535, %v569
          %v636 = vmul.f32 %v536, %v570
          %v637 = vadd.f32 %v633, %v635
          %v638 = vadd.f32 %v634, %v636
          %v639 = vmul.f32 %v545, %v575
          %v640 = vmul.f32 %v546, %v576
          %v641 = vadd.f32 %v637, %v639
          %v642 = vadd.f32 %v638, %v640
          %v643 = vmul.f32 %v551, %v581
          %v644 = vmul.f32 %v552, %v582
          %v645 = vadd.f32 %v641, %v643
          %v646 = vadd.f32 %v642, %v644
          %v647 = vmul.f32 %v521, %v569
          %v648 = vmul.f32 %v522, %v570
          %v649 = vmul.f32 %v535, %v575
          %v650 = vmul.f32 %v536, %v576
          %v651 = vadd.f32 %v647, %v649
          %v652 = vadd.f32 %v648, %v650
          %v653 = vmul.f32 %v545, %v581
          %v654 = vmul.f32 %v546, %v582
          %v655 = vadd.f32 %v651, %v653
          %v656 = vadd.f32 %v652, %v654
          %v657 = vmul.f32 %v551, %v587
          %v658 = vmul.f32 %v552, %v588
          %v659 = vadd.f32 %v655, %v657
          %v660 = vadd.f32 %v656, %v658
          %v661 = vmul.f32 %v521, %v575
          %v662 = vmul.f32 %v522, %v576
          %v663 = vmul.f32 %v535, %v581
          %v664 = vmul.f32 %v536, %v582
          %v665 = vadd.f32 %v661, %v663
          %v666 = vadd.f32 %v662, %v664
          %v667 = vmul.f32 %v545, %v587
          %v668 = vmul.f32 %v546, %v588
          %v669 = vadd.f32 %v665, %v667
          %v670 = vadd.f32 %v666, %v668
          %v671 = vmul.f32 %v551, %v593
          %v672 = vmul.f32 %v552, %v594
          %v673 = vadd.f32 %v669, %v671
          %v674 = vadd.f32 %v670, %v672
          %v675 = vmul.f32 %v521, %v581
          %v676 = vmul.f32 %v522, %v582
          %v677 = vmul.f32 %v535, %v587
          %v678 = vmul.f32 %v536, %v588
          %v679 = vadd.f32 %v675, %v677
          %v680 = vadd.f32 %v676, %v678
          %v681 = vmul.f32 %v545, %v593
          %v682 = vmul.f32 %v546, %v594
          %v683 = vadd.f32 %v679, %v681
          %v684 = vadd.f32 %v680, %v682
          %v685 = vmul.f32 %v551, %v599
          %v686 = vmul.f32 %v552, %v600
          %v687 = vadd.f32 %v683, %v685
          %v688 = vadd.f32 %v684, %v686
          %v689 = vmul.f32 %v521, %v587
          %v690 = vmul.f32 %v522, %v588
          %v691 = vmul.f32 %v535, %v593
          %v692 = vmul.f32 %v536, %v594
          %v693 = vadd.f32 %v689, %v691
          %v694 = vadd.f32 %v690, %v692
          %v695 = vmul.f32 %v545, %v599
          %v696 = vmul.f32 %v546, %v600
          %v697 = vadd.f32 %v693, %v695
          %v698 = vadd.f32 %v694, %v696
          %v699 = vmul.f32 %v551, %v605
          %v700 = vmul.f32 %v552, %v606
          %v701 = vadd.f32 %v697, %v699
          %v702 = vadd.f32 %v698, %v700
          %v703 = vmul.f32 %v521, %v593
          %v704 = vmul.f32 %v522, %v594
          %v705 = vmul.f32 %v535, %v599
          %v706 = vmul.f32 %v536, %v600
          %v707 = vadd.f32 %v703, %v705
          %v708 = vadd.f32 %v704, %v706
          %v709 = vmul.f32 %v545, %v605
          %v710 = vmul.f32 %v546, %v606
          %v711 = vadd.f32 %v707, %v709
          %v712 = vadd.f32 %v708, %v710
          %v713 = vmul.f32 %v551, %v611
          %v714 = vmul.f32 %v552, %v612
          %v715 = vadd.f32 %v711, %v713
          %v716 = vadd.f32 %v712, %v714
          %v717 = vmul.f32 %v521, %v599
          %v718 = vmul.f32 %v522, %v600
          %v719 = vmul.f32 %v535, %v605
          %v720 = vmul.f32 %v536, %v606
          %v721 = vadd.f32 %v717, %v719
          %v722 = vadd.f32 %v718, %v720
          %v723 = vmul.f32 %v545, %v611
          %v724 = vmul.f32 %v546, %v612
          %v725 = vadd.f32 %v721, %v723
          %v726 = vadd.f32 %v722, %v724
          %v727 = vmul.f32 %v551, %v617
          %v728 = vmul.f32 %v552, %v618
          %v729 = vadd.f32 %v725, %v727
          %v730 = vadd.f32 %v726, %v728
          %v731 = vsub.f32 0.0, %v495
          %v732 = vsub.f32 0.0, %v504
          %v733 = vmul.f32 %v731, 1.442695
          %v734 = vpow.pop %v733
          %v735 = vmul.f32 %v732, 1.442695
          %v736 = vpow.pop %v735
          %v737 = vadd.f32 %v734, 1.0
          %v738 = vadd.f32 %v736, 1.0
          %v739 = vrcp.pop %v737
          %v740 = vmul.f32 1.0, %v739
          %v741 = vrcp.pop %v738
          %v742 = vmul.f32 1.0, %v741
          %v743 = vmul.f32 %v495, %v740
          %v744 = vmul.f32 %v504, %v742
          %v745 = vpack.c.bf16 %v744, %v743
          %v746 = vld [vmem:[%s392] sm:$0xf]
          %v747 = vld [vmem:[%s392 + $0x24] sm:$0xf]
          %v748 = vld [vmem:[%s392 + $0x48] sm:$0xf]
          %v749 = vld [vmem:[%s392 + $0x6c] sm:$0xf]
          %v750 = vld [vmem:[%s392 + $0x90] sm:$0xf]
          %v751 = vld [vmem:[%s392 + $0xb4] sm:$0xf]
          %v752 = vld [vmem:[%s392 + $0xd8] sm:$0xf]
          %v753 = vld [vmem:[%s392 + $0xfc] sm:$0xf]
          %v754 = vld [vmem:[%s392 + $0x120] sm:$0xf]
          %v755 = vld [vmem:[%s392 + $0x144] sm:$0xf]
          %v756 = vld [vmem:[%s392 + $0x168] sm:$0xf]
          %v757 = vld [vmem:[%s392 + $0x18c] sm:$0xf]
          %v758 = vld [vmem:[%s392 + $0x1b0] sm:$0xf]
          %v759 = vld [vmem:[%s392 + $0x1d4] sm:$0xf]
          %v760 = vld [vmem:[%s392 + $0x1f8] sm:$0xf]
          %v761 = vld [vmem:[%s392 + $0x21c] sm:$0xf]
          %v762 = vpack.c.bf16 %v632, %v631
          %v763 = vld [vmem:[%s392 + $0x4] sm:$0xf]
          %v764 = vld [vmem:[%s392 + $0x28] sm:$0xf]
          %v765 = vld [vmem:[%s392 + $0x4c] sm:$0xf]
          %v766 = vld [vmem:[%s392 + $0x70] sm:$0xf]
          %v767 = vld [vmem:[%s392 + $0x94] sm:$0xf]
          %v768 = vld [vmem:[%s392 + $0xb8] sm:$0xf]
          %v769 = vld [vmem:[%s392 + $0xdc] sm:$0xf]
          %v770 = vld [vmem:[%s392 + $0x100] sm:$0xf]
          %v771 = vld [vmem:[%s392 + $0x124] sm:$0xf]
          %v772 = vld [vmem:[%s392 + $0x148] sm:$0xf]
          %v773 = vld [vmem:[%s392 + $0x16c] sm:$0xf]
          %v774 = vld [vmem:[%s392 + $0x190] sm:$0xf]
          %v775 = vld [vmem:[%s392 + $0x1b4] sm:$0xf]
          %v776 = vld [vmem:[%s392 + $0x1d8] sm:$0xf]
          %v777 = vld [vmem:[%s392 + $0x1fc] sm:$0xf]
          %v778 = vld [vmem:[%s392 + $0x220] sm:$0xf]
          %v795 = vunpack.c.l.b16 %v763
          %v796 = vunpack.c.l.b16 %v764
          %v797 = vunpack.c.l.b16 %v765
          %v798 = vunpack.c.l.b16 %v766
          %v799 = vunpack.c.l.b16 %v767
          %v800 = vunpack.c.l.b16 %v768
          %v801 = vunpack.c.l.b16 %v769
          %v802 = vunpack.c.l.b16 %v770
          %v803 = vunpack.c.l.b16 %v771
          %v804 = vunpack.c.l.b16 %v772
          %v805 = vunpack.c.l.b16 %v773
          %v806 = vunpack.c.l.b16 %v774
          %v807 = vunpack.c.l.b16 %v775
          %v808 = vunpack.c.l.b16 %v776
          %v809 = vunpack.c.l.b16 %v777
          %v810 = vunpack.c.l.b16 %v778
          %v811 = vpack.c.b16 %v796, %v795
          %v812 = vpack.c.b16 %v798, %v797
          %v813 = vpack.c.b16 %v800, %v799
          %v814 = vpack.c.b16 %v802, %v801
          %v815 = vpack.c.b16 %v804, %v803
          %v816 = vpack.c.b16 %v806, %v805
          %v817 = vpack.c.b16 %v808, %v807
          %v818 = vpack.c.b16 %v810, %v809
          %827 = vmatprep.subr.bf16.mxu0 0
          %828 = vmatpush1.bf16.msra.mxu0 %v811
          %829 = vmatprep.subr.bf16.mxu0 0
          %830 = vmatpush1.bf16.msra.mxu0 %v812
          %831 = vmatprep.subr.bf16.mxu0 0
          %832 = vmatpush1.bf16.msra.mxu0 %v813
          %833 = vmatprep.subr.bf16.mxu0 0
          %834 = vmatpush1.bf16.msra.mxu0 %v814
          %835 = vmatprep.subr.bf16.mxu0 0
          %836 = vmatpush1.bf16.msra.mxu0 %v815
          %837 = vmatprep.subr.bf16.mxu0 0
          %838 = vmatpush1.bf16.msra.mxu0 %v816
          %839 = vmatprep.subr.bf16.mxu0 0
          %840 = vmatpush1.bf16.msra.mxu0 %v817
          %841 = vmatprep.subr.bf16.mxu0 0
          %842 = vmatpush1.bf16.msra.mxu0 %v818
          %843 = vmatprep.subr.bf16.mxu0 0
          %844 = vmatpush1.bf16.msra.mxu0 0
          %845 = vmatprep.subr.bf16.mxu0 0
          %846 = vmatpush1.bf16.msra.mxu0 0
          %847 = vmatprep.subr.bf16.mxu0 0
          %848 = vmatpush1.bf16.msra.mxu0 0
          %849 = vmatprep.subr.bf16.mxu0 0
          %850 = vmatpush1.bf16.msra.mxu0 0
          %851 = vmatprep.subr.bf16.mxu0 0
          %852 = vmatpush1.bf16.msra.mxu0 0
          %853 = vmatprep.subr.bf16.mxu0 0
          %854 = vmatpush1.bf16.msra.mxu0 0
          %855 = vmatprep.subr.bf16.mxu0 0
          %856 = vmatpush1.bf16.msra.mxu0 0
          %857 = vmatprep.subr.bf16.mxu0 0
          %858 = vmatpush1.bf16.msra.mxu0 0
          %859 = vmatprep.mubr.bf16.mxu0 0
          %860 = vmatmul.mubr.bf16.gmra.mrb[0].mxu0 %v762
          %v861 = vpop.f32.mrb[0].mxu0
          %v862 = vadd.f32 0.0, %v861
          %v863 = vpop.f32.mrb[0].mxu0
          %v864 = vpop.f32.mrb[0].mxu0
          %v865 = vadd.f32 0.0, %v864
          %v866 = vpop.f32.mrb[0].mxu0
          %867 = vdwg.mxu0
          %v884 = vunpack.c.l.b16 %v746
          %v885 = vunpack.c.l.b16 %v747
          %v886 = vunpack.c.l.b16 %v748
          %v887 = vunpack.c.l.b16 %v749
          %v888 = vunpack.c.l.b16 %v750
          %v889 = vunpack.c.l.b16 %v751
          %v890 = vunpack.c.l.b16 %v752
          %v891 = vunpack.c.l.b16 %v753
          %v892 = vunpack.c.l.b16 %v754
          %v893 = vunpack.c.l.b16 %v755
          %v894 = vunpack.c.l.b16 %v756
          %v895 = vunpack.c.l.b16 %v757
          %v896 = vunpack.c.l.b16 %v758
          %v897 = vunpack.c.l.b16 %v759
          %v898 = vunpack.c.l.b16 %v760
          %v899 = vunpack.c.l.b16 %v761
          %v900 = vpack.c.b16 %v885, %v884
          %v901 = vpack.c.b16 %v887, %v886
          %v902 = vpack.c.b16 %v889, %v888
          %v903 = vpack.c.b16 %v891, %v890
          %v904 = vpack.c.b16 %v893, %v892
          %v905 = vpack.c.b16 %v895, %v894
          %v906 = vpack.c.b16 %v897, %v896
          %v907 = vpack.c.b16 %v899, %v898
          %916 = vmatprep.subr.bf16.mxu0 0
          %917 = vmatpush1.bf16.msra.mxu0 %v900
          %918 = vmatprep.subr.bf16.mxu0 0
          %919 = vmatpush1.bf16.msra.mxu0 %v901
          %920 = vmatprep.subr.bf16.mxu0 0
          %921 = vmatpush1.bf16.msra.mxu0 %v902
          %922 = vmatprep.subr.bf16.mxu0 0
          %923 = vmatpush1.bf16.msra.mxu0 %v903
          %924 = vmatprep.subr.bf16.mxu0 0
          %925 = vmatpush1.bf16.msra.mxu0 %v904
          %926 = vmatprep.subr.bf16.mxu0 0
          %927 = vmatpush1.bf16.msra.mxu0 %v905
          %928 = vmatprep.subr.bf16.mxu0 0
          %929 = vmatpush1.bf16.msra.mxu0 %v906
          %930 = vmatprep.subr.bf16.mxu0 0
          %931 = vmatpush1.bf16.msra.mxu0 %v907
          %932 = vmatprep.subr.bf16.mxu0 0
          %933 = vmatpush1.bf16.msra.mxu0 0
          %934 = vmatprep.subr.bf16.mxu0 0
          %935 = vmatpush1.bf16.msra.mxu0 0
          %936 = vmatprep.subr.bf16.mxu0 0
          %937 = vmatpush1.bf16.msra.mxu0 0
          %938 = vmatprep.subr.bf16.mxu0 0
          %939 = vmatpush1.bf16.msra.mxu0 0
          %940 = vmatprep.subr.bf16.mxu0 0
          %941 = vmatpush1.bf16.msra.mxu0 0
          %942 = vmatprep.subr.bf16.mxu0 0
          %943 = vmatpush1.bf16.msra.mxu0 0
          %944 = vmatprep.subr.bf16.mxu0 0
          %945 = vmatpush1.bf16.msra.mxu0 0
          %946 = vmatprep.subr.bf16.mxu0 0
          %947 = vmatpush1.bf16.msra.mxu0 0
          %948 = vmatprep.mubr.bf16.mxu0 0
          %949 = vmatmul.mubr.bf16.gmra.mrb[0].mxu0 %v745
          %v950 = vpop.f32.mrb[0].mxu0
          %v951 = vadd.f32 %v862, %v950
          %v952 = vpop.f32.mrb[0].mxu0
          %v953 = vpop.f32.mrb[0].mxu0
          %v954 = vadd.f32 %v865, %v953
          %v955 = vpop.f32.mrb[0].mxu0
          %956 = vdwg.mxu0
          %v957 = vpack.c.bf16 %v646, %v645
          %v958 = vld [vmem:[%s392 + $0x8] sm:$0xf]
          %v959 = vld [vmem:[%s392 + $0x2c] sm:$0xf]
          %v960 = vld [vmem:[%s392 + $0x50] sm:$0xf]
          %v961 = vld [vmem:[%s392 + $0x74] sm:$0xf]
          %v962 = vld [vmem:[%s392 + $0x98] sm:$0xf]
          %v963 = vld [vmem:[%s392 + $0xbc] sm:$0xf]
          %v964 = vld [vmem:[%s392 + $0xe0] sm:$0xf]
          %v965 = vld [vmem:[%s392 + $0x104] sm:$0xf]
          %v966 = vld [vmem:[%s392 + $0x128] sm:$0xf]
          %v967 = vld [vmem:[%s392 + $0x14c] sm:$0xf]
          %v968 = vld [vmem:[%s392 + $0x170] sm:$0xf]
          %v969 = vld [vmem:[%s392 + $0x194] sm:$0xf]
          %v970 = vld [vmem:[%s392 + $0x1b8] sm:$0xf]
          %v971 = vld [vmem:[%s392 + $0x1dc] sm:$0xf]
          %v972 = vld [vmem:[%s392 + $0x200] sm:$0xf]
          %v973 = vld [vmem:[%s392 + $0x224] sm:$0xf]
          %v990 = vunpack.c.l.b16 %v958
          %v991 = vunpack.c.l.b16 %v959
          %v992 = vunpack.c.l.b16 %v960
          %v993 = vunpack.c.l.b16 %v961
          %v994 = vunpack.c.l.b16 %v962
          %v995 = vunpack.c.l.b16 %v963
          %v996 = vunpack.c.l.b16 %v964
          %v997 = vunpack.c.l.b16 %v965
          %v998 = vunpack.c.l.b16 %v966
          %v999 = vunpack.c.l.b16 %v967
          %v1000 = vunpack.c.l.b16 %v968
          %v1001 = vunpack.c.l.b16 %v969
          %v1002 = vunpack.c.l.b16 %v970
          %v1003 = vunpack.c.l.b16 %v971
          %v1004 = vunpack.c.l.b16 %v972
          %v1005 = vunpack.c.l.b16 %v973
          %v1006 = vpack.c.b16 %v991, %v990
          %v1007 = vpack.c.b16 %v993, %v992
          %v1008 = vpack.c.b16 %v995, %v994
          %v1009 = vpack.c.b16 %v997, %v996
          %v1010 = vpack.c.b16 %v999, %v998
          %v1011 = vpack.c.b16 %v1001, %v1000
          %v1012 = vpack.c.b16 %v1003, %v1002
          %v1013 = vpack.c.b16 %v1005, %v1004
          %1022 = vmatprep.subr.bf16.mxu0 0
          %1023 = vmatpush1.bf16.msra.mxu0 %v1006
          %1024 = vmatprep.subr.bf16.mxu0 0
          %1025 = vmatpush1.bf16.msra.mxu0 %v1007
          %1026 = vmatprep.subr.bf16.mxu0 0
          %1027 = vmatpush1.bf16.msra.mxu0 %v1008
          %1028 = vmatprep.subr.bf16.mxu0 0
          %1029 = vmatpush1.bf16.msra.mxu0 %v1009
          %1030 = vmatprep.subr.bf16.mxu0 0
          %1031 = vmatpush1.bf16.msra.mxu0 %v1010
          %1032 = vmatprep.subr.bf16.mxu0 0
          %1033 = vmatpush1.bf16.msra.mxu0 %v1011
          %1034 = vmatprep.subr.bf16.mxu0 0
          %1035 = vmatpush1.bf16.msra.mxu0 %v1012
          %1036 = vmatprep.subr.bf16.mxu0 0
          %1037 = vmatpush1.bf16.msra.mxu0 %v1013
          %1038 = vmatprep.subr.bf16.mxu0 0
          %1039 = vmatpush1.bf16.msra.mxu0 0
          %1040 = vmatprep.subr.bf16.mxu0 0
          %1041 = vmatpush1.bf16.msra.mxu0 0
          %1042 = vmatprep.subr.bf16.mxu0 0
          %1043 = vmatpush1.bf16.msra.mxu0 0
          %1044 = vmatprep.subr.bf16.mxu0 0
          %1045 = vmatpush1.bf16.msra.mxu0 0
          %1046 = vmatprep.subr.bf16.mxu0 0
          %1047 = vmatpush1.bf16.msra.mxu0 0
          %1048 = vmatprep.subr.bf16.mxu0 0
          %1049 = vmatpush1.bf16.msra.mxu0 0
          %1050 = vmatprep.subr.bf16.mxu0 0
          %1051 = vmatpush1.bf16.msra.mxu0 0
          %1052 = vmatprep.subr.bf16.mxu0 0
          %1053 = vmatpush1.bf16.msra.mxu0 0
          %1054 = vmatprep.mubr.bf16.mxu0 0
          %1055 = vmatmul.mubr.bf16.gmra.mrb[0].mxu0 %v957
          %v1056 = vpop.f32.mrb[0].mxu0
          %v1057 = vadd.f32 0.0, %v1056
          %v1058 = vpop.f32.mrb[0].mxu0
          %v1059 = vpop.f32.mrb[0].mxu0
          %v1060 = vadd.f32 0.0, %v1059
          %v1061 = vpop.f32.mrb[0].mxu0
          %1062 = vdwg.mxu0
          %v1063 = vadd.f32 %v951, %v1057
          %v1064 = vadd.f32 %v954, %v1060
          %v1065 = vpack.c.bf16 %v660, %v659
          %v1066 = vld [vmem:[%s392 + $0xc] sm:$0xf]
          %v1067 = vld [vmem:[%s392 + $0x30] sm:$0xf]
          %v1068 = vld [vmem:[%s392 + $0x54] sm:$0xf]
          %v1069 = vld [vmem:[%s392 + $0x78] sm:$0xf]
          %v1070 = vld [vmem:[%s392 + $0x9c] sm:$0xf]
          %v1071 = vld [vmem:[%s392 + $0xc0] sm:$0xf]
          %v1072 = vld [vmem:[%s392 + $0xe4] sm:$0xf]
          %v1073 = vld [vmem:[%s392 + $0x108] sm:$0xf]
          %v1074 = vld [vmem:[%s392 + $0x12c] sm:$0xf]
          %v1075 = vld [vmem:[%s392 + $0x150] sm:$0xf]
          %v1076 = vld [vmem:[%s392 + $0x174] sm:$0xf]
          %v1077 = vld [vmem:[%s392 + $0x198] sm:$0xf]
          %v1078 = vld [vmem:[%s392 + $0x1bc] sm:$0xf]
          %v1079 = vld [vmem:[%s392 + $0x1e0] sm:$0xf]
          %v1080 = vld [vmem:[%s392 + $0x204] sm:$0xf]
          %v1081 = vld [vmem:[%s392 + $0x228] sm:$0xf]
          %v1098 = vunpack.c.l.b16 %v1066
          %v1099 = vunpack.c.l.b16 %v1067
          %v1100 = vunpack.c.l.b16 %v1068
          %v1101 = vunpack.c.l.b16 %v1069
          %v1102 = vunpack.c.l.b16 %v1070
          %v1103 = vunpack.c.l.b16 %v1071
          %v1104 = vunpack.c.l.b16 %v1072
          %v1105 = vunpack.c.l.b16 %v1073
          %v1106 = vunpack.c.l.b16 %v1074
          %v1107 = vunpack.c.l.b16 %v1075
          %v1108 = vunpack.c.l.b16 %v1076
          %v1109 = vunpack.c.l.b16 %v1077
          %v1110 = vunpack.c.l.b16 %v1078
          %v1111 = vunpack.c.l.b16 %v1079
          %v1112 = vunpack.c.l.b16 %v1080
          %v1113 = vunpack.c.l.b16 %v1081
          %v1114 = vpack.c.b16 %v1099, %v1098
          %v1115 = vpack.c.b16 %v1101, %v1100
          %v1116 = vpack.c.b16 %v1103, %v1102
          %v1117 = vpack.c.b16 %v1105, %v1104
          %v1118 = vpack.c.b16 %v1107, %v1106
          %v1119 = vpack.c.b16 %v1109, %v1108
          %v1120 = vpack.c.b16 %v1111, %v1110
          %v1121 = vpack.c.b16 %v1113, %v1112
          %1130 = vmatprep.subr.bf16.mxu0 0
          %1131 = vmatpush1.bf16.msra.mxu0 %v1114
          %1132 = vmatprep.subr.bf16.mxu0 0
          %1133 = vmatpush1.bf16.msra.mxu0 %v1115
          %1134 = vmatprep.subr.bf16.mxu0 0
          %1135 = vmatpush1.bf16.msra.mxu0 %v1116
          %1136 = vmatprep.subr.bf16.mxu0 0
          %1137 = vmatpush1.bf16.msra.mxu0 %v1117
          %1138 = vmatprep.subr.bf16.mxu0 0
          %1139 = vmatpush1.bf16.msra.mxu0 %v1118
          %1140 = vmatprep.subr.bf16.mxu0 0
          %1141 = vmatpush1.bf16.msra.mxu0 %v1119
          %1142 = vmatprep.subr.bf16.mxu0 0
          %1143 = vmatpush1.bf16.msra.mxu0 %v1120
          %1144 = vmatprep.subr.bf16.mxu0 0
          %1145 = vmatpush1.bf16.msra.mxu0 %v1121
          %1146 = vmatprep.subr.bf16.mxu0 0
          %1147 = vmatpush1.bf16.msra.mxu0 0
          %1148 = vmatprep.subr.bf16.mxu0 0
          %1149 = vmatpush1.bf16.msra.mxu0 0
          %1150 = vmatprep.subr.bf16.mxu0 0
          %1151 = vmatpush1.bf16.msra.mxu0 0
          %1152 = vmatprep.subr.bf16.mxu0 0
          %1153 = vmatpush1.bf16.msra.mxu0 0
          %1154 = vmatprep.subr.bf16.mxu0 0
          %1155 = vmatpush1.bf16.msra.mxu0 0
          %1156 = vmatprep.subr.bf16.mxu0 0
          %1157 = vmatpush1.bf16.msra.mxu0 0
          %1158 = vmatprep.subr.bf16.mxu0 0
          %1159 = vmatpush1.bf16.msra.mxu0 0
          %1160 = vmatprep.subr.bf16.mxu0 0
          %1161 = vmatpush1.bf16.msra.mxu0 0
          %1162 = vmatprep.mubr.bf16.mxu0 0
          %1163 = vmatmul.mubr.bf16.gmra.mrb[0].mxu0 %v1065
          %v1164 = vpop.f32.mrb[0].mxu0
          %v1165 = vadd.f32 0.0, %v1164
          %v1166 = vpop.f32.mrb[0].mxu0
          %v1167 = vpop.f32.mrb[0].mxu0
          %v1168 = vadd.f32 0.0, %v1167
          %v1169 = vpop.f32.mrb[0].mxu0
          %1170 = vdwg.mxu0
          %v1171 = vadd.f32 %v1063, %v1165
          %v1172 = vadd.f32 %v1064, %v1168
          %v1173 = vpack.c.bf16 %v674, %v673
          %v1174 = vld [vmem:[%s392 + $0x10] sm:$0xf]
          %v1175 = vld [vmem:[%s392 + $0x34] sm:$0xf]
          %v1176 = vld [vmem:[%s392 + $0x58] sm:$0xf]
          %v1177 = vld [vmem:[%s392 + $0x7c] sm:$0xf]
          %v1178 = vld [vmem:[%s392 + $0xa0] sm:$0xf]
          %v1179 = vld [vmem:[%s392 + $0xc4] sm:$0xf]
          %v1180 = vld [vmem:[%s392 + $0xe8] sm:$0xf]
          %v1181 = vld [vmem:[%s392 + $0x10c] sm:$0xf]
          %v1182 = vld [vmem:[%s392 + $0x130] sm:$0xf]
          %v1183 = vld [vmem:[%s392 + $0x154] sm:$0xf]
          %v1184 = vld [vmem:[%s392 + $0x178] sm:$0xf]
          %v1185 = vld [vmem:[%s392 + $0x19c] sm:$0xf]
          %v1186 = vld [vmem:[%s392 + $0x1c0] sm:$0xf]
          %v1187 = vld [vmem:[%s392 + $0x1e4] sm:$0xf]
          %v1188 = vld [vmem:[%s392 + $0x208] sm:$0xf]
          %v1189 = vld [vmem:[%s392 + $0x22c] sm:$0xf]
          %v1206 = vunpack.c.l.b16 %v1174
          %v1207 = vunpack.c.l.b16 %v1175
          %v1208 = vunpack.c.l.b16 %v1176
          %v1209 = vunpack.c.l.b16 %v1177
          %v1210 = vunpack.c.l.b16 %v1178
          %v1211 = vunpack.c.l.b16 %v1179
          %v1212 = vunpack.c.l.b16 %v1180
          %v1213 = vunpack.c.l.b16 %v1181
          %v1214 = vunpack.c.l.b16 %v1182
          %v1215 = vunpack.c.l.b16 %v1183
          %v1216 = vunpack.c.l.b16 %v1184
          %v1217 = vunpack.c.l.b16 %v1185
          %v1218 = vunpack.c.l.b16 %v1186
          %v1219 = vunpack.c.l.b16 %v1187
          %v1220 = vunpack.c.l.b16 %v1188
          %v1221 = vunpack.c.l.b16 %v1189
          %v1222 = vpack.c.b16 %v1207, %v1206
          %v1223 = vpack.c.b16 %v1209, %v1208
          %v1224 = vpack.c.b16 %v1211, %v1210
          %v1225 = vpack.c.b16 %v1213, %v1212
          %v1226 = vpack.c.b16 %v1215, %v1214
          %v1227 = vpack.c.b16 %v1217, %v1216
          %v1228 = vpack.c.b16 %v1219, %v1218
          %v1229 = vpack.c.b16 %v1221, %v1220
          %1238 = vmatprep.subr.bf16.mxu0 0
          %1239 = vmatpush1.bf16.msra.mxu0 %v1222
          %1240 = vmatprep.subr.bf16.mxu0 0
          %1241 = vmatpush1.bf16.msra.mxu0 %v1223
          %1242 = vmatprep.subr.bf16.mxu0 0
          %1243 = vmatpush1.bf16.msra.mxu0 %v1224
          %1244 = vmatprep.subr.bf16.mxu0 0
          %1245 = vmatpush1.bf16.msra.mxu0 %v1225
          %1246 = vmatprep.subr.bf16.mxu0 0
          %1247 = vmatpush1.bf16.msra.mxu0 %v1226
          %1248 = vmatprep.subr.bf16.mxu0 0
          %1249 = vmatpush1.bf16.msra.mxu0 %v1227
          %1250 = vmatprep.subr.bf16.mxu0 0
          %1251 = vmatpush1.bf16.msra.mxu0 %v1228
          %1252 = vmatprep.subr.bf16.mxu0 0
          %1253 = vmatpush1.bf16.msra.mxu0 %v1229
          %1254 = vmatprep.subr.bf16.mxu0 0
          %1255 = vmatpush1.bf16.msra.mxu0 0
          %1256 = vmatprep.subr.bf16.mxu0 0
          %1257 = vmatpush1.bf16.msra.mxu0 0
          %1258 = vmatprep.subr.bf16.mxu0 0
          %1259 = vmatpush1.bf16.msra.mxu0 0
          %1260 = vmatprep.subr.bf16.mxu0 0
          %1261 = vmatpush1.bf16.msra.mxu0 0
          %1262 = vmatprep.subr.bf16.mxu0 0
          %1263 = vmatpush1.bf16.msra.mxu0 0
          %1264 = vmatprep.subr.bf16.mxu0 0
          %1265 = vmatpush1.bf16.msra.mxu0 0
          %1266 = vmatprep.subr.bf16.mxu0 0
          %1267 = vmatpush1.bf16.msra.mxu0 0
          %1268 = vmatprep.subr.bf16.mxu0 0
          %1269 = vmatpush1.bf16.msra.mxu0 0
          %1270 = vmatprep.mubr.bf16.mxu0 0
          %1271 = vmatmul.mubr.bf16.gmra.mrb[0].mxu0 %v1173
          %v1272 = vpop.f32.mrb[0].mxu0
          %v1273 = vadd.f32 0.0, %v1272
          %v1274 = vpop.f32.mrb[0].mxu0
          %v1275 = vpop.f32.mrb[0].mxu0
          %v1276 = vadd.f32 0.0, %v1275
          %v1277 = vpop.f32.mrb[0].mxu0
          %1278 = vdwg.mxu0
          %v1279 = vadd.f32 %v1171, %v1273
          %v1280 = vadd.f32 %v1172, %v1276
          %v1281 = vpack.c.bf16 %v688, %v687
          %v1282 = vld [vmem:[%s392 + $0x14] sm:$0xf]
          %v1283 = vld [vmem:[%s392 + $0x38] sm:$0xf]
          %v1284 = vld [vmem:[%s392 + $0x5c] sm:$0xf]
          %v1285 = vld [vmem:[%s392 + $0x80] sm:$0xf]
          %v1286 = vld [vmem:[%s392 + $0xa4] sm:$0xf]
          %v1287 = vld [vmem:[%s392 + $0xc8] sm:$0xf]
          %v1288 = vld [vmem:[%s392 + $0xec] sm:$0xf]
          %v1289 = vld [vmem:[%s392 + $0x110] sm:$0xf]
          %v1290 = vld [vmem:[%s392 + $0x134] sm:$0xf]
          %v1291 = vld [vmem:[%s392 + $0x158] sm:$0xf]
          %v1292 = vld [vmem:[%s392 + $0x17c] sm:$0xf]
          %v1293 = vld [vmem:[%s392 + $0x1a0] sm:$0xf]
          %v1294 = vld [vmem:[%s392 + $0x1c4] sm:$0xf]
          %v1295 = vld [vmem:[%s392 + $0x1e8] sm:$0xf]
          %v1296 = vld [vmem:[%s392 + $0x20c] sm:$0xf]
          %v1297 = vld [vmem:[%s392 + $0x230] sm:$0xf]
          %v1314 = vunpack.c.l.b16 %v1282
          %v1315 = vunpack.c.l.b16 %v1283
          %v1316 = vunpack.c.l.b16 %v1284
          %v1317 = vunpack.c.l.b16 %v1285
          %v1318 = vunpack.c.l.b16 %v1286
          %v1319 = vunpack.c.l.b16 %v1287
          %v1320 = vunpack.c.l.b16 %v1288
          %v1321 = vunpack.c.l.b16 %v1289
          %v1322 = vunpack.c.l.b16 %v1290
          %v1323 = vunpack.c.l.b16 %v1291
          %v1324 = vunpack.c.l.b16 %v1292
          %v1325 = vunpack.c.l.b16 %v1293
          %v1326 = vunpack.c.l.b16 %v1294
          %v1327 = vunpack.c.l.b16 %v1295
          %v1328 = vunpack.c.l.b16 %v1296
          %v1329 = vunpack.c.l.b16 %v1297
          %v1330 = vpack.c.b16 %v1315, %v1314
          %v1331 = vpack.c.b16 %v1317, %v1316
          %v1332 = vpack.c.b16 %v1319, %v1318
          %v1333 = vpack.c.b16 %v1321, %v1320
          %v1334 = vpack.c.b16 %v1323, %v1322
          %v1335 = vpack.c.b16 %v1325, %v1324
          %v1336 = vpack.c.b16 %v1327, %v1326
          %v1337 = vpack.c.b16 %v1329, %v1328
          %1346 = vmatprep.subr.bf16.mxu0 0
          %1347 = vmatpush1.bf16.msra.mxu0 %v1330
          %1348 = vmatprep.subr.bf16.mxu0 0
          %1349 = vmatpush1.bf16.msra.mxu0 %v1331
          %1350 = vmatprep.subr.bf16.mxu0 0
          %1351 = vmatpush1.bf16.msra.mxu0 %v1332
          %1352 = vmatprep.subr.bf16.mxu0 0
          %1353 = vmatpush1.bf16.msra.mxu0 %v1333
          %1354 = vmatprep.subr.bf16.mxu0 0
          %1355 = vmatpush1.bf16.msra.mxu0 %v1334
          %1356 = vmatprep.subr.bf16.mxu0 0
          %1357 = vmatpush1.bf16.msra.mxu0 %v1335
          %1358 = vmatprep.subr.bf16.mxu0 0
          %1359 = vmatpush1.bf16.msra.mxu0 %v1336
          %1360 = vmatprep.subr.bf16.mxu0 0
          %1361 = vmatpush1.bf16.msra.mxu0 %v1337
          %1362 = vmatprep.subr.bf16.mxu0 0
          %1363 = vmatpush1.bf16.msra.mxu0 0
          %1364 = vmatprep.subr.bf16.mxu0 0
          %1365 = vmatpush1.bf16.msra.mxu0 0
          %1366 = vmatprep.subr.bf16.mxu0 0
          %1367 = vmatpush1.bf16.msra.mxu0 0
          %1368 = vmatprep.subr.bf16.mxu0 0
          %1369 = vmatpush1.bf16.msra.mxu0 0
          %1370 = vmatprep.subr.bf16.mxu0 0
          %1371 = vmatpush1.bf16.msra.mxu0 0
          %1372 = vmatprep.subr.bf16.mxu0 0
          %1373 = vmatpush1.bf16.msra.mxu0 0
          %1374 = vmatprep.subr.bf16.mxu0 0
          %1375 = vmatpush1.bf16.msra.mxu0 0
          %1376 = vmatprep.subr.bf16.mxu0 0
          %1377 = vmatpush1.bf16.msra.mxu0 0
          %1378 = vmatprep.mubr.bf16.mxu0 0
          %1379 = vmatmul.mubr.bf16.gmra.mrb[0].mxu0 %v1281
          %v1380 = vpop.f32.mrb[0].mxu0
          %v1381 = vadd.f32 0.0, %v1380
          %v1382 = vpop.f32.mrb[0].mxu0
          %v1383 = vpop.f32.mrb[0].mxu0
          %v1384 = vadd.f32 0.0, %v1383
          %v1385 = vpop.f32.mrb[0].mxu0
          %1386 = vdwg.mxu0
          %v1387 = vadd.f32 %v1279, %v1381
          %v1388 = vadd.f32 %v1280, %v1384
          %v1389 = vpack.c.bf16 %v702, %v701
          %v1390 = vld [vmem:[%s392 + $0x18] sm:$0xf]
          %v1391 = vld [vmem:[%s392 + $0x3c] sm:$0xf]
          %v1392 = vld [vmem:[%s392 + $0x60] sm:$0xf]
          %v1393 = vld [vmem:[%s392 + $0x84] sm:$0xf]
          %v1394 = vld [vmem:[%s392 + $0xa8] sm:$0xf]
          %v1395 = vld [vmem:[%s392 + $0xcc] sm:$0xf]
          %v1396 = vld [vmem:[%s392 + $0xf0] sm:$0xf]
          %v1397 = vld [vmem:[%s392 + $0x114] sm:$0xf]
          %v1398 = vld [vmem:[%s392 + $0x138] sm:$0xf]
          %v1399 = vld [vmem:[%s392 + $0x15c] sm:$0xf]
          %v1400 = vld [vmem:[%s392 + $0x180] sm:$0xf]
          %v1401 = vld [vmem:[%s392 + $0x1a4] sm:$0xf]
          %v1402 = vld [vmem:[%s392 + $0x1c8] sm:$0xf]
          %v1403 = vld [vmem:[%s392 + $0x1ec] sm:$0xf]
          %v1404 = vld [vmem:[%s392 + $0x210] sm:$0xf]
          %v1405 = vld [vmem:[%s392 + $0x234] sm:$0xf]
          %v1422 = vunpack.c.l.b16 %v1390
          %v1423 = vunpack.c.l.b16 %v1391
          %v1424 = vunpack.c.l.b16 %v1392
          %v1425 = vunpack.c.l.b16 %v1393
          %v1426 = vunpack.c.l.b16 %v1394
          %v1427 = vunpack.c.l.b16 %v1395
          %v1428 = vunpack.c.l.b16 %v1396
          %v1429 = vunpack.c.l.b16 %v1397
          %v1430 = vunpack.c.l.b16 %v1398
          %v1431 = vunpack.c.l.b16 %v1399
          %v1432 = vunpack.c.l.b16 %v1400
          %v1433 = vunpack.c.l.b16 %v1401
          %v1434 = vunpack.c.l.b16 %v1402
          %v1435 = vunpack.c.l.b16 %v1403
          %v1436 = vunpack.c.l.b16 %v1404
          %v1437 = vunpack.c.l.b16 %v1405
          %v1438 = vpack.c.b16 %v1423, %v1422
          %v1439 = vpack.c.b16 %v1425, %v1424
          %v1440 = vpack.c.b16 %v1427, %v1426
          %v1441 = vpack.c.b16 %v1429, %v1428
          %v1442 = vpack.c.b16 %v1431, %v1430
          %v1443 = vpack.c.b16 %v1433, %v1432
          %v1444 = vpack.c.b16 %v1435, %v1434
          %v1445 = vpack.c.b16 %v1437, %v1436
          %1454 = vmatprep.subr.bf16.mxu0 0
          %1455 = vmatpush1.bf16.msra.mxu0 %v1438
          %1456 = vmatprep.subr.bf16.mxu0 0
          %1457 = vmatpush1.bf16.msra.mxu0 %v1439
          %1458 = vmatprep.subr.bf16.mxu0 0
          %1459 = vmatpush1.bf16.msra.mxu0 %v1440
          %1460 = vmatprep.subr.bf16.mxu0 0
          %1461 = vmatpush1.bf16.msra.mxu0 %v1441
          %1462 = vmatprep.subr.bf16.mxu0 0
          %1463 = vmatpush1.bf16.msra.mxu0 %v1442
          %1464 = vmatprep.subr.bf16.mxu0 0
          %1465 = vmatpush1.bf16.msra.mxu0 %v1443
          %1466 = vmatprep.subr.bf16.mxu0 0
          %1467 = vmatpush1.bf16.msra.mxu0 %v1444
          %1468 = vmatprep.subr.bf16.mxu0 0
          %1469 = vmatpush1.bf16.msra.mxu0 %v1445
          %1470 = vmatprep.subr.bf16.mxu0 0
          %1471 = vmatpush1.bf16.msra.mxu0 0
          %1472 = vmatprep.subr.bf16.mxu0 0
          %1473 = vmatpush1.bf16.msra.mxu0 0
          %1474 = vmatprep.subr.bf16.mxu0 0
          %1475 = vmatpush1.bf16.msra.mxu0 0
          %1476 = vmatprep.subr.bf16.mxu0 0
          %1477 = vmatpush1.bf16.msra.mxu0 0
          %1478 = vmatprep.subr.bf16.mxu0 0
          %1479 = vmatpush1.bf16.msra.mxu0 0
          %1480 = vmatprep.subr.bf16.mxu0 0
          %1481 = vmatpush1.bf16.msra.mxu0 0
          %1482 = vmatprep.subr.bf16.mxu0 0
          %1483 = vmatpush1.bf16.msra.mxu0 0
          %1484 = vmatprep.subr.bf16.mxu0 0
          %1485 = vmatpush1.bf16.msra.mxu0 0
          %1486 = vmatprep.mubr.bf16.mxu0 0
          %1487 = vmatmul.mubr.bf16.gmra.mrb[0].mxu0 %v1389
          %v1488 = vpop.f32.mrb[0].mxu0
          %v1489 = vadd.f32 0.0, %v1488
          %v1490 = vpop.f32.mrb[0].mxu0
          %v1491 = vpop.f32.mrb[0].mxu0
          %v1492 = vadd.f32 0.0, %v1491
          %v1493 = vpop.f32.mrb[0].mxu0
          %1494 = vdwg.mxu0
          %v1495 = vadd.f32 %v1387, %v1489
          %v1496 = vadd.f32 %v1388, %v1492
          %v1497 = vpack.c.bf16 %v716, %v715
          %v1498 = vld [vmem:[%s392 + $0x1c] sm:$0xf]
          %v1499 = vld [vmem:[%s392 + $0x40] sm:$0xf]
          %v1500 = vld [vmem:[%s392 + $0x64] sm:$0xf]
          %v1501 = vld [vmem:[%s392 + $0x88] sm:$0xf]
          %v1502 = vld [vmem:[%s392 + $0xac] sm:$0xf]
          %v1503 = vld [vmem:[%s392 + $0xd0] sm:$0xf]
          %v1504 = vld [vmem:[%s392 + $0xf4] sm:$0xf]
          %v1505 = vld [vmem:[%s392 + $0x118] sm:$0xf]
          %v1506 = vld [vmem:[%s392 + $0x13c] sm:$0xf]
          %v1507 = vld [vmem:[%s392 + $0x160] sm:$0xf]
          %v1508 = vld [vmem:[%s392 + $0x184] sm:$0xf]
          %v1509 = vld [vmem:[%s392 + $0x1a8] sm:$0xf]
          %v1510 = vld [vmem:[%s392 + $0x1cc] sm:$0xf]
          %v1511 = vld [vmem:[%s392 + $0x1f0] sm:$0xf]
          %v1512 = vld [vmem:[%s392 + $0x214] sm:$0xf]
          %v1513 = vld [vmem:[%s392 + $0x238] sm:$0xf]
          %v1530 = vunpack.c.l.b16 %v1498
          %v1531 = vunpack.c.l.b16 %v1499
          %v1532 = vunpack.c.l.b16 %v1500
          %v1533 = vunpack.c.l.b16 %v1501
          %v1534 = vunpack.c.l.b16 %v1502
          %v1535 = vunpack.c.l.b16 %v1503
          %v1536 = vunpack.c.l.b16 %v1504
          %v1537 = vunpack.c.l.b16 %v1505
          %v1538 = vunpack.c.l.b16 %v1506
          %v1539 = vunpack.c.l.b16 %v1507
          %v1540 = vunpack.c.l.b16 %v1508
          %v1541 = vunpack.c.l.b16 %v1509
          %v1542 = vunpack.c.l.b16 %v1510
          %v1543 = vunpack.c.l.b16 %v1511
          %v1544 = vunpack.c.l.b16 %v1512
          %v1545 = vunpack.c.l.b16 %v1513
          %v1546 = vpack.c.b16 %v1531, %v1530
          %v1547 = vpack.c.b16 %v1533, %v1532
          %v1548 = vpack.c.b16 %v1535, %v1534
          %v1549 = vpack.c.b16 %v1537, %v1536
          %v1550 = vpack.c.b16 %v1539, %v1538
          %v1551 = vpack.c.b16 %v1541, %v1540
          %v1552 = vpack.c.b16 %v1543, %v1542
          %v1553 = vpack.c.b16 %v1545, %v1544
          %1562 = vmatprep.subr.bf16.mxu0 0
          %1563 = vmatpush1.bf16.msra.mxu0 %v1546
          %1564 = vmatprep.subr.bf16.mxu0 0
          %1565 = vmatpush1.bf16.msra.mxu0 %v1547
          %1566 = vmatprep.subr.bf16.mxu0 0
          %1567 = vmatpush1.bf16.msra.mxu0 %v1548
          %1568 = vmatprep.subr.bf16.mxu0 0
          %1569 = vmatpush1.bf16.msra.mxu0 %v1549
          %1570 = vmatprep.subr.bf16.mxu0 0
          %1571 = vmatpush1.bf16.msra.mxu0 %v1550
          %1572 = vmatprep.subr.bf16.mxu0 0
          %1573 = vmatpush1.bf16.msra.mxu0 %v1551
          %1574 = vmatprep.subr.bf16.mxu0 0
          %1575 = vmatpush1.bf16.msra.mxu0 %v1552
          %1576 = vmatprep.subr.bf16.mxu0 0
          %1577 = vmatpush1.bf16.msra.mxu0 %v1553
          %1578 = vmatprep.subr.bf16.mxu0 0
          %1579 = vmatpush1.bf16.msra.mxu0 0
          %1580 = vmatprep.subr.bf16.mxu0 0
          %1581 = vmatpush1.bf16.msra.mxu0 0
          %1582 = vmatprep.subr.bf16.mxu0 0
          %1583 = vmatpush1.bf16.msra.mxu0 0
          %1584 = vmatprep.subr.bf16.mxu0 0
          %1585 = vmatpush1.bf16.msra.mxu0 0
          %1586 = vmatprep.subr.bf16.mxu0 0
          %1587 = vmatpush1.bf16.msra.mxu0 0
          %1588 = vmatprep.subr.bf16.mxu0 0
          %1589 = vmatpush1.bf16.msra.mxu0 0
          %1590 = vmatprep.subr.bf16.mxu0 0
          %1591 = vmatpush1.bf16.msra.mxu0 0
          %1592 = vmatprep.subr.bf16.mxu0 0
          %1593 = vmatpush1.bf16.msra.mxu0 0
          %1594 = vmatprep.mubr.bf16.mxu0 0
          %1595 = vmatmul.mubr.bf16.gmra.mrb[0].mxu0 %v1497
          %v1596 = vpop.f32.mrb[0].mxu0
          %v1597 = vadd.f32 0.0, %v1596
          %v1598 = vpop.f32.mrb[0].mxu0
          %v1599 = vpop.f32.mrb[0].mxu0
          %v1600 = vadd.f32 0.0, %v1599
          %v1601 = vpop.f32.mrb[0].mxu0
          %1602 = vdwg.mxu0
          %v1603 = vadd.f32 %v1495, %v1597
          %v1604 = vadd.f32 %v1496, %v1600
          %v1605 = vpack.c.bf16 %v730, %v729
          %v1606 = vld [vmem:[%s392 + $0x20] sm:$0xf]
          %v1607 = vld [vmem:[%s392 + $0x44] sm:$0xf]
          %v1608 = vld [vmem:[%s392 + $0x68] sm:$0xf]
          %v1609 = vld [vmem:[%s392 + $0x8c] sm:$0xf]
          %v1610 = vld [vmem:[%s392 + $0xb0] sm:$0xf]
          %v1611 = vld [vmem:[%s392 + $0xd4] sm:$0xf]
          %v1612 = vld [vmem:[%s392 + $0xf8] sm:$0xf]
          %v1613 = vld [vmem:[%s392 + $0x11c] sm:$0xf]
          %v1614 = vld [vmem:[%s392 + $0x140] sm:$0xf]
          %v1615 = vld [vmem:[%s392 + $0x164] sm:$0xf]
          %v1616 = vld [vmem:[%s392 + $0x188] sm:$0xf]
          %v1617 = vld [vmem:[%s392 + $0x1ac] sm:$0xf]
          %v1618 = vld [vmem:[%s392 + $0x1d0] sm:$0xf]
          %v1619 = vld [vmem:[%s392 + $0x1f4] sm:$0xf]
          %v1620 = vld [vmem:[%s392 + $0x218] sm:$0xf]
          %v1621 = vld [vmem:[%s392 + $0x23c] sm:$0xf]
          %v1638 = vunpack.c.l.b16 %v1606
          %v1639 = vunpack.c.l.b16 %v1607
          %v1640 = vunpack.c.l.b16 %v1608
          %v1641 = vunpack.c.l.b16 %v1609
          %v1642 = vunpack.c.l.b16 %v1610
          %v1643 = vunpack.c.l.b16 %v1611
          %v1644 = vunpack.c.l.b16 %v1612
          %v1645 = vunpack.c.l.b16 %v1613
          %v1646 = vunpack.c.l.b16 %v1614
          %v1647 = vunpack.c.l.b16 %v1615
          %v1648 = vunpack.c.l.b16 %v1616
          %v1649 = vunpack.c.l.b16 %v1617
          %v1650 = vunpack.c.l.b16 %v1618
          %v1651 = vunpack.c.l.b16 %v1619
          %v1652 = vunpack.c.l.b16 %v1620
          %v1653 = vunpack.c.l.b16 %v1621
          %v1654 = vpack.c.b16 %v1639, %v1638
          %v1655 = vpack.c.b16 %v1641, %v1640
          %v1656 = vpack.c.b16 %v1643, %v1642
          %v1657 = vpack.c.b16 %v1645, %v1644
          %v1658 = vpack.c.b16 %v1647, %v1646
          %v1659 = vpack.c.b16 %v1649, %v1648
          %v1660 = vpack.c.b16 %v1651, %v1650
          %v1661 = vpack.c.b16 %v1653, %v1652
          %1670 = vmatprep.subr.bf16.mxu0 0
          %1671 = vmatpush1.bf16.msra.mxu0 %v1654
          %1672 = vmatprep.subr.bf16.mxu0 0
          %1673 = vmatpush1.bf16.msra.mxu0 %v1655
          %1674 = vmatprep.subr.bf16.mxu0 0
          %1675 = vmatpush1.bf16.msra.mxu0 %v1656
          %1676 = vmatprep.subr.bf16.mxu0 0
          %1677 = vmatpush1.bf16.msra.mxu0 %v1657
          %1678 = vmatprep.subr.bf16.mxu0 0
          %1679 = vmatpush1.bf16.msra.mxu0 %v1658
          %1680 = vmatprep.subr.bf16.mxu0 0
          %1681 = vmatpush1.bf16.msra.mxu0 %v1659
          %1682 = vmatprep.subr.bf16.mxu0 0
          %1683 = vmatpush1.bf16.msra.mxu0 %v1660
          %1684 = vmatprep.subr.bf16.mxu0 0
          %1685 = vmatpush1.bf16.msra.mxu0 %v1661
          %1686 = vmatprep.subr.bf16.mxu0 0
          %1687 = vmatpush1.bf16.msra.mxu0 0
          %1688 = vmatprep.subr.bf16.mxu0 0
          %1689 = vmatpush1.bf16.msra.mxu0 0
          %1690 = vmatprep.subr.bf16.mxu0 0
          %1691 = vmatpush1.bf16.msra.mxu0 0
          %1692 = vmatprep.subr.bf16.mxu0 0
          %1693 = vmatpush1.bf16.msra.mxu0 0
          %1694 = vmatprep.subr.bf16.mxu0 0
          %1695 = vmatpush1.bf16.msra.mxu0 0
          %1696 = vmatprep.subr.bf16.mxu0 0
          %1697 = vmatpush1.bf16.msra.mxu0 0
          %1698 = vmatprep.subr.bf16.mxu0 0
          %1699 = vmatpush1.bf16.msra.mxu0 0
          %1700 = vmatprep.subr.bf16.mxu0 0
          %1701 = vmatpush1.bf16.msra.mxu0 0
          %1702 = vmatprep.mubr.bf16.mxu0 0
          %1703 = vmatmul.mubr.bf16.gmra.mrb[0].mxu0 %v1605
          %v1704 = vpop.f32.mrb[0].mxu0
          %v1705 = vadd.f32 0.0, %v1704
          %v1706 = vpop.f32.mrb[0].mxu0
          %v1707 = vpop.f32.mrb[0].mxu0
          %v1708 = vadd.f32 0.0, %v1707
          %v1709 = vpop.f32.mrb[0].mxu0
          %1710 = vdwg.mxu0
          %v1711 = vadd.f32 %v1603, %v1705
          %v1712 = vadd.f32 %v1604, %v1708
          %v1713 = vadd.f32 %v505, %v1711
          %v1714 = vadd.f32 %v506, %v1712
          %1715 = vst [vmem:[#allocation2] sm:$0xff] %v1713
          %1716 = vst [vmem:[#allocation2 + $0x8] sm:$0xff] %v1714
        $region84: #{tpu_custom_call.1} parent=55 // pred_fallthru
          _
        %p1717 = pnand %p458, %p436
        %p1718 = pneg %p1717
        // Predicated region
        $region89: #{tpu_custom_call.1} parent=55 // pred_check
          _
        $region90: #{tpu_custom_call.1} parent=55 // pred_check_branch
          %1720 = sbr.rel (%p1717) target = $region92
        $region91: #{tpu_custom_call.1} parent=55 // pred_region
          %v1721 = vld [vmem:[#allocation2] sm:$0xff]
          %v1722 = vld [vmem:[#allocation2 + $0x8] sm:$0xff]
          %v1723 = vld [vmem:[%s2] sm:$0x1]
          %v1724 = vld [vmem:[%s3] sm:$0x1]
          %v1725 = vadd.f32 %v1721, %v1722
          %v1726 = vrot.slane %v1725, 4
          %v1727 = vadd.f32 %v1725, %v1726
          %v1728 = vrot.slane %v1727, 2
          %v1729 = vadd.f32 %v1727, %v1728
          %v1730 = vrot.slane %v1729, 1
          %v1731 = vadd.f32 %v1729, %v1730
          %v1732 = vrcp.pop 16.0
          %v1733 = vmul.f32 %v1731, %v1732
          %v1734 = vsub.f32 %v1721, %v1733
          %v1735 = vsub.f32 %v1722, %v1733
          %v1736 = vmul.f32 %v1734, %v1734
          %v1737 = vmul.f32 %v1735, %v1735
          %v1738 = vadd.f32 %v1736, %v1737
          %v1739 = vrot.slane %v1738, 4
          %v1740 = vadd.f32 %v1738, %v1739
          %v1741 = vrot.slane %v1740, 2
          %v1742 = vadd.f32 %v1740, %v1741
          %v1743 = vrot.slane %v1742, 1
          %v1744 = vadd.f32 %v1742, %v1743
          %v1745 = vmul.f32 %v1744, %v1732
          %v1746 = vadd.f32 %v1745, 1e-05
          %v1747 = vrsqrt.pop %v1746
          %v1748 = vmul.f32 %v1734, %v1747
          %v1749 = vmul.f32 %v1735, %v1747
          %v1751 = vlaneseq
          %v1752 = vshrl.u32 %v1751, 7
          %v1753 = vsub.s32 0, %v1752
          %v1754 = vrot.slane %v1723, %v1753
          %v1756 = vmul.f32 %v1748, %v1754
          %v1757 = vmul.f32 %v1749, %v1754
          %v1759 = vlaneseq
          %v1760 = vshrl.u32 %v1759, 7
          %v1761 = vsub.s32 0, %v1760
          %v1762 = vrot.slane %v1724, %v1761
          %v1764 = vadd.f32 %v1756, %v1762
          %v1765 = vadd.f32 %v1757, %v1762
          %v1766 = vsub.f32 %v1764, -2.2
          %v1767 = vsub.f32 %v1765, -2.2
          %v1768 = vmul.f32 %v1766, 2.5
          %v1769 = vmul.f32 %v1767, 2.5
          %v1770 = vfloor.f32 %v1768
          %v1771 = vfloor.f32 %v1769
          %v1772 = vsub.f32 %v1768, %v1770
          %v1773 = vsub.f32 %v1769, %v1771
          %v1774 = vmul.f32 %v1772, %v1772
          %v1775 = vmul.f32 %v1773, %v1773
          %v1776 = vmul.f32 %v1774, %v1772
          %v1777 = vmul.f32 %v1775, %v1773
          %v1778 = vsub.f32 1.0, %v1772
          %v1779 = vsub.f32 1.0, %v1773
          %v1780 = vmul.f32 %v1776, 0.16666667
          %v1781 = vmul.f32 %v1777, 0.16666667
          %v1782 = vmul.f32 %v1776, -3.0
          %v1783 = vmul.f32 %v1777, -3.0
          %v1784 = vmul.f32 %v1774, 3.0
          %v1785 = vmul.f32 %v1775, 3.0
          %v1786 = vadd.f32 %v1782, %v1784
          %v1787 = vadd.f32 %v1783, %v1785
          %v1788 = vmul.f32 %v1772, 3.0
          %v1789 = vmul.f32 %v1773, 3.0
          %v1790 = vadd.f32 %v1786, %v1788
          %v1791 = vadd.f32 %v1787, %v1789
          %v1792 = vadd.f32 %v1790, 1.0
          %v1793 = vadd.f32 %v1791, 1.0
          %v1794 = vmul.f32 %v1792, 0.16666667
          %v1795 = vmul.f32 %v1793, 0.16666667
          %v1796 = vmul.f32 %v1776, 3.0
          %v1797 = vmul.f32 %v1777, 3.0
          %v1798 = vmul.f32 %v1774, 6.0
          %v1799 = vmul.f32 %v1775, 6.0
          %v1800 = vsub.f32 %v1796, %v1798
          %v1801 = vsub.f32 %v1797, %v1799
          %v1802 = vadd.f32 %v1800, 4.0
          %v1803 = vadd.f32 %v1801, 4.0
          %v1804 = vmul.f32 %v1802, 0.16666667
          %v1805 = vmul.f32 %v1803, 0.16666667
          %v1806 = vmul.f32 %v1778, %v1778
          %v1807 = vmul.f32 %v1779, %v1779
          %v1808 = vmul.f32 %v1806, %v1778
          %v1809 = vmul.f32 %v1807, %v1779
          %v1810 = vmul.f32 %v1808, 0.16666667
          %v1811 = vmul.f32 %v1809, 0.16666667
          %vm1812 = vcmp.eq.f32.partialorder %v1770, 0.0
          %vm1813 = vcmp.eq.f32.partialorder %v1771, 0.0
          %v1814 = vsel %vm1812, 1, 0
          %v1815 = vsel %vm1813, 1, 0
          %v1816 = vcvt.s32.f32 %v1814
          %v1817 = vcvt.s32.f32 %v1815
          %vm1818 = vcmp.eq.f32.partialorder %v1770, 1.0
          %vm1819 = vcmp.eq.f32.partialorder %v1771, 1.0
          %v1820 = vsel %vm1818, 1, 0
          %v1821 = vsel %vm1819, 1, 0
          %v1822 = vcvt.s32.f32 %v1820
          %v1823 = vcvt.s32.f32 %v1821
          %vm1824 = vcmp.eq.f32.partialorder %v1770, 2.0
          %vm1825 = vcmp.eq.f32.partialorder %v1771, 2.0
          %v1826 = vsel %vm1824, 1, 0
          %v1827 = vsel %vm1825, 1, 0
          %v1828 = vcvt.s32.f32 %v1826
          %v1829 = vcvt.s32.f32 %v1827
          %vm1830 = vcmp.eq.f32.partialorder %v1770, 3.0
          %vm1831 = vcmp.eq.f32.partialorder %v1771, 3.0
          %v1832 = vsel %vm1830, 1, 0
          %v1833 = vsel %vm1831, 1, 0
          %v1834 = vcvt.s32.f32 %v1832
          %v1835 = vcvt.s32.f32 %v1833
          %vm1836 = vcmp.eq.f32.partialorder %v1770, 4.0
          %vm1837 = vcmp.eq.f32.partialorder %v1771, 4.0
          %v1838 = vsel %vm1836, 1, 0
          %v1839 = vsel %vm1837, 1, 0
          %v1840 = vcvt.s32.f32 %v1838
          %v1841 = vcvt.s32.f32 %v1839
          %vm1842 = vcmp.eq.f32.partialorder %v1770, 5.0
          %vm1843 = vcmp.eq.f32.partialorder %v1771, 5.0
          %v1844 = vsel %vm1842, 1, 0
          %v1845 = vsel %vm1843, 1, 0
          %v1846 = vcvt.s32.f32 %v1844
          %v1847 = vcvt.s32.f32 %v1845
          %vm1848 = vcmp.eq.f32.partialorder %v1770, 6.0
          %vm1849 = vcmp.eq.f32.partialorder %v1771, 6.0
          %v1850 = vsel %vm1848, 1, 0
          %v1851 = vsel %vm1849, 1, 0
          %v1852 = vcvt.s32.f32 %v1850
          %v1853 = vcvt.s32.f32 %v1851
          %vm1854 = vcmp.eq.f32.partialorder %v1770, 7.0
          %vm1855 = vcmp.eq.f32.partialorder %v1771, 7.0
          %v1856 = vsel %vm1854, 1, 0
          %v1857 = vsel %vm1855, 1, 0
          %v1858 = vcvt.s32.f32 %v1856
          %v1859 = vcvt.s32.f32 %v1857
          %vm1860 = vcmp.eq.f32.partialorder %v1770, 8.0
          %vm1861 = vcmp.eq.f32.partialorder %v1771, 8.0
          %v1862 = vsel %vm1860, 1, 0
          %v1863 = vsel %vm1861, 1, 0
          %v1864 = vcvt.s32.f32 %v1862
          %v1865 = vcvt.s32.f32 %v1863
          %vm1866 = vcmp.eq.f32.partialorder %v1770, 9.0
          %vm1867 = vcmp.eq.f32.partialorder %v1771, 9.0
          %v1868 = vsel %vm1866, 1, 0
          %v1869 = vsel %vm1867, 1, 0
          %v1870 = vcvt.s32.f32 %v1868
          %v1871 = vcvt.s32.f32 %v1869
          %vm1872 = vcmp.eq.f32.partialorder %v1770, 10.0
          %vm1873 = vcmp.eq.f32.partialorder %v1771, 10.0
          %v1874 = vsel %vm1872, 1, 0
          %v1875 = vsel %vm1873, 1, 0
          %v1876 = vcvt.s32.f32 %v1874
          %v1877 = vcvt.s32.f32 %v1875
          %v1878 = vmul.f32 %v1780, %v1816
          %v1879 = vmul.f32 %v1781, %v1817
          %v1880 = vmul.f32 %v1794, %v1822
          %v1881 = vmul.f32 %v1795, %v1823
          %v1882 = vadd.f32 %v1878, %v1880
          %v1883 = vadd.f32 %v1879, %v1881
          %v1884 = vmul.f32 %v1804, %v1828
          %v1885 = vmul.f32 %v1805, %v1829
          %v1886 = vadd.f32 %v1882, %v1884
          %v1887 = vadd.f32 %v1883, %v1885
          %v1888 = vmul.f32 %v1810, %v1834
          %v1889 = vmul.f32 %v1811, %v1835
          %v1890 = vadd.f32 %v1886, %v1888
          %v1891 = vadd.f32 %v1887, %v1889
          %v1892 = vmul.f32 %v1780, %v1822
          %v1893 = vmul.f32 %v1781, %v1823
          %v1894 = vmul.f32 %v1794, %v1828
          %v1895 = vmul.f32 %v1795, %v1829
          %v1896 = vadd.f32 %v1892, %v1894
          %v1897 = vadd.f32 %v1893, %v1895
          %v1898 = vmul.f32 %v1804, %v1834
          %v1899 = vmul.f32 %v1805, %v1835
          %v1900 = vadd.f32 %v1896, %v1898
          %v1901 = vadd.f32 %v1897, %v1899
          %v1902 = vmul.f32 %v1810, %v1840
          %v1903 = vmul.f32 %v1811, %v1841
          %v1904 = vadd.f32 %v1900, %v1902
          %v1905 = vadd.f32 %v1901, %v1903
          %v1906 = vmul.f32 %v1780, %v1828
          %v1907 = vmul.f32 %v1781, %v1829
          %v1908 = vmul.f32 %v1794, %v1834
          %v1909 = vmul.f32 %v1795, %v1835
          %v1910 = vadd.f32 %v1906, %v1908
          %v1911 = vadd.f32 %v1907, %v1909
          %v1912 = vmul.f32 %v1804, %v1840
          %v1913 = vmul.f32 %v1805, %v1841
          %v1914 = vadd.f32 %v1910, %v1912
          %v1915 = vadd.f32 %v1911, %v1913
          %v1916 = vmul.f32 %v1810, %v1846
          %v1917 = vmul.f32 %v1811, %v1847
          %v1918 = vadd.f32 %v1914, %v1916
          %v1919 = vadd.f32 %v1915, %v1917
          %v1920 = vmul.f32 %v1780, %v1834
          %v1921 = vmul.f32 %v1781, %v1835
          %v1922 = vmul.f32 %v1794, %v1840
          %v1923 = vmul.f32 %v1795, %v1841
          %v1924 = vadd.f32 %v1920, %v1922
          %v1925 = vadd.f32 %v1921, %v1923
          %v1926 = vmul.f32 %v1804, %v1846
          %v1927 = vmul.f32 %v1805, %v1847
          %v1928 = vadd.f32 %v1924, %v1926
          %v1929 = vadd.f32 %v1925, %v1927
          %v1930 = vmul.f32 %v1810, %v1852
          %v1931 = vmul.f32 %v1811, %v1853
          %v1932 = vadd.f32 %v1928, %v1930
          %v1933 = vadd.f32 %v1929, %v1931
          %v1934 = vmul.f32 %v1780, %v1840
          %v1935 = vmul.f32 %v1781, %v1841
          %v1936 = vmul.f32 %v1794, %v1846
          %v1937 = vmul.f32 %v1795, %v1847
          %v1938 = vadd.f32 %v1934, %v1936
          %v1939 = vadd.f32 %v1935, %v1937
          %v1940 = vmul.f32 %v1804, %v1852
          %v1941 = vmul.f32 %v1805, %v1853
          %v1942 = vadd.f32 %v1938, %v1940
          %v1943 = vadd.f32 %v1939, %v1941
          %v1944 = vmul.f32 %v1810, %v1858
          %v1945 = vmul.f32 %v1811, %v1859
          %v1946 = vadd.f32 %v1942, %v1944
          %v1947 = vadd.f32 %v1943, %v1945
          %v1948 = vmul.f32 %v1780, %v1846
          %v1949 = vmul.f32 %v1781, %v1847
          %v1950 = vmul.f32 %v1794, %v1852
          %v1951 = vmul.f32 %v1795, %v1853
          %v1952 = vadd.f32 %v1948, %v1950
          %v1953 = vadd.f32 %v1949, %v1951
          %v1954 = vmul.f32 %v1804, %v1858
          %v1955 = vmul.f32 %v1805, %v1859
          %v1956 = vadd.f32 %v1952, %v1954
          %v1957 = vadd.f32 %v1953, %v1955
          %v1958 = vmul.f32 %v1810, %v1864
          %v1959 = vmul.f32 %v1811, %v1865
          %v1960 = vadd.f32 %v1956, %v1958
          %v1961 = vadd.f32 %v1957, %v1959
          %v1962 = vmul.f32 %v1780, %v1852
          %v1963 = vmul.f32 %v1781, %v1853
          %v1964 = vmul.f32 %v1794, %v1858
          %v1965 = vmul.f32 %v1795, %v1859
          %v1966 = vadd.f32 %v1962, %v1964
          %v1967 = vadd.f32 %v1963, %v1965
          %v1968 = vmul.f32 %v1804, %v1864
          %v1969 = vmul.f32 %v1805, %v1865
          %v1970 = vadd.f32 %v1966, %v1968
          %v1971 = vadd.f32 %v1967, %v1969
          %v1972 = vmul.f32 %v1810, %v1870
          %v1973 = vmul.f32 %v1811, %v1871
          %v1974 = vadd.f32 %v1970, %v1972
          %v1975 = vadd.f32 %v1971, %v1973
          %v1976 = vmul.f32 %v1780, %v1858
          %v1977 = vmul.f32 %v1781, %v1859
          %v1978 = vmul.f32 %v1794, %v1864
          %v1979 = vmul.f32 %v1795, %v1865
          %v1980 = vadd.f32 %v1976, %v1978
          %v1981 = vadd.f32 %v1977, %v1979
          %v1982 = vmul.f32 %v1804, %v1870
          %v1983 = vmul.f32 %v1805, %v1871
          %v1984 = vadd.f32 %v1980, %v1982
          %v1985 = vadd.f32 %v1981, %v1983
          %v1986 = vmul.f32 %v1810, %v1876
          %v1987 = vmul.f32 %v1811, %v1877
          %v1988 = vadd.f32 %v1984, %v1986
          %v1989 = vadd.f32 %v1985, %v1987
          %v1990 = vsub.f32 0.0, %v1764
          %v1991 = vsub.f32 0.0, %v1765
          %v1992 = vmul.f32 %v1990, 1.442695
          %v1993 = vpow.pop %v1992
          %v1994 = vmul.f32 %v1991, 1.442695
          %v1995 = vpow.pop %v1994
          %v1996 = vadd.f32 %v1993, 1.0
          %v1997 = vadd.f32 %v1995, 1.0
          %v1998 = vrcp.pop %v1996
          %v1999 = vmul.f32 1.0, %v1998
          %v2000 = vrcp.pop %v1997
          %v2001 = vmul.f32 1.0, %v2000
          %v2002 = vmul.f32 %v1764, %v1999
          %v2003 = vmul.f32 %v1765, %v2001
          %v2004 = vpack.c.bf16 %v2003, %v2002
          %v2005 = vld [vmem:[#allocation8] sm:$0xf]
          %v2006 = vld [vmem:[#allocation8 + $0x24] sm:$0xf]
          %v2007 = vld [vmem:[#allocation8 + $0x48] sm:$0xf]
          %v2008 = vld [vmem:[#allocation8 + $0x6c] sm:$0xf]
          %v2009 = vld [vmem:[#allocation8 + $0x90] sm:$0xf]
          %v2010 = vld [vmem:[#allocation8 + $0xb4] sm:$0xf]
          %v2011 = vld [vmem:[#allocation8 + $0xd8] sm:$0xf]
          %v2012 = vld [vmem:[#allocation8 + $0xfc] sm:$0xf]
          %v2013 = vld [vmem:[#allocation8 + $0x120] sm:$0xf]
          %v2014 = vld [vmem:[#allocation8 + $0x144] sm:$0xf]
          %v2015 = vld [vmem:[#allocation8 + $0x168] sm:$0xf]
          %v2016 = vld [vmem:[#allocation8 + $0x18c] sm:$0xf]
          %v2017 = vld [vmem:[#allocation8 + $0x1b0] sm:$0xf]
          %v2018 = vld [vmem:[#allocation8 + $0x1d4] sm:$0xf]
          %v2019 = vld [vmem:[#allocation8 + $0x1f8] sm:$0xf]
          %v2020 = vld [vmem:[#allocation8 + $0x21c] sm:$0xf]
          %v2021 = vpack.c.bf16 %v1891, %v1890
          %v2022 = vld [vmem:[#allocation8 + $0x4] sm:$0xf]
          %v2023 = vld [vmem:[#allocation8 + $0x28] sm:$0xf]
          %v2024 = vld [vmem:[#allocation8 + $0x4c] sm:$0xf]
          %v2025 = vld [vmem:[#allocation8 + $0x70] sm:$0xf]
          %v2026 = vld [vmem:[#allocation8 + $0x94] sm:$0xf]
          %v2027 = vld [vmem:[#allocation8 + $0xb8] sm:$0xf]
          %v2028 = vld [vmem:[#allocation8 + $0xdc] sm:$0xf]
          %v2029 = vld [vmem:[#allocation8 + $0x100] sm:$0xf]
          %v2030 = vld [vmem:[#allocation8 + $0x124] sm:$0xf]
          %v2031 = vld [vmem:[#allocation8 + $0x148] sm:$0xf]
          %v2032 = vld [vmem:[#allocation8 + $0x16c] sm:$0xf]
          %v2033 = vld [vmem:[#allocation8 + $0x190] sm:$0xf]
          %v2034 = vld [vmem:[#allocation8 + $0x1b4] sm:$0xf]
          %v2035 = vld [vmem:[#allocation8 + $0x1d8] sm:$0xf]
          %v2036 = vld [vmem:[#allocation8 + $0x1fc] sm:$0xf]
          %v2037 = vld [vmem:[#allocation8 + $0x220] sm:$0xf]
          %v2054 = vunpack.c.l.b16 %v2022
          %v2055 = vunpack.c.l.b16 %v2023
          %v2056 = vunpack.c.l.b16 %v2024
          %v2057 = vunpack.c.l.b16 %v2025
          %v2058 = vunpack.c.l.b16 %v2026
          %v2059 = vunpack.c.l.b16 %v2027
          %v2060 = vunpack.c.l.b16 %v2028
          %v2061 = vunpack.c.l.b16 %v2029
          %v2062 = vunpack.c.l.b16 %v2030
          %v2063 = vunpack.c.l.b16 %v2031
          %v2064 = vunpack.c.l.b16 %v2032
          %v2065 = vunpack.c.l.b16 %v2033
          %v2066 = vunpack.c.l.b16 %v2034
          %v2067 = vunpack.c.l.b16 %v2035
          %v2068 = vunpack.c.l.b16 %v2036
          %v2069 = vunpack.c.l.b16 %v2037
          %v2070 = vpack.c.b16 %v2055, %v2054
          %v2071 = vpack.c.b16 %v2057, %v2056
          %v2072 = vpack.c.b16 %v2059, %v2058
          %v2073 = vpack.c.b16 %v2061, %v2060
          %v2074 = vpack.c.b16 %v2063, %v2062
          %v2075 = vpack.c.b16 %v2065, %v2064
          %v2076 = vpack.c.b16 %v2067, %v2066
          %v2077 = vpack.c.b16 %v2069, %v2068
          %2086 = vmatprep.subr.bf16.mxu0 0
          %2087 = vmatpush1.bf16.msra.mxu0 %v2070
          %2088 = vmatprep.subr.bf16.mxu0 0
          %2089 = vmatpush1.bf16.msra.mxu0 %v2071
          %2090 = vmatprep.subr.bf16.mxu0 0
          %2091 = vmatpush1.bf16.msra.mxu0 %v2072
          %2092 = vmatprep.subr.bf16.mxu0 0
          %2093 = vmatpush1.bf16.msra.mxu0 %v2073
          %2094 = vmatprep.subr.bf16.mxu0 0
          %2095 = vmatpush1.bf16.msra.mxu0 %v2074
          %2096 = vmatprep.subr.bf16.mxu0 0
          %2097 = vmatpush1.bf16.msra.mxu0 %v2075
          %2098 = vmatprep.subr.bf16.mxu0 0
          %2099 = vmatpush1.bf16.msra.mxu0 %v2076
          %2100 = vmatprep.subr.bf16.mxu0 0
          %2101 = vmatpush1.bf16.msra.mxu0 %v2077
          %2102 = vmatprep.subr.bf16.mxu0 0
          %2103 = vmatpush1.bf16.msra.mxu0 0
          %2104 = vmatprep.subr.bf16.mxu0 0
          %2105 = vmatpush1.bf16.msra.mxu0 0
          %2106 = vmatprep.subr.bf16.mxu0 0
          %2107 = vmatpush1.bf16.msra.mxu0 0
          %2108 = vmatprep.subr.bf16.mxu0 0
          %2109 = vmatpush1.bf16.msra.mxu0 0
          %2110 = vmatprep.subr.bf16.mxu0 0
          %2111 = vmatpush1.bf16.msra.mxu0 0
          %2112 = vmatprep.subr.bf16.mxu0 0
          %2113 = vmatpush1.bf16.msra.mxu0 0
          %2114 = vmatprep.subr.bf16.mxu0 0
          %2115 = vmatpush1.bf16.msra.mxu0 0
          %2116 = vmatprep.subr.bf16.mxu0 0
          %2117 = vmatpush1.bf16.msra.mxu0 0
          %2118 = vmatprep.mubr.bf16.mxu0 0
          %2119 = vmatmul.mubr.bf16.gmra.mrb[0].mxu0 %v2021
          %v2120 = vpop.f32.mrb[0].mxu0
          %v2121 = vadd.f32 0.0, %v2120
          %v2122 = vpop.f32.mrb[0].mxu0
          %v2123 = vpop.f32.mrb[0].mxu0
          %v2124 = vadd.f32 0.0, %v2123
          %v2125 = vpop.f32.mrb[0].mxu0
          %2126 = vdwg.mxu0
          %v2143 = vunpack.c.l.b16 %v2005
          %v2144 = vunpack.c.l.b16 %v2006
          %v2145 = vunpack.c.l.b16 %v2007
          %v2146 = vunpack.c.l.b16 %v2008
          %v2147 = vunpack.c.l.b16 %v2009
          %v2148 = vunpack.c.l.b16 %v2010
          %v2149 = vunpack.c.l.b16 %v2011
          %v2150 = vunpack.c.l.b16 %v2012
          %v2151 = vunpack.c.l.b16 %v2013
          %v2152 = vunpack.c.l.b16 %v2014
          %v2153 = vunpack.c.l.b16 %v2015
          %v2154 = vunpack.c.l.b16 %v2016
          %v2155 = vunpack.c.l.b16 %v2017
          %v2156 = vunpack.c.l.b16 %v2018
          %v2157 = vunpack.c.l.b16 %v2019
          %v2158 = vunpack.c.l.b16 %v2020
          %v2159 = vpack.c.b16 %v2144, %v2143
          %v2160 = vpack.c.b16 %v2146, %v2145
          %v2161 = vpack.c.b16 %v2148, %v2147
          %v2162 = vpack.c.b16 %v2150, %v2149
          %v2163 = vpack.c.b16 %v2152, %v2151
          %v2164 = vpack.c.b16 %v2154, %v2153
          %v2165 = vpack.c.b16 %v2156, %v2155
          %v2166 = vpack.c.b16 %v2158, %v2157
          %2175 = vmatprep.subr.bf16.mxu0 0
          %2176 = vmatpush1.bf16.msra.mxu0 %v2159
          %2177 = vmatprep.subr.bf16.mxu0 0
          %2178 = vmatpush1.bf16.msra.mxu0 %v2160
          %2179 = vmatprep.subr.bf16.mxu0 0
          %2180 = vmatpush1.bf16.msra.mxu0 %v2161
          %2181 = vmatprep.subr.bf16.mxu0 0
          %2182 = vmatpush1.bf16.msra.mxu0 %v2162
          %2183 = vmatprep.subr.bf16.mxu0 0
          %2184 = vmatpush1.bf16.msra.mxu0 %v2163
          %2185 = vmatprep.subr.bf16.mxu0 0
          %2186 = vmatpush1.bf16.msra.mxu0 %v2164
          %2187 = vmatprep.subr.bf16.mxu0 0
          %2188 = vmatpush1.bf16.msra.mxu0 %v2165
          %2189 = vmatprep.subr.bf16.mxu0 0
          %2190 = vmatpush1.bf16.msra.mxu0 %v2166
          %2191 = vmatprep.subr.bf16.mxu0 0
          %2192 = vmatpush1.bf16.msra.mxu0 0
          %2193 = vmatprep.subr.bf16.mxu0 0
          %2194 = vmatpush1.bf16.msra.mxu0 0
          %2195 = vmatprep.subr.bf16.mxu0 0
          %2196 = vmatpush1.bf16.msra.mxu0 0
          %2197 = vmatprep.subr.bf16.mxu0 0
          %2198 = vmatpush1.bf16.msra.mxu0 0
          %2199 = vmatprep.subr.bf16.mxu0 0
          %2200 = vmatpush1.bf16.msra.mxu0 0
          %2201 = vmatprep.subr.bf16.mxu0 0
          %2202 = vmatpush1.bf16.msra.mxu0 0
          %2203 = vmatprep.subr.bf16.mxu0 0
          %2204 = vmatpush1.bf16.msra.mxu0 0
          %2205 = vmatprep.subr.bf16.mxu0 0
          %2206 = vmatpush1.bf16.msra.mxu0 0
          %2207 = vmatprep.mubr.bf16.mxu0 0
          %2208 = vmatmul.mubr.bf16.gmra.mrb[0].mxu0 %v2004
          %v2209 = vpop.f32.mrb[0].mxu0
          %v2210 = vadd.f32 %v2121, %v2209
          %v2211 = vpop.f32.mrb[0].mxu0
          %v2212 = vpop.f32.mrb[0].mxu0
          %v2213 = vadd.f32 %v2124, %v2212
          %v2214 = vpop.f32.mrb[0].mxu0
          %2215 = vdwg.mxu0
          %v2216 = vpack.c.bf16 %v1905, %v1904
          %v2217 = vld [vmem:[#allocation8 + $0x8] sm:$0xf]
          %v2218 = vld [vmem:[#allocation8 + $0x2c] sm:$0xf]
          %v2219 = vld [vmem:[#allocation8 + $0x50] sm:$0xf]
          %v2220 = vld [vmem:[#allocation8 + $0x74] sm:$0xf]
          %v2221 = vld [vmem:[#allocation8 + $0x98] sm:$0xf]
          %v2222 = vld [vmem:[#allocation8 + $0xbc] sm:$0xf]
          %v2223 = vld [vmem:[#allocation8 + $0xe0] sm:$0xf]
          %v2224 = vld [vmem:[#allocation8 + $0x104] sm:$0xf]
          %v2225 = vld [vmem:[#allocation8 + $0x128] sm:$0xf]
          %v2226 = vld [vmem:[#allocation8 + $0x14c] sm:$0xf]
          %v2227 = vld [vmem:[#allocation8 + $0x170] sm:$0xf]
          %v2228 = vld [vmem:[#allocation8 + $0x194] sm:$0xf]
          %v2229 = vld [vmem:[#allocation8 + $0x1b8] sm:$0xf]
          %v2230 = vld [vmem:[#allocation8 + $0x1dc] sm:$0xf]
          %v2231 = vld [vmem:[#allocation8 + $0x200] sm:$0xf]
          %v2232 = vld [vmem:[#allocation8 + $0x224] sm:$0xf]
          %v2249 = vunpack.c.l.b16 %v2217
          %v2250 = vunpack.c.l.b16 %v2218
          %v2251 = vunpack.c.l.b16 %v2219
          %v2252 = vunpack.c.l.b16 %v2220
          %v2253 = vunpack.c.l.b16 %v2221
          %v2254 = vunpack.c.l.b16 %v2222
          %v2255 = vunpack.c.l.b16 %v2223
          %v2256 = vunpack.c.l.b16 %v2224
          %v2257 = vunpack.c.l.b16 %v2225
          %v2258 = vunpack.c.l.b16 %v2226
          %v2259 = vunpack.c.l.b16 %v2227
          %v2260 = vunpack.c.l.b16 %v2228
          %v2261 = vunpack.c.l.b16 %v2229
          %v2262 = vunpack.c.l.b16 %v2230
          %v2263 = vunpack.c.l.b16 %v2231
          %v2264 = vunpack.c.l.b16 %v2232
          %v2265 = vpack.c.b16 %v2250, %v2249
          %v2266 = vpack.c.b16 %v2252, %v2251
          %v2267 = vpack.c.b16 %v2254, %v2253
          %v2268 = vpack.c.b16 %v2256, %v2255
          %v2269 = vpack.c.b16 %v2258, %v2257
          %v2270 = vpack.c.b16 %v2260, %v2259
          %v2271 = vpack.c.b16 %v2262, %v2261
          %v2272 = vpack.c.b16 %v2264, %v2263
          %2281 = vmatprep.subr.bf16.mxu0 0
          %2282 = vmatpush1.bf16.msra.mxu0 %v2265
          %2283 = vmatprep.subr.bf16.mxu0 0
          %2284 = vmatpush1.bf16.msra.mxu0 %v2266
          %2285 = vmatprep.subr.bf16.mxu0 0
          %2286 = vmatpush1.bf16.msra.mxu0 %v2267
          %2287 = vmatprep.subr.bf16.mxu0 0
          %2288 = vmatpush1.bf16.msra.mxu0 %v2268
          %2289 = vmatprep.subr.bf16.mxu0 0
          %2290 = vmatpush1.bf16.msra.mxu0 %v2269
          %2291 = vmatprep.subr.bf16.mxu0 0
          %2292 = vmatpush1.bf16.msra.mxu0 %v2270
          %2293 = vmatprep.subr.bf16.mxu0 0
          %2294 = vmatpush1.bf16.msra.mxu0 %v2271
          %2295 = vmatprep.subr.bf16.mxu0 0
          %2296 = vmatpush1.bf16.msra.mxu0 %v2272
          %2297 = vmatprep.subr.bf16.mxu0 0
          %2298 = vmatpush1.bf16.msra.mxu0 0
          %2299 = vmatprep.subr.bf16.mxu0 0
          %2300 = vmatpush1.bf16.msra.mxu0 0
          %2301 = vmatprep.subr.bf16.mxu0 0
          %2302 = vmatpush1.bf16.msra.mxu0 0
          %2303 = vmatprep.subr.bf16.mxu0 0
          %2304 = vmatpush1.bf16.msra.mxu0 0
          %2305 = vmatprep.subr.bf16.mxu0 0
          %2306 = vmatpush1.bf16.msra.mxu0 0
          %2307 = vmatprep.subr.bf16.mxu0 0
          %2308 = vmatpush1.bf16.msra.mxu0 0
          %2309 = vmatprep.subr.bf16.mxu0 0
          %2310 = vmatpush1.bf16.msra.mxu0 0
          %2311 = vmatprep.subr.bf16.mxu0 0
          %2312 = vmatpush1.bf16.msra.mxu0 0
          %2313 = vmatprep.mubr.bf16.mxu0 0
          %2314 = vmatmul.mubr.bf16.gmra.mrb[0].mxu0 %v2216
          %v2315 = vpop.f32.mrb[0].mxu0
          %v2316 = vadd.f32 0.0, %v2315
          %v2317 = vpop.f32.mrb[0].mxu0
          %v2318 = vpop.f32.mrb[0].mxu0
          %v2319 = vadd.f32 0.0, %v2318
          %v2320 = vpop.f32.mrb[0].mxu0
          %2321 = vdwg.mxu0
          %v2322 = vadd.f32 %v2210, %v2316
          %v2323 = vadd.f32 %v2213, %v2319
          %v2324 = vpack.c.bf16 %v1919, %v1918
          %v2325 = vld [vmem:[#allocation8 + $0xc] sm:$0xf]
          %v2326 = vld [vmem:[#allocation8 + $0x30] sm:$0xf]
          %v2327 = vld [vmem:[#allocation8 + $0x54] sm:$0xf]
          %v2328 = vld [vmem:[#allocation8 + $0x78] sm:$0xf]
          %v2329 = vld [vmem:[#allocation8 + $0x9c] sm:$0xf]
          %v2330 = vld [vmem:[#allocation8 + $0xc0] sm:$0xf]
          %v2331 = vld [vmem:[#allocation8 + $0xe4] sm:$0xf]
          %v2332 = vld [vmem:[#allocation8 + $0x108] sm:$0xf]
          %v2333 = vld [vmem:[#allocation8 + $0x12c] sm:$0xf]
          %v2334 = vld [vmem:[#allocation8 + $0x150] sm:$0xf]
          %v2335 = vld [vmem:[#allocation8 + $0x174] sm:$0xf]
          %v2336 = vld [vmem:[#allocation8 + $0x198] sm:$0xf]
          %v2337 = vld [vmem:[#allocation8 + $0x1bc] sm:$0xf]
          %v2338 = vld [vmem:[#allocation8 + $0x1e0] sm:$0xf]
          %v2339 = vld [vmem:[#allocation8 + $0x204] sm:$0xf]
          %v2340 = vld [vmem:[#allocation8 + $0x228] sm:$0xf]
          %v2357 = vunpack.c.l.b16 %v2325
          %v2358 = vunpack.c.l.b16 %v2326
          %v2359 = vunpack.c.l.b16 %v2327
          %v2360 = vunpack.c.l.b16 %v2328
          %v2361 = vunpack.c.l.b16 %v2329
          %v2362 = vunpack.c.l.b16 %v2330
          %v2363 = vunpack.c.l.b16 %v2331
          %v2364 = vunpack.c.l.b16 %v2332
          %v2365 = vunpack.c.l.b16 %v2333
          %v2366 = vunpack.c.l.b16 %v2334
          %v2367 = vunpack.c.l.b16 %v2335
          %v2368 = vunpack.c.l.b16 %v2336
          %v2369 = vunpack.c.l.b16 %v2337
          %v2370 = vunpack.c.l.b16 %v2338
          %v2371 = vunpack.c.l.b16 %v2339
          %v2372 = vunpack.c.l.b16 %v2340
          %v2373 = vpack.c.b16 %v2358, %v2357
          %v2374 = vpack.c.b16 %v2360, %v2359
          %v2375 = vpack.c.b16 %v2362, %v2361
          %v2376 = vpack.c.b16 %v2364, %v2363
          %v2377 = vpack.c.b16 %v2366, %v2365
          %v2378 = vpack.c.b16 %v2368, %v2367
          %v2379 = vpack.c.b16 %v2370, %v2369
          %v2380 = vpack.c.b16 %v2372, %v2371
          %2389 = vmatprep.subr.bf16.mxu0 0
          %2390 = vmatpush1.bf16.msra.mxu0 %v2373
          %2391 = vmatprep.subr.bf16.mxu0 0
          %2392 = vmatpush1.bf16.msra.mxu0 %v2374
          %2393 = vmatprep.subr.bf16.mxu0 0
          %2394 = vmatpush1.bf16.msra.mxu0 %v2375
          %2395 = vmatprep.subr.bf16.mxu0 0
          %2396 = vmatpush1.bf16.msra.mxu0 %v2376
          %2397 = vmatprep.subr.bf16.mxu0 0
          %2398 = vmatpush1.bf16.msra.mxu0 %v2377
          %2399 = vmatprep.subr.bf16.mxu0 0
          %2400 = vmatpush1.bf16.msra.mxu0 %v2378
          %2401 = vmatprep.subr.bf16.mxu0 0
          %2402 = vmatpush1.bf16.msra.mxu0 %v2379
          %2403 = vmatprep.subr.bf16.mxu0 0
          %2404 = vmatpush1.bf16.msra.mxu0 %v2380
          %2405 = vmatprep.subr.bf16.mxu0 0
          %2406 = vmatpush1.bf16.msra.mxu0 0
          %2407 = vmatprep.subr.bf16.mxu0 0
          %2408 = vmatpush1.bf16.msra.mxu0 0
          %2409 = vmatprep.subr.bf16.mxu0 0
          %2410 = vmatpush1.bf16.msra.mxu0 0
          %2411 = vmatprep.subr.bf16.mxu0 0
          %2412 = vmatpush1.bf16.msra.mxu0 0
          %2413 = vmatprep.subr.bf16.mxu0 0
          %2414 = vmatpush1.bf16.msra.mxu0 0
          %2415 = vmatprep.subr.bf16.mxu0 0
          %2416 = vmatpush1.bf16.msra.mxu0 0
          %2417 = vmatprep.subr.bf16.mxu0 0
          %2418 = vmatpush1.bf16.msra.mxu0 0
          %2419 = vmatprep.subr.bf16.mxu0 0
          %2420 = vmatpush1.bf16.msra.mxu0 0
          %2421 = vmatprep.mubr.bf16.mxu0 0
          %2422 = vmatmul.mubr.bf16.gmra.mrb[0].mxu0 %v2324
          %v2423 = vpop.f32.mrb[0].mxu0
          %v2424 = vadd.f32 0.0, %v2423
          %v2425 = vpop.f32.mrb[0].mxu0
          %v2426 = vpop.f32.mrb[0].mxu0
          %v2427 = vadd.f32 0.0, %v2426
          %v2428 = vpop.f32.mrb[0].mxu0
          %2429 = vdwg.mxu0
          %v2430 = vadd.f32 %v2322, %v2424
          %v2431 = vadd.f32 %v2323, %v2427
          %v2432 = vpack.c.bf16 %v1933, %v1932
          %v2433 = vld [vmem:[#allocation8 + $0x10] sm:$0xf]
          %v2434 = vld [vmem:[#allocation8 + $0x34] sm:$0xf]
          %v2435 = vld [vmem:[#allocation8 + $0x58] sm:$0xf]
          %v2436 = vld [vmem:[#allocation8 + $0x7c] sm:$0xf]
          %v2437 = vld [vmem:[#allocation8 + $0xa0] sm:$0xf]
          %v2438 = vld [vmem:[#allocation8 + $0xc4] sm:$0xf]
          %v2439 = vld [vmem:[#allocation8 + $0xe8] sm:$0xf]
          %v2440 = vld [vmem:[#allocation8 + $0x10c] sm:$0xf]
          %v2441 = vld [vmem:[#allocation8 + $0x130] sm:$0xf]
          %v2442 = vld [vmem:[#allocation8 + $0x154] sm:$0xf]
          %v2443 = vld [vmem:[#allocation8 + $0x178] sm:$0xf]
          %v2444 = vld [vmem:[#allocation8 + $0x19c] sm:$0xf]
          %v2445 = vld [vmem:[#allocation8 + $0x1c0] sm:$0xf]
          %v2446 = vld [vmem:[#allocation8 + $0x1e4] sm:$0xf]
          %v2447 = vld [vmem:[#allocation8 + $0x208] sm:$0xf]
          %v2448 = vld [vmem:[#allocation8 + $0x22c] sm:$0xf]
          %v2465 = vunpack.c.l.b16 %v2433
          %v2466 = vunpack.c.l.b16 %v2434
          %v2467 = vunpack.c.l.b16 %v2435
          %v2468 = vunpack.c.l.b16 %v2436
          %v2469 = vunpack.c.l.b16 %v2437
          %v2470 = vunpack.c.l.b16 %v2438
          %v2471 = vunpack.c.l.b16 %v2439
          %v2472 = vunpack.c.l.b16 %v2440
          %v2473 = vunpack.c.l.b16 %v2441
          %v2474 = vunpack.c.l.b16 %v2442
          %v2475 = vunpack.c.l.b16 %v2443
          %v2476 = vunpack.c.l.b16 %v2444
          %v2477 = vunpack.c.l.b16 %v2445
          %v2478 = vunpack.c.l.b16 %v2446
          %v2479 = vunpack.c.l.b16 %v2447
          %v2480 = vunpack.c.l.b16 %v2448
          %v2481 = vpack.c.b16 %v2466, %v2465
          %v2482 = vpack.c.b16 %v2468, %v2467
          %v2483 = vpack.c.b16 %v2470, %v2469
          %v2484 = vpack.c.b16 %v2472, %v2471
          %v2485 = vpack.c.b16 %v2474, %v2473
          %v2486 = vpack.c.b16 %v2476, %v2475
          %v2487 = vpack.c.b16 %v2478, %v2477
          %v2488 = vpack.c.b16 %v2480, %v2479
          %2497 = vmatprep.subr.bf16.mxu0 0
          %2498 = vmatpush1.bf16.msra.mxu0 %v2481
          %2499 = vmatprep.subr.bf16.mxu0 0
          %2500 = vmatpush1.bf16.msra.mxu0 %v2482
          %2501 = vmatprep.subr.bf16.mxu0 0
          %2502 = vmatpush1.bf16.msra.mxu0 %v2483
          %2503 = vmatprep.subr.bf16.mxu0 0
          %2504 = vmatpush1.bf16.msra.mxu0 %v2484
          %2505 = vmatprep.subr.bf16.mxu0 0
          %2506 = vmatpush1.bf16.msra.mxu0 %v2485
          %2507 = vmatprep.subr.bf16.mxu0 0
          %2508 = vmatpush1.bf16.msra.mxu0 %v2486
          %2509 = vmatprep.subr.bf16.mxu0 0
          %2510 = vmatpush1.bf16.msra.mxu0 %v2487
          %2511 = vmatprep.subr.bf16.mxu0 0
          %2512 = vmatpush1.bf16.msra.mxu0 %v2488
          %2513 = vmatprep.subr.bf16.mxu0 0
          %2514 = vmatpush1.bf16.msra.mxu0 0
          %2515 = vmatprep.subr.bf16.mxu0 0
          %2516 = vmatpush1.bf16.msra.mxu0 0
          %2517 = vmatprep.subr.bf16.mxu0 0
          %2518 = vmatpush1.bf16.msra.mxu0 0
          %2519 = vmatprep.subr.bf16.mxu0 0
          %2520 = vmatpush1.bf16.msra.mxu0 0
          %2521 = vmatprep.subr.bf16.mxu0 0
          %2522 = vmatpush1.bf16.msra.mxu0 0
          %2523 = vmatprep.subr.bf16.mxu0 0
          %2524 = vmatpush1.bf16.msra.mxu0 0
          %2525 = vmatprep.subr.bf16.mxu0 0
          %2526 = vmatpush1.bf16.msra.mxu0 0
          %2527 = vmatprep.subr.bf16.mxu0 0
          %2528 = vmatpush1.bf16.msra.mxu0 0
          %2529 = vmatprep.mubr.bf16.mxu0 0
          %2530 = vmatmul.mubr.bf16.gmra.mrb[0].mxu0 %v2432
          %v2531 = vpop.f32.mrb[0].mxu0
          %v2532 = vadd.f32 0.0, %v2531
          %v2533 = vpop.f32.mrb[0].mxu0
          %v2534 = vpop.f32.mrb[0].mxu0
          %v2535 = vadd.f32 0.0, %v2534
          %v2536 = vpop.f32.mrb[0].mxu0
          %2537 = vdwg.mxu0
          %v2538 = vadd.f32 %v2430, %v2532
          %v2539 = vadd.f32 %v2431, %v2535
          %v2540 = vpack.c.bf16 %v1947, %v1946
          %v2541 = vld [vmem:[#allocation8 + $0x14] sm:$0xf]
          %v2542 = vld [vmem:[#allocation8 + $0x38] sm:$0xf]
          %v2543 = vld [vmem:[#allocation8 + $0x5c] sm:$0xf]
          %v2544 = vld [vmem:[#allocation8 + $0x80] sm:$0xf]
          %v2545 = vld [vmem:[#allocation8 + $0xa4] sm:$0xf]
          %v2546 = vld [vmem:[#allocation8 + $0xc8] sm:$0xf]
          %v2547 = vld [vmem:[#allocation8 + $0xec] sm:$0xf]
          %v2548 = vld [vmem:[#allocation8 + $0x110] sm:$0xf]
          %v2549 = vld [vmem:[#allocation8 + $0x134] sm:$0xf]
          %v2550 = vld [vmem:[#allocation8 + $0x158] sm:$0xf]
          %v2551 = vld [vmem:[#allocation8 + $0x17c] sm:$0xf]
          %v2552 = vld [vmem:[#allocation8 + $0x1a0] sm:$0xf]
          %v2553 = vld [vmem:[#allocation8 + $0x1c4] sm:$0xf]
          %v2554 = vld [vmem:[#allocation8 + $0x1e8] sm:$0xf]
          %v2555 = vld [vmem:[#allocation8 + $0x20c] sm:$0xf]
          %v2556 = vld [vmem:[#allocation8 + $0x230] sm:$0xf]
          %v2573 = vunpack.c.l.b16 %v2541
          %v2574 = vunpack.c.l.b16 %v2542
          %v2575 = vunpack.c.l.b16 %v2543
          %v2576 = vunpack.c.l.b16 %v2544
          %v2577 = vunpack.c.l.b16 %v2545
          %v2578 = vunpack.c.l.b16 %v2546
          %v2579 = vunpack.c.l.b16 %v2547
          %v2580 = vunpack.c.l.b16 %v2548
          %v2581 = vunpack.c.l.b16 %v2549
          %v2582 = vunpack.c.l.b16 %v2550
          %v2583 = vunpack.c.l.b16 %v2551
          %v2584 = vunpack.c.l.b16 %v2552
          %v2585 = vunpack.c.l.b16 %v2553
          %v2586 = vunpack.c.l.b16 %v2554
          %v2587 = vunpack.c.l.b16 %v2555
          %v2588 = vunpack.c.l.b16 %v2556
          %v2589 = vpack.c.b16 %v2574, %v2573
          %v2590 = vpack.c.b16 %v2576, %v2575
          %v2591 = vpack.c.b16 %v2578, %v2577
          %v2592 = vpack.c.b16 %v2580, %v2579
          %v2593 = vpack.c.b16 %v2582, %v2581
          %v2594 = vpack.c.b16 %v2584, %v2583
          %v2595 = vpack.c.b16 %v2586, %v2585
          %v2596 = vpack.c.b16 %v2588, %v2587
          %2605 = vmatprep.subr.bf16.mxu0 0
          %2606 = vmatpush1.bf16.msra.mxu0 %v2589
          %2607 = vmatprep.subr.bf16.mxu0 0
          %2608 = vmatpush1.bf16.msra.mxu0 %v2590
          %2609 = vmatprep.subr.bf16.mxu0 0
          %2610 = vmatpush1.bf16.msra.mxu0 %v2591
          %2611 = vmatprep.subr.bf16.mxu0 0
          %2612 = vmatpush1.bf16.msra.mxu0 %v2592
          %2613 = vmatprep.subr.bf16.mxu0 0
          %2614 = vmatpush1.bf16.msra.mxu0 %v2593
          %2615 = vmatprep.subr.bf16.mxu0 0
          %2616 = vmatpush1.bf16.msra.mxu0 %v2594
          %2617 = vmatprep.subr.bf16.mxu0 0
          %2618 = vmatpush1.bf16.msra.mxu0 %v2595
          %2619 = vmatprep.subr.bf16.mxu0 0
          %2620 = vmatpush1.bf16.msra.mxu0 %v2596
          %2621 = vmatprep.subr.bf16.mxu0 0
          %2622 = vmatpush1.bf16.msra.mxu0 0
          %2623 = vmatprep.subr.bf16.mxu0 0
          %2624 = vmatpush1.bf16.msra.mxu0 0
          %2625 = vmatprep.subr.bf16.mxu0 0
          %2626 = vmatpush1.bf16.msra.mxu0 0
          %2627 = vmatprep.subr.bf16.mxu0 0
          %2628 = vmatpush1.bf16.msra.mxu0 0
          %2629 = vmatprep.subr.bf16.mxu0 0
          %2630 = vmatpush1.bf16.msra.mxu0 0
          %2631 = vmatprep.subr.bf16.mxu0 0
          %2632 = vmatpush1.bf16.msra.mxu0 0
          %2633 = vmatprep.subr.bf16.mxu0 0
          %2634 = vmatpush1.bf16.msra.mxu0 0
          %2635 = vmatprep.subr.bf16.mxu0 0
          %2636 = vmatpush1.bf16.msra.mxu0 0
          %2637 = vmatprep.mubr.bf16.mxu0 0
          %2638 = vmatmul.mubr.bf16.gmra.mrb[0].mxu0 %v2540
          %v2639 = vpop.f32.mrb[0].mxu0
          %v2640 = vadd.f32 0.0, %v2639
          %v2641 = vpop.f32.mrb[0].mxu0
          %v2642 = vpop.f32.mrb[0].mxu0
          %v2643 = vadd.f32 0.0, %v2642
          %v2644 = vpop.f32.mrb[0].mxu0
          %2645 = vdwg.mxu0
          %v2646 = vadd.f32 %v2538, %v2640
          %v2647 = vadd.f32 %v2539, %v2643
          %v2648 = vpack.c.bf16 %v1961, %v1960
          %v2649 = vld [vmem:[#allocation8 + $0x18] sm:$0xf]
          %v2650 = vld [vmem:[#allocation8 + $0x3c] sm:$0xf]
          %v2651 = vld [vmem:[#allocation8 + $0x60] sm:$0xf]
          %v2652 = vld [vmem:[#allocation8 + $0x84] sm:$0xf]
          %v2653 = vld [vmem:[#allocation8 + $0xa8] sm:$0xf]
          %v2654 = vld [vmem:[#allocation8 + $0xcc] sm:$0xf]
          %v2655 = vld [vmem:[#allocation8 + $0xf0] sm:$0xf]
          %v2656 = vld [vmem:[#allocation8 + $0x114] sm:$0xf]
          %v2657 = vld [vmem:[#allocation8 + $0x138] sm:$0xf]
          %v2658 = vld [vmem:[#allocation8 + $0x15c] sm:$0xf]
          %v2659 = vld [vmem:[#allocation8 + $0x180] sm:$0xf]
          %v2660 = vld [vmem:[#allocation8 + $0x1a4] sm:$0xf]
          %v2661 = vld [vmem:[#allocation8 + $0x1c8] sm:$0xf]
          %v2662 = vld [vmem:[#allocation8 + $0x1ec] sm:$0xf]
          %v2663 = vld [vmem:[#allocation8 + $0x210] sm:$0xf]
          %v2664 = vld [vmem:[#allocation8 + $0x234] sm:$0xf]
          %v2681 = vunpack.c.l.b16 %v2649
          %v2682 = vunpack.c.l.b16 %v2650
          %v2683 = vunpack.c.l.b16 %v2651
          %v2684 = vunpack.c.l.b16 %v2652
          %v2685 = vunpack.c.l.b16 %v2653
          %v2686 = vunpack.c.l.b16 %v2654
          %v2687 = vunpack.c.l.b16 %v2655
          %v2688 = vunpack.c.l.b16 %v2656
          %v2689 = vunpack.c.l.b16 %v2657
          %v2690 = vunpack.c.l.b16 %v2658
          %v2691 = vunpack.c.l.b16 %v2659
          %v2692 = vunpack.c.l.b16 %v2660
          %v2693 = vunpack.c.l.b16 %v2661
          %v2694 = vunpack.c.l.b16 %v2662
          %v2695 = vunpack.c.l.b16 %v2663
          %v2696 = vunpack.c.l.b16 %v2664
          %v2697 = vpack.c.b16 %v2682, %v2681
          %v2698 = vpack.c.b16 %v2684, %v2683
          %v2699 = vpack.c.b16 %v2686, %v2685
          %v2700 = vpack.c.b16 %v2688, %v2687
          %v2701 = vpack.c.b16 %v2690, %v2689
          %v2702 = vpack.c.b16 %v2692, %v2691
          %v2703 = vpack.c.b16 %v2694, %v2693
          %v2704 = vpack.c.b16 %v2696, %v2695
          %2713 = vmatprep.subr.bf16.mxu0 0
          %2714 = vmatpush1.bf16.msra.mxu0 %v2697
          %2715 = vmatprep.subr.bf16.mxu0 0
          %2716 = vmatpush1.bf16.msra.mxu0 %v2698
          %2717 = vmatprep.subr.bf16.mxu0 0
          %2718 = vmatpush1.bf16.msra.mxu0 %v2699
          %2719 = vmatprep.subr.bf16.mxu0 0
          %2720 = vmatpush1.bf16.msra.mxu0 %v2700
          %2721 = vmatprep.subr.bf16.mxu0 0
          %2722 = vmatpush1.bf16.msra.mxu0 %v2701
          %2723 = vmatprep.subr.bf16.mxu0 0
          %2724 = vmatpush1.bf16.msra.mxu0 %v2702
          %2725 = vmatprep.subr.bf16.mxu0 0
          %2726 = vmatpush1.bf16.msra.mxu0 %v2703
          %2727 = vmatprep.subr.bf16.mxu0 0
          %2728 = vmatpush1.bf16.msra.mxu0 %v2704
          %2729 = vmatprep.subr.bf16.mxu0 0
          %2730 = vmatpush1.bf16.msra.mxu0 0
          %2731 = vmatprep.subr.bf16.mxu0 0
          %2732 = vmatpush1.bf16.msra.mxu0 0
          %2733 = vmatprep.subr.bf16.mxu0 0
          %2734 = vmatpush1.bf16.msra.mxu0 0
          %2735 = vmatprep.subr.bf16.mxu0 0
          %2736 = vmatpush1.bf16.msra.mxu0 0
          %2737 = vmatprep.subr.bf16.mxu0 0
          %2738 = vmatpush1.bf16.msra.mxu0 0
          %2739 = vmatprep.subr.bf16.mxu0 0
          %2740 = vmatpush1.bf16.msra.mxu0 0
          %2741 = vmatprep.subr.bf16.mxu0 0
          %2742 = vmatpush1.bf16.msra.mxu0 0
          %2743 = vmatprep.subr.bf16.mxu0 0
          %2744 = vmatpush1.bf16.msra.mxu0 0
          %2745 = vmatprep.mubr.bf16.mxu0 0
          %2746 = vmatmul.mubr.bf16.gmra.mrb[0].mxu0 %v2648
          %v2747 = vpop.f32.mrb[0].mxu0
          %v2748 = vadd.f32 0.0, %v2747
          %v2749 = vpop.f32.mrb[0].mxu0
          %v2750 = vpop.f32.mrb[0].mxu0
          %v2751 = vadd.f32 0.0, %v2750
          %v2752 = vpop.f32.mrb[0].mxu0
          %2753 = vdwg.mxu0
          %v2754 = vadd.f32 %v2646, %v2748
          %v2755 = vadd.f32 %v2647, %v2751
          %v2756 = vpack.c.bf16 %v1975, %v1974
          %v2757 = vld [vmem:[#allocation8 + $0x1c] sm:$0xf]
          %v2758 = vld [vmem:[#allocation8 + $0x40] sm:$0xf]
          %v2759 = vld [vmem:[#allocation8 + $0x64] sm:$0xf]
          %v2760 = vld [vmem:[#allocation8 + $0x88] sm:$0xf]
          %v2761 = vld [vmem:[#allocation8 + $0xac] sm:$0xf]
          %v2762 = vld [vmem:[#allocation8 + $0xd0] sm:$0xf]
          %v2763 = vld [vmem:[#allocation8 + $0xf4] sm:$0xf]
          %v2764 = vld [vmem:[#allocation8 + $0x118] sm:$0xf]
          %v2765 = vld [vmem:[#allocation8 + $0x13c] sm:$0xf]
          %v2766 = vld [vmem:[#allocation8 + $0x160] sm:$0xf]
          %v2767 = vld [vmem:[#allocation8 + $0x184] sm:$0xf]
          %v2768 = vld [vmem:[#allocation8 + $0x1a8] sm:$0xf]
          %v2769 = vld [vmem:[#allocation8 + $0x1cc] sm:$0xf]
          %v2770 = vld [vmem:[#allocation8 + $0x1f0] sm:$0xf]
          %v2771 = vld [vmem:[#allocation8 + $0x214] sm:$0xf]
          %v2772 = vld [vmem:[#allocation8 + $0x238] sm:$0xf]
          %v2789 = vunpack.c.l.b16 %v2757
          %v2790 = vunpack.c.l.b16 %v2758
          %v2791 = vunpack.c.l.b16 %v2759
          %v2792 = vunpack.c.l.b16 %v2760
          %v2793 = vunpack.c.l.b16 %v2761
          %v2794 = vunpack.c.l.b16 %v2762
          %v2795 = vunpack.c.l.b16 %v2763
          %v2796 = vunpack.c.l.b16 %v2764
          %v2797 = vunpack.c.l.b16 %v2765
          %v2798 = vunpack.c.l.b16 %v2766
          %v2799 = vunpack.c.l.b16 %v2767
          %v2800 = vunpack.c.l.b16 %v2768
          %v2801 = vunpack.c.l.b16 %v2769
          %v2802 = vunpack.c.l.b16 %v2770
          %v2803 = vunpack.c.l.b16 %v2771
          %v2804 = vunpack.c.l.b16 %v2772
          %v2805 = vpack.c.b16 %v2790, %v2789
          %v2806 = vpack.c.b16 %v2792, %v2791
          %v2807 = vpack.c.b16 %v2794, %v2793
          %v2808 = vpack.c.b16 %v2796, %v2795
          %v2809 = vpack.c.b16 %v2798, %v2797
          %v2810 = vpack.c.b16 %v2800, %v2799
          %v2811 = vpack.c.b16 %v2802, %v2801
          %v2812 = vpack.c.b16 %v2804, %v2803
          %2821 = vmatprep.subr.bf16.mxu0 0
          %2822 = vmatpush1.bf16.msra.mxu0 %v2805
          %2823 = vmatprep.subr.bf16.mxu0 0
          %2824 = vmatpush1.bf16.msra.mxu0 %v2806
          %2825 = vmatprep.subr.bf16.mxu0 0
          %2826 = vmatpush1.bf16.msra.mxu0 %v2807
          %2827 = vmatprep.subr.bf16.mxu0 0
          %2828 = vmatpush1.bf16.msra.mxu0 %v2808
          %2829 = vmatprep.subr.bf16.mxu0 0
          %2830 = vmatpush1.bf16.msra.mxu0 %v2809
          %2831 = vmatprep.subr.bf16.mxu0 0
          %2832 = vmatpush1.bf16.msra.mxu0 %v2810
          %2833 = vmatprep.subr.bf16.mxu0 0
          %2834 = vmatpush1.bf16.msra.mxu0 %v2811
          %2835 = vmatprep.subr.bf16.mxu0 0
          %2836 = vmatpush1.bf16.msra.mxu0 %v2812
          %2837 = vmatprep.subr.bf16.mxu0 0
          %2838 = vmatpush1.bf16.msra.mxu0 0
          %2839 = vmatprep.subr.bf16.mxu0 0
          %2840 = vmatpush1.bf16.msra.mxu0 0
          %2841 = vmatprep.subr.bf16.mxu0 0
          %2842 = vmatpush1.bf16.msra.mxu0 0
          %2843 = vmatprep.subr.bf16.mxu0 0
          %2844 = vmatpush1.bf16.msra.mxu0 0
          %2845 = vmatprep.subr.bf16.mxu0 0
          %2846 = vmatpush1.bf16.msra.mxu0 0
          %2847 = vmatprep.subr.bf16.mxu0 0
          %2848 = vmatpush1.bf16.msra.mxu0 0
          %2849 = vmatprep.subr.bf16.mxu0 0
          %2850 = vmatpush1.bf16.msra.mxu0 0
          %2851 = vmatprep.subr.bf16.mxu0 0
          %2852 = vmatpush1.bf16.msra.mxu0 0
          %2853 = vmatprep.mubr.bf16.mxu0 0
          %2854 = vmatmul.mubr.bf16.gmra.mrb[0].mxu0 %v2756
          %v2855 = vpop.f32.mrb[0].mxu0
          %v2856 = vadd.f32 0.0, %v2855
          %v2857 = vpop.f32.mrb[0].mxu0
          %v2858 = vpop.f32.mrb[0].mxu0
          %v2859 = vadd.f32 0.0, %v2858
          %v2860 = vpop.f32.mrb[0].mxu0
          %2861 = vdwg.mxu0
          %v2862 = vadd.f32 %v2754, %v2856
          %v2863 = vadd.f32 %v2755, %v2859
          %v2864 = vpack.c.bf16 %v1989, %v1988
          %v2865 = vld [vmem:[#allocation8 + $0x20] sm:$0xf]
          %v2866 = vld [vmem:[#allocation8 + $0x44] sm:$0xf]
          %v2867 = vld [vmem:[#allocation8 + $0x68] sm:$0xf]
          %v2868 = vld [vmem:[#allocation8 + $0x8c] sm:$0xf]
          %v2869 = vld [vmem:[#allocation8 + $0xb0] sm:$0xf]
          %v2870 = vld [vmem:[#allocation8 + $0xd4] sm:$0xf]
          %v2871 = vld [vmem:[#allocation8 + $0xf8] sm:$0xf]
          %v2872 = vld [vmem:[#allocation8 + $0x11c] sm:$0xf]
          %v2873 = vld [vmem:[#allocation8 + $0x140] sm:$0xf]
          %v2874 = vld [vmem:[#allocation8 + $0x164] sm:$0xf]
          %v2875 = vld [vmem:[#allocation8 + $0x188] sm:$0xf]
          %v2876 = vld [vmem:[#allocation8 + $0x1ac] sm:$0xf]
          %v2877 = vld [vmem:[#allocation8 + $0x1d0] sm:$0xf]
          %v2878 = vld [vmem:[#allocation8 + $0x1f4] sm:$0xf]
          %v2879 = vld [vmem:[#allocation8 + $0x218] sm:$0xf]
          %v2880 = vld [vmem:[#allocation8 + $0x23c] sm:$0xf]
          %v2897 = vunpack.c.l.b16 %v2865
          %v2898 = vunpack.c.l.b16 %v2866
          %v2899 = vunpack.c.l.b16 %v2867
          %v2900 = vunpack.c.l.b16 %v2868
          %v2901 = vunpack.c.l.b16 %v2869
          %v2902 = vunpack.c.l.b16 %v2870
          %v2903 = vunpack.c.l.b16 %v2871
          %v2904 = vunpack.c.l.b16 %v2872
          %v2905 = vunpack.c.l.b16 %v2873
          %v2906 = vunpack.c.l.b16 %v2874
          %v2907 = vunpack.c.l.b16 %v2875
          %v2908 = vunpack.c.l.b16 %v2876
          %v2909 = vunpack.c.l.b16 %v2877
          %v2910 = vunpack.c.l.b16 %v2878
          %v2911 = vunpack.c.l.b16 %v2879
          %v2912 = vunpack.c.l.b16 %v2880
          %v2913 = vpack.c.b16 %v2898, %v2897
          %v2914 = vpack.c.b16 %v2900, %v2899
          %v2915 = vpack.c.b16 %v2902, %v2901
          %v2916 = vpack.c.b16 %v2904, %v2903
          %v2917 = vpack.c.b16 %v2906, %v2905
          %v2918 = vpack.c.b16 %v2908, %v2907
          %v2919 = vpack.c.b16 %v2910, %v2909
          %v2920 = vpack.c.b16 %v2912, %v2911
          %2929 = vmatprep.subr.bf16.mxu0 0
          %2930 = vmatpush1.bf16.msra.mxu0 %v2913
          %2931 = vmatprep.subr.bf16.mxu0 0
          %2932 = vmatpush1.bf16.msra.mxu0 %v2914
          %2933 = vmatprep.subr.bf16.mxu0 0
          %2934 = vmatpush1.bf16.msra.mxu0 %v2915
          %2935 = vmatprep.subr.bf16.mxu0 0
          %2936 = vmatpush1.bf16.msra.mxu0 %v2916
          %2937 = vmatprep.subr.bf16.mxu0 0
          %2938 = vmatpush1.bf16.msra.mxu0 %v2917
          %2939 = vmatprep.subr.bf16.mxu0 0
          %2940 = vmatpush1.bf16.msra.mxu0 %v2918
          %2941 = vmatprep.subr.bf16.mxu0 0
          %2942 = vmatpush1.bf16.msra.mxu0 %v2919
          %2943 = vmatprep.subr.bf16.mxu0 0
          %2944 = vmatpush1.bf16.msra.mxu0 %v2920
          %2945 = vmatprep.subr.bf16.mxu0 0
          %2946 = vmatpush1.bf16.msra.mxu0 0
          %2947 = vmatprep.subr.bf16.mxu0 0
          %2948 = vmatpush1.bf16.msra.mxu0 0
          %2949 = vmatprep.subr.bf16.mxu0 0
          %2950 = vmatpush1.bf16.msra.mxu0 0
          %2951 = vmatprep.subr.bf16.mxu0 0
          %2952 = vmatpush1.bf16.msra.mxu0 0
          %2953 = vmatprep.subr.bf16.mxu0 0
          %2954 = vmatpush1.bf16.msra.mxu0 0
          %2955 = vmatprep.subr.bf16.mxu0 0
          %2956 = vmatpush1.bf16.msra.mxu0 0
          %2957 = vmatprep.subr.bf16.mxu0 0
          %2958 = vmatpush1.bf16.msra.mxu0 0
          %2959 = vmatprep.subr.bf16.mxu0 0
          %2960 = vmatpush1.bf16.msra.mxu0 0
          %2961 = vmatprep.mubr.bf16.mxu0 0
          %2962 = vmatmul.mubr.bf16.gmra.mrb[0].mxu0 %v2864
          %v2963 = vpop.f32.mrb[0].mxu0
          %v2964 = vadd.f32 0.0, %v2963
          %v2965 = vpop.f32.mrb[0].mxu0
          %v2966 = vpop.f32.mrb[0].mxu0
          %v2967 = vadd.f32 0.0, %v2966
          %v2968 = vpop.f32.mrb[0].mxu0
          %2969 = vdwg.mxu0
          %v2970 = vadd.f32 %v2862, %v2964
          %v2971 = vadd.f32 %v2863, %v2967
          %v2972 = vld [vmem:[%s5] sm:$0x1]
          %v2973 = vld [vmem:[%s6] sm:$0x1]
          %v2974 = vadd.f32 %v2970, %v2971
          %v2975 = vrot.slane %v2974, 4
          %v2976 = vadd.f32 %v2974, %v2975
          %v2977 = vrot.slane %v2976, 2
          %v2978 = vadd.f32 %v2976, %v2977
          %v2979 = vrot.slane %v2978, 1
          %v2980 = vadd.f32 %v2978, %v2979
          %v2981 = vmul.f32 %v2980, %v1732
          %v2982 = vsub.f32 %v2970, %v2981
          %v2983 = vsub.f32 %v2971, %v2981
          %v2984 = vmul.f32 %v2982, %v2982
          %v2985 = vmul.f32 %v2983, %v2983
          %v2986 = vadd.f32 %v2984, %v2985
          %v2987 = vrot.slane %v2986, 4
          %v2988 = vadd.f32 %v2986, %v2987
          %v2989 = vrot.slane %v2988, 2
          %v2990 = vadd.f32 %v2988, %v2989
          %v2991 = vrot.slane %v2990, 1
          %v2992 = vadd.f32 %v2990, %v2991
          %v2993 = vmul.f32 %v2992, %v1732
          %v2994 = vadd.f32 %v2993, 1e-05
          %v2995 = vrsqrt.pop %v2994
          %v2996 = vmul.f32 %v2982, %v2995
          %v2997 = vmul.f32 %v2983, %v2995
          %v2999 = vlaneseq
          %v3000 = vshrl.u32 %v2999, 7
          %v3001 = vsub.s32 0, %v3000
          %v3002 = vrot.slane %v2972, %v3001
          %v3004 = vmul.f32 %v2996, %v3002
          %v3005 = vmul.f32 %v2997, %v3002
          %v3007 = vlaneseq
          %v3008 = vshrl.u32 %v3007, 7
          %v3009 = vsub.s32 0, %v3008
          %v3010 = vrot.slane %v2973, %v3009
          %v3012 = vadd.f32 %v3004, %v3010
          %v3013 = vadd.f32 %v3005, %v3010
          %v3014 = vpack.c.bf16 %v3013, %v3012
          %v3015 = vld [vmem:[#allocation9] sm:$0xff]
          %v3016 = vld [vmem:[#allocation9 + $0x8] sm:$0xff]
          %v3017 = vld [vmem:[#allocation9 + $0x10] sm:$0xff]
          %v3018 = vld [vmem:[#allocation9 + $0x18] sm:$0xff]
          %v3019 = vld [vmem:[#allocation9 + $0x20] sm:$0xff]
          %v3020 = vld [vmem:[#allocation9 + $0x28] sm:$0xff]
          %v3021 = vld [vmem:[#allocation9 + $0x30] sm:$0xff]
          %v3022 = vld [vmem:[#allocation9 + $0x38] sm:$0xff]
          %v3023 = vld [vmem:[#allocation9 + $0x40] sm:$0xff]
          %v3024 = vld [vmem:[#allocation9 + $0x48] sm:$0xff]
          %v3025 = vld [vmem:[#allocation9 + $0x50] sm:$0xff]
          %v3026 = vld [vmem:[#allocation9 + $0x58] sm:$0xff]
          %v3027 = vld [vmem:[#allocation9 + $0x60] sm:$0xff]
          %v3028 = vld [vmem:[#allocation9 + $0x68] sm:$0xff]
          %v3029 = vld [vmem:[#allocation9 + $0x70] sm:$0xff]
          %v3030 = vld [vmem:[#allocation9 + $0x78] sm:$0xff]
          %v3031 = vld [vmem:[%s8] sm:$0x3]
          %v3033 = vlaneseq
          %v3034 = vshrl.u32 %v3033, 7
          %v3035 = vsub.s32 0, %v3034
          %v3036 = vrot.slane %v3031, %v3035
          %v3037 = vlaneseq
          %v3038 = vshrl.u32 %v3037, 7
          %v3039 = vsub.s32 1, %v3038
          %v3040 = vrot.slane %v3031, %v3039
          %v3059 = vunpack.c.l.b16 %v3015
          %v3060 = vunpack.c.h.b16 %v3015
          %v3061 = vunpack.c.l.b16 %v3016
          %v3062 = vunpack.c.h.b16 %v3016
          %v3063 = vunpack.c.l.b16 %v3017
          %v3064 = vunpack.c.h.b16 %v3017
          %v3065 = vunpack.c.l.b16 %v3018
          %v3066 = vunpack.c.h.b16 %v3018
          %v3067 = vunpack.c.l.b16 %v3019
          %v3068 = vunpack.c.h.b16 %v3019
          %v3069 = vunpack.c.l.b16 %v3020
          %v3070 = vunpack.c.h.b16 %v3020
          %v3071 = vunpack.c.l.b16 %v3021
          %v3072 = vunpack.c.h.b16 %v3021
          %v3073 = vunpack.c.l.b16 %v3022
          %v3074 = vunpack.c.h.b16 %v3022
          %v3075 = vunpack.c.l.b16 %v3023
          %v3076 = vunpack.c.h.b16 %v3023
          %v3077 = vunpack.c.l.b16 %v3024
          %v3078 = vunpack.c.h.b16 %v3024
          %v3079 = vunpack.c.l.b16 %v3025
          %v3080 = vunpack.c.h.b16 %v3025
          %v3081 = vunpack.c.l.b16 %v3026
          %v3082 = vunpack.c.h.b16 %v3026
          %v3083 = vunpack.c.l.b16 %v3027
          %v3084 = vunpack.c.h.b16 %v3027
          %v3085 = vunpack.c.l.b16 %v3028
          %v3086 = vunpack.c.h.b16 %v3028
          %v3087 = vunpack.c.l.b16 %v3029
          %v3088 = vunpack.c.h.b16 %v3029
          %v3089 = vunpack.c.l.b16 %v3030
          %v3090 = vunpack.c.h.b16 %v3030
          %v3091 = vpack.c.b16 %v3061, %v3059
          %v3092 = vpack.c.b16 %v3062, %v3060
          %v3093 = vpack.c.b16 %v3065, %v3063
          %v3094 = vpack.c.b16 %v3066, %v3064
          %v3095 = vpack.c.b16 %v3069, %v3067
          %v3096 = vpack.c.b16 %v3070, %v3068
          %v3097 = vpack.c.b16 %v3073, %v3071
          %v3098 = vpack.c.b16 %v3074, %v3072
          %v3099 = vpack.c.b16 %v3077, %v3075
          %v3100 = vpack.c.b16 %v3078, %v3076
          %v3101 = vpack.c.b16 %v3081, %v3079
          %v3102 = vpack.c.b16 %v3082, %v3080
          %v3103 = vpack.c.b16 %v3085, %v3083
          %v3104 = vpack.c.b16 %v3086, %v3084
          %v3105 = vpack.c.b16 %v3089, %v3087
          %v3106 = vpack.c.b16 %v3090, %v3088
          %3123 = vmatprep.subr.bf16.mxu0 %v3092
          %3124 = vmatpush1.bf16.msra.mxu0 %v3091
          %3125 = vmatprep.subr.bf16.mxu0 %v3094
          %3126 = vmatpush1.bf16.msra.mxu0 %v3093
          %3127 = vmatprep.subr.bf16.mxu0 %v3096
          %3128 = vmatpush1.bf16.msra.mxu0 %v3095
          %3129 = vmatprep.subr.bf16.mxu0 %v3098
          %3130 = vmatpush1.bf16.msra.mxu0 %v3097
          %3131 = vmatprep.subr.bf16.mxu0 %v3100
          %3132 = vmatpush1.bf16.msra.mxu0 %v3099
          %3133 = vmatprep.subr.bf16.mxu0 %v3102
          %3134 = vmatpush1.bf16.msra.mxu0 %v3101
          %3135 = vmatprep.subr.bf16.mxu0 %v3104
          %3136 = vmatpush1.bf16.msra.mxu0 %v3103
          %3137 = vmatprep.subr.bf16.mxu0 %v3106
          %3138 = vmatpush1.bf16.msra.mxu0 %v3105
          %3139 = vmatprep.subr.bf16.mxu0 0
          %3140 = vmatpush1.bf16.msra.mxu0 0
          %3141 = vmatprep.subr.bf16.mxu0 0
          %3142 = vmatpush1.bf16.msra.mxu0 0
          %3143 = vmatprep.subr.bf16.mxu0 0
          %3144 = vmatpush1.bf16.msra.mxu0 0
          %3145 = vmatprep.subr.bf16.mxu0 0
          %3146 = vmatpush1.bf16.msra.mxu0 0
          %3147 = vmatprep.subr.bf16.mxu0 0
          %3148 = vmatpush1.bf16.msra.mxu0 0
          %3149 = vmatprep.subr.bf16.mxu0 0
          %3150 = vmatpush1.bf16.msra.mxu0 0
          %3151 = vmatprep.subr.bf16.mxu0 0
          %3152 = vmatpush1.bf16.msra.mxu0 0
          %3153 = vmatprep.subr.bf16.mxu0 0
          %3154 = vmatpush1.bf16.msra.mxu0 0
          %3155 = vmatprep.mubr.bf16.mxu0 0
          %3156 = vmatmul.mubr.bf16.gmra.mrb[0].mxu0 %v3014
          %v3157 = vpop.f32.mrb[0].mxu0
          %v3158 = vadd.f32 %v3036, %v3157
          %v3159 = vpop.f32.mrb[0].mxu0
          %v3160 = vadd.f32 %v3040, %v3159
          %v3161 = vpop.f32.mrb[0].mxu0
          %v3162 = vadd.f32 %v3036, %v3161
          %v3163 = vpop.f32.mrb[0].mxu0
          %v3164 = vadd.f32 %v3040, %v3163
          %3165 = vdwg.mxu0
          %3166 = vst [vmem:[#allocation11] sm:$0xff] %v3158
          %3167 = vst [vmem:[#allocation11 + $0x10] sm:$0xff] %v3162
          %v3168 = vmax.f32 %v3160, 0.0
          %v3169 = vmax.f32 %v3164, 0.0
          %v3170 = vand.u32 2147483647, %v3160
          %v3171 = vand.u32 2147483647, %v3164
          %v3172 = vsub.f32 0.0, %v3170
          %v3173 = vsub.f32 0.0, %v3171
          %v3174 = vmul.f32 %v3172, 1.442695
          %v3175 = vpow.pop %v3174
          %v3176 = vmul.f32 %v3173, 1.442695
          %v3177 = vpow.pop %v3176
          %v3178 = vadd.f32 %v3175, 1.0
          %v3179 = vlog2.pop %v3178
          %v3180 = vmul.f32 %v3179, 0.6931472
          %v3181 = vmul.f32 -0.5, %v3175
          %v3182 = vadd.f32 %v3181, 1.0
          %v3183 = vmul.f32 %v3182, %v3175
          %v3184 = vand.u32 2147483647, %v3175
          %vm3185 = vcmp.lt.f32.partialorder %v3184, 0.0004427343
          %v3186 = vsel %vm3185, %v3183, %v3180
          %v3187 = vadd.f32 %v3177, 1.0
          %v3188 = vlog2.pop %v3187
          %v3189 = vmul.f32 %v3188, 0.6931472
          %v3190 = vmul.f32 -0.5, %v3177
          %v3191 = vadd.f32 %v3190, 1.0
          %v3192 = vmul.f32 %v3191, %v3177
          %v3193 = vand.u32 2147483647, %v3177
          %vm3194 = vcmp.lt.f32.partialorder %v3193, 0.0004427343
          %v3195 = vsel %vm3194, %v3192, %v3189
          %v3196 = vadd.f32 %v3168, %v3186
          %v3197 = vadd.f32 %v3169, %v3195
          %v3198 = vadd.f32 %v3196, 1e-07
          %v3199 = vadd.f32 %v3197, 1e-07
          %3200 = vst [vmem:[#allocation11 + $0x8] sm:$0xff] %v3198
          %3201 = vst [vmem:[#allocation11 + $0x18] sm:$0xff] %v3199
        $region92: #{tpu_custom_call.1} parent=55 // pred_fallthru
          _
        // Predicated region
        $region93: #{tpu_custom_call.1} parent=55 // pred_check
          %p3202 = pneg %p255
        $region94: #{tpu_custom_call.1} parent=55 // pred_check_branch
          %3204 = sbr.rel (%p3202) target = $region96
        $region95: #{tpu_custom_call.1} parent=55 // pred_region
          %s3206 = ssub.s32 512, 512
          %3207 = vsyncadd [#allocation5], %s3206
          %s3208 = sshll.u32 [#allocation11], 4
          %s3209 = int_to_ptr.vmem [resolvable:$true] %s3208
          %3214 = dma.vmem_to_hbm [thread:$0]  %s3209, 512, %s9, [#allocation5], 256, 256, 16
        $region96: #{tpu_custom_call.1} parent=55 // pred_fallthru
          _
        // Predicated region
        $region97: #{tpu_custom_call.1} parent=55 // pred_check
          %p3215 = pneg %p276
        $region98: #{tpu_custom_call.1} parent=55 // pred_check_branch
          %3217 = sbr.rel (%p3215) target = $region100
        $region99: #{tpu_custom_call.1} parent=55 // pred_region
          %s3219 = ssub.s32 256, 256
          %3220 = vsyncadd [#allocation13], %s3219
          %s3221 = sshll.u32 [#allocation12], 4
          %s3222 = int_to_ptr.vmem [resolvable:$true] %s3221
          %3227 = dma.vmem_to_hbm [thread:$0]  %s3222, 256, %s10, [#allocation13], 128, 128, 8
        $region100: #{tpu_custom_call.1} parent=55 // pred_fallthru
          _
        // Predicated region
        $region101: #{tpu_custom_call.1} parent=55 // pred_check
          %p3228 = pneg %p255
        $region102: #{tpu_custom_call.1} parent=55 // pred_check_branch
          %3230 = sbr.rel (%p3228) target = $region104
        $region103: #{tpu_custom_call.1} parent=55 // pred_region
          %3231 = dma.done [#allocation5], 512
        $region104: #{tpu_custom_call.1} parent=55 // pred_fallthru
          _
        // Predicated region
        $region105: #{tpu_custom_call.1} parent=55 // pred_check
          %p3232 = pneg %p276
        $region106: #{tpu_custom_call.1} parent=55 // pred_check_branch
          %3234 = sbr.rel (%p3232) target = $region108
        $region107: #{tpu_custom_call.1} parent=55 // pred_region
          %3235 = dma.done [#allocation13], 256
        $region108: #{tpu_custom_call.1} parent=55 // pred_fallthru
          _
      $region56: #{tpu_custom_call.1} parent=5 // pred_fallthru
        _
      %p3236 = scmp.le.s32.totalorder 2, %s24
      // Predicated region
      $region109: #{tpu_custom_call.1} parent=5 // pred_check
        %p3237 = pneg %p3236
      $region110: #{tpu_custom_call.1} parent=5 // pred_check_branch
        %3239 = sbr.rel (%p3237) target = $region112
      $region111: #{tpu_custom_call.1} parent=5 // pred_region
        %s3240 = ssub.s32 %s24, 2
      $region112: #{tpu_custom_call.1} parent=5 // pred_fallthru
        _
    $region6: #{tpu_custom_call.1} parent=1 // loop_footer
      %s28 = sadd.s32 1, %s24
    $region7: #{tpu_custom_call.1} parent=1 // loop_footer_branch
      %23 = sbr.rel target = $region3
    $region8: #{tpu_custom_call.1} parent=1 // loop_exit
      _
    %3241 = vsyncpa [#allocation4], 1
    %s3242 = scalar_lea.sflag [#allocation4], 1
    %3243 = vsyncpa %s3242, 1
    %3244 = vsyncpa [#allocation7], 1
    %s3245 = scalar_lea.sflag [#allocation7], 1
    %3246 = vsyncpa %s3245, 1
    %3247 = vsyncpa [#allocation10], 1
    %3248 = vsyncpa [#allocation5], 1
    %s3249 = scalar_lea.sflag [#allocation5], 1
    %3250 = vsyncpa %s3249, 1
    %3251 = vsyncpa [#allocation13], 1

</llo_original>
